<compile_context>
chip_gen: v7x
topology: tpu7x:2x2x1
jax: 0.10.0
libtpu: 0.0.40
codegen_flags: <defaults>
</compile_context>

<pallas_src>
import functools
import math

import jax
import jax.numpy as jnp
from jax.experimental import pallas as pl
from jax.experimental.pallas import tpu as pltpu

_EPS = 1e-5
_SLOPE = 0.2       # LeakyReLU negative slope
_LANE = 128        # TPU lane width


def _round_up(n, m):
    return (n + m - 1) // m * m


def _pad2(a, rows, cols):
    return jnp.pad(a, ((0, rows - a.shape[0]), (0, cols - a.shape[1])))


def _leaky(t):
    # LeakyReLU(0.2): max(t, 0.2*t) == where(t > 0, t, 0.2*t) since slope < 1.
    return jnp.maximum(t, _SLOPE * t)


def _write_stats(stats_ref, v, n_rows, mask):
    """v: (tile_rows, F) f32.

    Writes an (1, 8, F) block: row 0 = masked column sums, row 1 = masked column M2
    (sum of squared deviations about the *tile* mean). fold_bn combines tiles with a
    Chan-style merge, avoiding the E[x^2]-E[x]^2 cancellation. jnp.where (not multiply)
    keeps any garbage in out-of-bounds rows of a ragged tile from poisoning the sums.
    """
    vm = v if mask is None else jnp.where(mask, v, 0.0)
    s1 = jnp.sum(vm, axis=0, keepdims=True)
    mean_t = s1 * (1.0 / float(n_rows))
    d = v - mean_t
    if mask is not None:
        d = jnp.where(mask, d, 0.0)
    m2 = jnp.sum(d * d, axis=0, keepdims=True)
    pad = jnp.zeros((6, v.shape[1]), jnp.float32)
    stats_ref[...] = jnp.concatenate([s1, m2, pad], axis=0)[None]


def _emit_stats(stats_ref, v, *, tile_rows, last_rows, ragged):
    """Mask rows only on the last tile (and only if the grid is ragged)."""
    if not ragged:
        _write_stats(stats_ref, v, tile_rows, None)
        return

    last = pl.num_programs(0) - 1

    @pl.when(pl.program_id(0) != last)
    def _():
        _write_stats(stats_ref, v, tile_rows, None)

    @pl.when(pl.program_id(0) == last)
    def _():
        row = jax.lax.broadcasted_iota(jnp.int32, (tile_rows, 1), 0)
        _write_stats(stats_ref, v, last_rows, row < last_rows)


# -------- stage A: dim-unifier (Linear + LayerNorm) + first projector Linear ------------

def _stage_a_kernel(x_ref, w1_ref, b1_ref, ln_g_ref, ln_b_ref, w2_ref, b2_ref,
                    zpre_ref, stats_ref, *, unified_dim, tile_rows, last_rows, ragged):
    # x arrives in its original dtype/width; cast to bf16 in-kernel (no wrapper copy).
    x = x_ref[...].astype(jnp.bfloat16)
    h = jnp.dot(x, w1_ref[...], preferred_element_type=jnp.float32) + b1_ref[...]

    # LayerNorm over the *true* unified_dim, two-pass (centered) variance in f32.
    # W1's padded output columns / b1 padding are zero -> h is exactly 0 there, so the
    # mean over the padded axis equals the true-feature mean; the centered term masks
    # the padded columns explicitly.
    u_p = h.shape[-1]
    inv_u = 1.0 / float(unified_dim)
    mu = jnp.sum(h, axis=-1, keepdims=True) * inv_u
    d = h - mu
    if u_p != unified_dim:
        col = jax.lax.broadcasted_iota(jnp.int32, (1, u_p), 1)
        d = jnp.where(col < unified_dim, d, 0.0)
    var = jnp.sum(d * d, axis=-1, keepdims=True) * inv_u
    h = d * jax.lax.rsqrt(var + _EPS) * ln_g_ref[...] + ln_b_ref[...]
    # ln_g/ln_b are zero-padded -> padded columns of h stay exactly 0.

    z = (jnp.dot(h.astype(jnp.bfloat16), w2_ref[...],
                 preferred_element_type=jnp.float32) + b2_ref[...])
    zpre_ref[...] = z.astype(zpre_ref.dtype)          # bf16 inter-stage store
    _emit_stats(stats_ref, z, tile_rows=tile_rows, last_rows=last_rows, ragged=ragged)


# -------- stage B: BN1 (folded scale/shift) + LeakyReLU + second projector Linear -------

def _stage_b_kernel(z_ref, scale1_ref, shift1_ref, w3_ref, b3_ref,
                    ypre_ref, stats_ref, *, tile_rows, last_rows, ragged):
    z = _leaky(z_ref[...].astype(jnp.float32) * scale1_ref[...] + shift1_ref[...])
    y = (jnp.dot(z.astype(jnp.bfloat16), w3_ref[...],
                 preferred_element_type=jnp.float32) + b3_ref[...])
    ypre_ref[...] = y.astype(ypre_ref.dtype)           # bf16 inter-stage store
    _emit_stats(stats_ref, y, tile_rows=tile_rows, last_rows=last_rows, ragged=ragged)


# -------- wrapper ------------------------------------------------------------------------

def binary_head_forward(x, params, *, tb_max=1024):
    """Training-mode BinaryHead forward. x: (B, input_dim) float32.

    params: dict from init_params (Linear weights transposed to (in, out), norm params
    shaped (1, dim)). Returns (B, output_dim) float32 of {0., 1.}.

    Note: at tiny batch sizes this op is launch-overhead dominated; in production
    dispatch such sizes to a plain-JAX path and reserve the Pallas path for large B.
    """
    batch, input_dim = x.shape
    unified_dim = params["w1"].shape[1]
    hidden = params["w2"].shape[1]
    output_dim = params["w3"].shape[1]

    u_p = _round_up(unified_dim, _LANE)
    h_p = _round_up(hidden, _LANE)
    o_p = _round_up(output_dim, _LANE)

    # ---- batch tile -----------------------------------------------------------------
    # Prefer >= 2 tiles (so the "parallel" grid axis can shard across both TensorCores
    # on v7x), large tiles (default cap 1024 rows) to amortize per-step overhead, and a
    # VMEM-aware cap so double-buffered stage-A tiles stay well under the 32 MiB scoped
    # VMEM limit even for very wide input_dim.
    if batch <= 8:
        tb = 8
    else:
        tb = min(int(tb_max), _round_up(-(-batch // 2), 8))
    row_bytes = input_dim * 4 + u_p * 4 + h_p * 2       # x tile + LN intermediate + z_pre
    vmem_cap = max(8, (8 * 1024 * 1024 // max(row_bytes, 1)) // 8 * 8)
    tb = max(8, min(_round_up(tb, 8), vmem_cap))
    n_tiles = -(-batch // tb)
    last_rows = batch - (n_tiles - 1) * tb
    ragged = last_rows != tb
    tile_counts = [float(tb)] * (n_tiles - 1) + [float(last_rows)]

    f32, bf16 = jnp.float32, jnp.bfloat16

    # Weights are tiny: pad feature dims to lane multiples (lane-dense MXU tiles /
    # unmasked stores) and cast matmul operands to bf16. Norm gammas/betas are padded
    # with ZEROS so padded feature columns stay exactly 0.
    w1 = jnp.pad(params["w1"].astype(f32), ((0, 0), (0, u_p - unified_dim))).astype(bf16)
    b1 = _pad2(params["b1"].astype(f32), 1, u_p)
    ln_g = _pad2(params["ln_g"].astype(f32), 1, u_p)
    ln_b = _pad2(params["ln_b"].astype(f32), 1, u_p)
    w2 = _pad2(params["w2"].astype(f32), u_p, h_p).astype(bf16)
    b2 = _pad2(params["b2"].astype(f32), 1, h_p)
    bn1_g = _pad2(params["bn1_g"].astype(f32), 1, h_p)
    bn1_b = _pad2(params["bn1_b"].astype(f32), 1, h_p)
    w3 = _pad2(params["w3"].astype(f32), h_p, o_p).astype(bf16)
    b3 = _pad2(params["b3"].astype(f32), 1, o_p)
    bn2_g = _pad2(params["bn2_g"].astype(f32), 1, o_p)
    bn2_b = _pad2(params["bn2_b"].astype(f32), 1, o_p)

    row_map = lambda i: (i, 0)
    const_map = lambda i: (0, 0)
    stats_map = lambda i: (i, 0, 0)
    cparams = pltpu.CompilerParams(
        dimension_semantics=("parallel",),             # megacore-shardable on v7x
        vmem_limit_bytes=32 * 1024 * 1024,             # keep <= 32 MiB (v7x has 64 MiB total)
    )

    counts = jnp.asarray(tile_counts, f32)[:, None]

    def fold_bn(stats, gamma, beta):
        # stats: (n_tiles, 8, F); row 0 = per-tile masked sums, row 1 = per-tile M2
        # about the tile mean. Chan-style combine -> robust biased variance.
        sums = stats[:, 0, :]                           # (n_tiles, F)
        m2s = stats[:, 1, :]
        mean = jnp.sum(sums, axis=0) / batch
        tile_means = sums / counts
        m2 = (jnp.sum(m2s, axis=0)
              + jnp.sum(counts * (tile_means - mean[None, :]) ** 2, axis=0))
        var = jnp.maximum(m2 / batch, 0.0)              # biased var (PyTorch training BN)
        inv = jax.lax.rsqrt(var + _EPS)
        scale = gamma * inv[None, :]
        shift = beta - mean[None, :] * scale
        return scale, shift

    x_bytes = x.dtype.itemsize

    # ---- stage A ----
    z_pre, stats1 = pl.pallas_call(
        functools.partial(_stage_a_kernel, unified_dim=unified_dim,
                          tile_rows=tb, last_rows=last_rows, ragged=ragged),
        grid=(n_tiles,),
        in_specs=[
            pl.BlockSpec((tb, input_dim), row_map),      # x, full-extent last dim
            pl.BlockSpec((input_dim, u_p), const_map),
            pl.BlockSpec((1, u_p), const_map),
            pl.BlockSpec((1, u_p), const_map),
            pl.BlockSpec((1, u_p), const_map),
            pl.BlockSpec((u_p, h_p), const_map),
            pl.BlockSpec((1, h_p), const_map),
        ],
        out_specs=[
            pl.BlockSpec((tb, h_p), row_map),
            pl.BlockSpec((1, 8, h_p), stats_map),
        ],
        out_shape=[
            jax.ShapeDtypeStruct((batch, h_p), bf16),    # bf16 inter-stage activation
            jax.ShapeDtypeStruct((n_tiles, 8, h_p), f32),
        ],
        compiler_params=cparams,
        cost_estimate=pl.CostEstimate(
            flops=2 * n_tiles * tb * (input_dim * u_p + u_p * h_p) + 12 * n_tiles * tb * u_p,
            transcendentals=n_tiles * tb,
            bytes_accessed=(batch * input_dim * x_bytes + w1.size * 2 + w2.size * 2
                            + (b1.size + ln_g.size + ln_b.size + b2.size) * 4
                            + batch * h_p * 2 + n_tiles * 8 * h_p * 4),
        ),
    )(x, w1, b1, ln_g, ln_b, w2, b2)

    scale1, shift1 = fold_bn(stats1, bn1_g, bn1_b)

    # ---- stage B ----
    y_pre, stats2 = pl.pallas_call(
        functools.partial(_stage_b_kernel, tile_rows=tb, last_rows=last_rows, ragged=ragged),
        grid=(n_tiles,),
        in_specs=[
            pl.BlockSpec((tb, h_p), row_map),
            pl.BlockSpec((1, h_p), const_map),
            pl.BlockSpec((1, h_p), const_map),
            pl.BlockSpec((h_p, o_p), const_map),
            pl.BlockSpec((1, o_p), const_map),
        ],
        out_specs=[
            pl.BlockSpec((tb, o_p), row_map),
            pl.BlockSpec((1, 8, o_p), stats_map),
        ],
        out_shape=[
            jax.ShapeDtypeStruct((batch, o_p), bf16),    # bf16 inter-stage activation
            jax.ShapeDtypeStruct((n_tiles, 8, o_p), f32),
        ],
        compiler_params=cparams,
        cost_estimate=pl.CostEstimate(
            flops=2 * n_tiles * tb * h_p * o_p + 8 * n_tiles * tb * h_p,
            transcendentals=0,
            bytes_accessed=(batch * h_p * 2 + w3.size * 2
                            + (b3.size + scale1.size + shift1.size) * 4
                            + batch * o_p * 2 + n_tiles * 8 * o_p * 4),
        ),
    )(z_pre, scale1, shift1, w3, b3)

    scale2, shift2 = fold_bn(stats2, bn2_g, bn2_b)

    # ---- fused XLA epilogue (replaces the old stage-C Pallas kernel) ----
    # LeakyReLU(0.2) is sign-preserving, so the BinarySTE forward reduces to a sign test
    # of the BN2 affine; XLA fuses slice + affine + compare + cast into one pass and only
    # (batch, output_dim) is written.
    y = y_pre[:, :output_dim].astype(f32)
    out = ((y * scale2[:, :output_dim] + shift2[:, :output_dim]) > 0).astype(f32)
    return out


# -------- pure-JAX reference (PyTorch training-mode semantics, all f32) -----------------

def binary_head_reference(x, params):
    x = x.astype(jnp.float32)
    h = x @ params["w1"] + params["b1"]
    mu = jnp.mean(h, axis=-1, keepdims=True)
    var = jnp.mean((h - mu) ** 2, axis=-1, keepdims=True)
    h = (h - mu) * jax.lax.rsqrt(var + _EPS) * params["ln_g"] + params["ln_b"]

    z = h @ params["w2"] + params["b2"]
    bmu = jnp.mean(z, axis=0)
    bvar = jnp.mean((z - bmu) ** 2, axis=0)
    z = (z - bmu) * jax.lax.rsqrt(bvar + _EPS) * params["bn1_g"] + params["bn1_b"]
    z = jnp.where(z > 0, z, _SLOPE * z)

    y = z @ params["w3"] + params["b3"]
    bmu2 = jnp.mean(y, axis=0)
    bvar2 = jnp.mean((y - bmu2) ** 2, axis=0)
    y = (y - bmu2) * jax.lax.rsqrt(bvar2 + _EPS) * params["bn2_g"] + params["bn2_b"]
    y = jnp.where(y > 0, y, _SLOPE * y)
    return (y > 0).astype(jnp.float32)


def init_params(key, input_dim, unified_dim=64, output_dim=32):
    """PyTorch-default-like init. Linear weights stored transposed as (in, out);
    biases / norm affine params stored as (1, dim)."""
    assert output_dim == unified_dim // 2, (
        "BinaryHead as written only works when output_dim == unified_dim // 2")
    hidden = unified_dim // 2
    k1, k2, k3, k4, k5, k6 = jax.random.split(key, 6)

    def lin(kw, kb, fan_in, fan_out):
        bound = 1.0 / math.sqrt(fan_in)
        w = jax.random.uniform(kw, (fan_in, fan_out), jnp.float32, -bound, bound)
        b = jax.random.uniform(kb, (1, fan_out), jnp.float32, -bound, bound)
        return w, b

    w1, b1 = lin(k1, k2, input_dim, unified_dim)
    w2, b2 = lin(k3, k4, unified_dim, hidden)
    w3, b3 = lin(k5, k6, hidden, output_dim)
    return dict(
        w1=w1, b1=b1,
        ln_g=jnp.ones((1, unified_dim), jnp.float32),
        ln_b=jnp.zeros((1, unified_dim), jnp.float32),
        w2=w2, b2=b2,
        bn1_g=jnp.ones((1, hidden), jnp.float32),
        bn1_b=jnp.zeros((1, hidden), jnp.float32),
        w3=w3, b3=b3,
        bn2_g=jnp.ones((1, output_dim), jnp.float32),
        bn2_b=jnp.zeros((1, output_dim), jnp.float32),
    )


# TODO(synk): BatchNorm running_mean/var updates, eval mode, and the BinarySTE backward
# are not implemented (forward pass only, training-mode batch statistics).

if __name__ == "__main__":
    # Multi-tile config: 500 rows -> tile of 256 rows, 2 grid steps (one per TensorCore
    # on v7x); the ragged last tile (244 real rows) exercises the pl.when-gated masking
    # in the BN statistics.
    B, INPUT_DIM = 500, 96
    UNIFIED_DIM, OUTPUT_DIM = 64, 32   # module constraint: output_dim == unified_dim // 2

    key = jax.random.PRNGKey(0)
    kx, kp = jax.random.split(key)
    x = jax.random.normal(kx, (B, INPUT_DIM), jnp.float32)
    params = init_params(kp, INPUT_DIM, UNIFIED_DIM, OUTPUT_DIM)

    fwd = jax.jit(binary_head_forward)
    out = jax.block_until_ready(fwd(x, params))

    # sanity: strictly 0/1 output of the right shape
    assert out.shape == (B, OUTPUT_DIM)
    assert bool(jnp.all((out == 0.0) | (out == 1.0)))

    # correctness vs pure-f32 reference: bf16 matmuls + bf16 inter-stage activations may
    # flip a few near-zero codes, so check agreement rate rather than exact equality.
    ref = binary_head_reference(x, params)
    agreement = float(jnp.mean((out == ref).astype(jnp.float32)))
    assert agreement >= 0.90, f"agreement with f32 reference too low: {agreement}"

    print("KERNEL_OK")
</pallas_src>

<mosaic_0001>
module attributes {stable_mosaic.version = 11 : i64} {
  func.func @_stage_a_kernel(%arg0: i32, %arg1: memref<256x96xf32, #tpu.memory_space<vmem>>, %arg2: memref<96x128xbf16, #tpu.memory_space<vmem>>, %arg3: memref<1x128xf32, #tpu.memory_space<vmem>>, %arg4: memref<1x128xf32, #tpu.memory_space<vmem>>, %arg5: memref<1x128xf32, #tpu.memory_space<vmem>>, %arg6: memref<128x128xbf16, #tpu.memory_space<vmem>>, %arg7: memref<1x128xf32, #tpu.memory_space<vmem>>, %arg8: memref<256x128xbf16, #tpu.memory_space<vmem>>, %arg9: memref<1x8x128xf32, #tpu.memory_space<vmem>>) attributes {dimension_semantics = [#tpu.dimension_semantics<parallel>], iteration_bounds = array<i64: 2>, scalar_prefetch = 0 : i64, scratch_operands = 0 : i64, tpu.core_type = #tpu.core_type<tc>, window_params = [{transform_indices = @transform_0, window_bounds = array<i64: 256, 96>}, {pipeline_mode = #tpu.pipeline_mode<synchronous>, transform_indices = @transform_1, window_bounds = array<i64: 96, 128>}, {pipeline_mode = #tpu.pipeline_mode<synchronous>, transform_indices = @transform_2, window_bounds = array<i64: 1, 128>}, {pipeline_mode = #tpu.pipeline_mode<synchronous>, transform_indices = @transform_3, window_bounds = array<i64: 1, 128>}, {pipeline_mode = #tpu.pipeline_mode<synchronous>, transform_indices = @transform_4, window_bounds = array<i64: 1, 128>}, {pipeline_mode = #tpu.pipeline_mode<synchronous>, transform_indices = @transform_5, window_bounds = array<i64: 128, 128>}, {pipeline_mode = #tpu.pipeline_mode<synchronous>, transform_indices = @transform_6, window_bounds = array<i64: 1, 128>}, {transform_indices = @transform_7, window_bounds = array<i64: 256, 128>}, {transform_indices = @transform_8, window_bounds = array<i64: 1, 8, 128>}]} {
    %c0 = arith.constant 0 : index
    %c0_0 = arith.constant 0 : index
    %0 = vector.load %arg1[%c0, %c0_0] : memref<256x96xf32, #tpu.memory_space<vmem>>, vector<256x96xf32>
    %1 = arith.truncf %0 : vector<256x96xf32> to vector<256x96xbf16>
    %c0_1 = arith.constant 0 : index
    %c0_2 = arith.constant 0 : index
    %2 = vector.load %arg2[%c0_1, %c0_2] : memref<96x128xbf16, #tpu.memory_space<vmem>>, vector<96x128xbf16>
    %cst = arith.constant dense<0.000000e+00> : vector<256x128xf32>
    %3 = tpu.matmul %1, %2, %cst {dimension_numbers = #tpu.dot_dimension_numbers<[1], [0], [0], [1], [0, 0, 1, 1], [], []>} : vector<256x96xbf16>, vector<96x128xbf16>, vector<256x128xf32> -> vector<256x128xf32>
    %c0_3 = arith.constant 0 : index
    %c0_4 = arith.constant 0 : index
    %4 = vector.load %arg3[%c0_3, %c0_4] : memref<1x128xf32, #tpu.memory_space<vmem>>, vector<1x128xf32>
    %5 = vector.broadcast %4 : vector<1x128xf32> to vector<256x128xf32>
    %6 = arith.addf %3, %5 : vector<256x128xf32>
    %cst_5 = arith.constant dense<0.000000e+00> : vector<256xf32>
    %7 = vector.multi_reduction <add>, %6, %cst_5 [1] : vector<256x128xf32> to vector<256xf32>
    %8 = vector.shape_cast %7 : vector<256xf32> to vector<256x1xf32>
    %cst_6 = arith.constant 1.562500e-02 : f32
    %9 = vector.broadcast %cst_6 : f32 to vector<256x1xf32>
    %10 = arith.mulf %8, %9 : vector<256x1xf32>
    %11 = vector.broadcast %10 : vector<256x1xf32> to vector<256x128xf32>
    %12 = arith.subf %6, %11 : vector<256x128xf32>
    %13 = tpu.iota {dimensions = array<i32: 1>} : vector<1x128xi32>
    %c64_i32 = arith.constant 64 : i32
    %14 = vector.broadcast %c64_i32 : i32 to vector<1x128xi32>
    %15 = arith.cmpi slt, %13, %14 : vector<1x128xi32>
    %cst_7 = arith.constant 0.000000e+00 : f32
    %16 = vector.shape_cast %15 : vector<1x128xi1> to vector<1x128xi1>
    %17 = vector.broadcast %16 : vector<1x128xi1> to vector<256x128xi1>
    %18 = vector.broadcast %cst_7 : f32 to vector<256x128xf32>
    %19 = arith.select %17, %12, %18 : vector<256x128xi1>, vector<256x128xf32>
    %20 = arith.mulf %19, %19 : vector<256x128xf32>
    %cst_8 = arith.constant dense<0.000000e+00> : vector<256xf32>
    %21 = vector.multi_reduction <add>, %20, %cst_8 [1] : vector<256x128xf32> to vector<256xf32>
    %22 = vector.shape_cast %21 : vector<256xf32> to vector<256x1xf32>
    %cst_9 = arith.constant 1.562500e-02 : f32
    %23 = vector.broadcast %cst_9 : f32 to vector<256x1xf32>
    %24 = arith.mulf %22, %23 : vector<256x1xf32>
    %cst_10 = arith.constant 9.99999974E-6 : f32
    %25 = vector.broadcast %cst_10 : f32 to vector<256x1xf32>
    %26 = arith.addf %24, %25 : vector<256x1xf32>
    %27 = math.rsqrt %26 : vector<256x1xf32>
    %28 = vector.broadcast %27 : vector<256x1xf32> to vector<256x128xf32>
    %29 = arith.mulf %19, %28 : vector<256x128xf32>
    %c0_11 = arith.constant 0 : index
    %c0_12 = arith.constant 0 : index
    %30 = vector.load %arg4[%c0_11, %c0_12] : memref<1x128xf32, #tpu.memory_space<vmem>>, vector<1x128xf32>
    %31 = vector.broadcast %30 : vector<1x128xf32> to vector<256x128xf32>
    %32 = arith.mulf %29, %31 : vector<256x128xf32>
    %c0_13 = arith.constant 0 : index
    %c0_14 = arith.constant 0 : index
    %33 = vector.load %arg5[%c0_13, %c0_14] : memref<1x128xf32, #tpu.memory_space<vmem>>, vector<1x128xf32>
    %34 = vector.broadcast %33 : vector<1x128xf32> to vector<256x128xf32>
    %35 = arith.addf %32, %34 : vector<256x128xf32>
    %36 = arith.truncf %35 : vector<256x128xf32> to vector<256x128xbf16>
    %c0_15 = arith.constant 0 : index
    %c0_16 = arith.constant 0 : index
    %37 = vector.load %arg6[%c0_15, %c0_16] : memref<128x128xbf16, #tpu.memory_space<vmem>>, vector<128x128xbf16>
    %cst_17 = arith.constant dense<0.000000e+00> : vector<256x128xf32>
    %38 = tpu.matmul %36, %37, %cst_17 {dimension_numbers = #tpu.dot_dimension_numbers<[1], [0], [0], [1], [0, 0, 1, 1], [], []>} : vector<256x128xbf16>, vector<128x128xbf16>, vector<256x128xf32> -> vector<256x128xf32>
    %c0_18 = arith.constant 0 : index
    %c0_19 = arith.constant 0 : index
    %39 = vector.load %arg7[%c0_18, %c0_19] : memref<1x128xf32, #tpu.memory_space<vmem>>, vector<1x128xf32>
    %40 = vector.broadcast %39 : vector<1x128xf32> to vector<256x128xf32>
    %41 = arith.addf %38, %40 : vector<256x128xf32>
    %42 = arith.truncf %41 : vector<256x128xf32> to vector<256x128xbf16>
    %c0_20 = arith.constant 0 : index
    %c0_21 = arith.constant 0 : index
    %43 = vector.load %arg8[%c0_20, %c0_21] : memref<256x128xbf16, #tpu.memory_space<vmem>>, vector<256x128xbf16>
    tpu.vector_store %arg8[%c0_20, %c0_21], %42 {strides = array<i32>} : memref<256x128xbf16, #tpu.memory_space<vmem>>, vector<256x128xbf16>,
    %c1_i32 = arith.constant 1 : i32
    %44 = arith.cmpi ne, %arg0, %c1_i32 : i32
    %45 = arith.extui %44 : i1 to i32
    %c0_i32 = arith.constant 0 : i32
    %46 = arith.cmpi ne, %45, %c0_i32 : i32
    scf.if %46 {
      %cst_24 = arith.constant dense<0.000000e+00> : vector<128xf32>
      %50 = vector.multi_reduction <add>, %41, %cst_24 [0] : vector<256x128xf32> to vector<128xf32>
      %51 = vector.shape_cast %50 : vector<128xf32> to vector<1x128xf32>
      %cst_25 = arith.constant 3.906250e-03 : f32
      %52 = vector.broadcast %cst_25 : f32 to vector<1x128xf32>
      %53 = arith.mulf %51, %52 : vector<1x128xf32>
      %54 = vector.broadcast %53 : vector<1x128xf32> to vector<256x128xf32>
      %55 = arith.subf %41, %54 : vector<256x128xf32>
      %56 = arith.mulf %55, %55 : vector<256x128xf32>
      %cst_26 = arith.constant dense<0.000000e+00> : vector<128xf32>
      %57 = vector.multi_reduction <add>, %56, %cst_26 [0] : vector<256x128xf32> to vector<128xf32>
      %58 = vector.shape_cast %57 : vector<128xf32> to vector<1x128xf32>
      %cst_27 = arith.constant 0.000000e+00 : f32
      %59 = vector.broadcast %cst_27 : f32 to vector<6x128xf32>
      %60 = tpu.concatenate %51, %58, %59 in 0 : vector<1x128xf32>, vector<1x128xf32>, vector<6x128xf32> -> vector<8x128xf32>
      %61 = vector.shape_cast %60 : vector<8x128xf32> to vector<1x8x128xf32>
      %c0_28 = arith.constant 0 : index
      %c0_29 = arith.constant 0 : index
      %c0_30 = arith.constant 0 : index
      %62 = vector.load %arg9[%c0_28, %c0_29, %c0_30] : memref<1x8x128xf32, #tpu.memory_space<vmem>>, vector<1x8x128xf32>
      tpu.vector_store %arg9[%c0_28, %c0_29, %c0_30], %61 {strides = array<i32>} : memref<1x8x128xf32, #tpu.memory_space<vmem>>, vector<1x8x128xf32>,
    } else {
    }
    %c1_i32_22 = arith.constant 1 : i32
    %47 = arith.cmpi eq, %arg0, %c1_i32_22 : i32
    %48 = arith.extui %47 : i1 to i32
    %c0_i32_23 = arith.constant 0 : i32
    %49 = arith.cmpi ne, %48, %c0_i32_23 : i32
    scf.if %49 {
      %50 = tpu.iota {dimensions = array<i32: 0>} : vector<256x1xi32>
      %c244_i32 = arith.constant 244 : i32
      %51 = vector.broadcast %c244_i32 : i32 to vector<256x1xi32>
      %52 = arith.cmpi slt, %50, %51 : vector<256x1xi32>
      %cst_24 = arith.constant 0.000000e+00 : f32
      %53 = vector.shape_cast %52 : vector<256x1xi1> to vector<256x1xi1>
      %54 = vector.broadcast %53 : vector<256x1xi1> to vector<256x128xi1>
      %55 = vector.broadcast %cst_24 : f32 to vector<256x128xf32>
      %56 = arith.select %54, %41, %55 : vector<256x128xi1>, vector<256x128xf32>
      %cst_25 = arith.constant dense<0.000000e+00> : vector<128xf32>
      %57 = vector.multi_reduction <add>, %56, %cst_25 [0] : vector<256x128xf32> to vector<128xf32>
      %58 = vector.shape_cast %57 : vector<128xf32> to vector<1x128xf32>
      %cst_26 = arith.constant 0.00409836043 : f32
      %59 = vector.broadcast %cst_26 : f32 to vector<1x128xf32>
      %60 = arith.mulf %58, %59 : vector<1x128xf32>
      %61 = vector.broadcast %60 : vector<1x128xf32> to vector<256x128xf32>
      %62 = arith.subf %41, %61 : vector<256x128xf32>
      %cst_27 = arith.constant 0.000000e+00 : f32
      %63 = vector.shape_cast %52 : vector<256x1xi1> to vector<256x1xi1>
      %64 = vector.broadcast %63 : vector<256x1xi1> to vector<256x128xi1>
      %65 = vector.broadcast %cst_27 : f32 to vector<256x128xf32>
      %66 = arith.select %64, %62, %65 : vector<256x128xi1>, vector<256x128xf32>
      %67 = arith.mulf %66, %66 : vector<256x128xf32>
      %cst_28 = arith.constant dense<0.000000e+00> : vector<128xf32>
      %68 = vector.multi_reduction <add>, %67, %cst_28 [0] : vector<256x128xf32> to vector<128xf32>
      %69 = vector.shape_cast %68 : vector<128xf32> to vector<1x128xf32>
      %cst_29 = arith.constant 0.000000e+00 : f32
      %70 = vector.broadcast %cst_29 : f32 to vector<6x128xf32>
      %71 = tpu.concatenate %58, %69, %70 in 0 : vector<1x128xf32>, vector<1x128xf32>, vector<6x128xf32> -> vector<8x128xf32>
      %72 = vector.shape_cast %71 : vector<8x128xf32> to vector<1x8x128xf32>
      %c0_30 = arith.constant 0 : index
      %c0_31 = arith.constant 0 : index
      %c0_32 = arith.constant 0 : index
      %73 = vector.load %arg9[%c0_30, %c0_31, %c0_32] : memref<1x8x128xf32, #tpu.memory_space<vmem>>, vector<1x8x128xf32>
      tpu.vector_store %arg9[%c0_30, %c0_31, %c0_32], %72 {strides = array<i32>} : memref<1x8x128xf32, #tpu.memory_space<vmem>>, vector<1x8x128xf32>,
    } else {
    }
    return
  }
  func.func @transform_0(%arg0: i32) -> (i32, i32) {
    %c0_i32 = arith.constant 0 : i32
    %c0_i32_0 = arith.constant 0 : i32
    return %arg0, %c0_i32 : i32, i32
  }
  func.func @transform_1(%arg0: i32) -> (i32, i32) {
    %c0_i32 = arith.constant 0 : i32
    %c0_i32_0 = arith.constant 0 : i32
    %c0_i32_1 = arith.constant 0 : i32
    return %c0_i32, %c0_i32_0 : i32, i32
  }
  func.func @transform_2(%arg0: i32) -> (i32, i32) {
    %c0_i32 = arith.constant 0 : i32
    %c0_i32_0 = arith.constant 0 : i32
    %c0_i32_1 = arith.constant 0 : i32
    return %c0_i32, %c0_i32_0 : i32, i32
  }
  func.func @transform_3(%arg0: i32) -> (i32, i32) {
    %c0_i32 = arith.constant 0 : i32
    %c0_i32_0 = arith.constant 0 : i32
    %c0_i32_1 = arith.constant 0 : i32
    return %c0_i32, %c0_i32_0 : i32, i32
  }
  func.func @transform_4(%arg0: i32) -> (i32, i32) {
    %c0_i32 = arith.constant 0 : i32
    %c0_i32_0 = arith.constant 0 : i32
    %c0_i32_1 = arith.constant 0 : i32
    return %c0_i32, %c0_i32_0 : i32, i32
  }
  func.func @transform_5(%arg0: i32) -> (i32, i32) {
    %c0_i32 = arith.constant 0 : i32
    %c0_i32_0 = arith.constant 0 : i32
    %c0_i32_1 = arith.constant 0 : i32
    return %c0_i32, %c0_i32_0 : i32, i32
  }
  func.func @transform_6(%arg0: i32) -> (i32, i32) {
    %c0_i32 = arith.constant 0 : i32
    %c0_i32_0 = arith.constant 0 : i32
    %c0_i32_1 = arith.constant 0 : i32
    return %c0_i32, %c0_i32_0 : i32, i32
  }
  func.func @transform_7(%arg0: i32) -> (i32, i32) {
    %c0_i32 = arith.constant 0 : i32
    %c0_i32_0 = arith.constant 0 : i32
    return %arg0, %c0_i32 : i32, i32
  }
  func.func @transform_8(%arg0: i32) -> (i32, i32, i32) {
    %c0_i32 = arith.constant 0 : i32
    %c0_i32_0 = arith.constant 0 : i32
    %c0_i32_1 = arith.constant 0 : i32
    return %arg0, %c0_i32, %c0_i32_0 : i32, i32, i32
  }
}

module attributes {stable_mosaic.version = 11 : i64} {
  func.func @_stage_b_kernel(%arg0: i32, %arg1: memref<256x128xbf16, #tpu.memory_space<vmem>>, %arg2: memref<1x128xf32, #tpu.memory_space<vmem>>, %arg3: memref<1x128xf32, #tpu.memory_space<vmem>>, %arg4: memref<128x128xbf16, #tpu.memory_space<vmem>>, %arg5: memref<1x128xf32, #tpu.memory_space<vmem>>, %arg6: memref<256x128xbf16, #tpu.memory_space<vmem>>, %arg7: memref<1x8x128xf32, #tpu.memory_space<vmem>>) attributes {dimension_semantics = [#tpu.dimension_semantics<parallel>], iteration_bounds = array<i64: 2>, scalar_prefetch = 0 : i64, scratch_operands = 0 : i64, tpu.core_type = #tpu.core_type<tc>, window_params = [{transform_indices = @transform_0, window_bounds = array<i64: 256, 128>}, {pipeline_mode = #tpu.pipeline_mode<synchronous>, transform_indices = @transform_1, window_bounds = array<i64: 1, 128>}, {pipeline_mode = #tpu.pipeline_mode<synchronous>, transform_indices = @transform_2, window_bounds = array<i64: 1, 128>}, {pipeline_mode = #tpu.pipeline_mode<synchronous>, transform_indices = @transform_3, window_bounds = array<i64: 128, 128>}, {pipeline_mode = #tpu.pipeline_mode<synchronous>, transform_indices = @transform_4, window_bounds = array<i64: 1, 128>}, {transform_indices = @transform_5, window_bounds = array<i64: 256, 128>}, {transform_indices = @transform_6, window_bounds = array<i64: 1, 8, 128>}]} {
    %c0 = arith.constant 0 : index
    %c0_0 = arith.constant 0 : index
    %0 = vector.load %arg1[%c0, %c0_0] : memref<256x128xbf16, #tpu.memory_space<vmem>>, vector<256x128xbf16>
    %1 = arith.extf %0 : vector<256x128xbf16> to vector<256x128xf32>
    %c0_1 = arith.constant 0 : index
    %c0_2 = arith.constant 0 : index
    %2 = vector.load %arg2[%c0_1, %c0_2] : memref<1x128xf32, #tpu.memory_space<vmem>>, vector<1x128xf32>
    %3 = vector.broadcast %2 : vector<1x128xf32> to vector<256x128xf32>
    %4 = arith.mulf %1, %3 : vector<256x128xf32>
    %c0_3 = arith.constant 0 : index
    %c0_4 = arith.constant 0 : index
    %5 = vector.load %arg3[%c0_3, %c0_4] : memref<1x128xf32, #tpu.memory_space<vmem>>, vector<1x128xf32>
    %6 = vector.broadcast %5 : vector<1x128xf32> to vector<256x128xf32>
    %7 = arith.addf %4, %6 : vector<256x128xf32>
    %cst = arith.constant 2.000000e-01 : f32
    %8 = vector.broadcast %cst : f32 to vector<256x128xf32>
    %9 = arith.mulf %8, %7 : vector<256x128xf32>
    %10 = arith.maximumf %7, %9 : vector<256x128xf32>
    %11 = arith.truncf %10 : vector<256x128xf32> to vector<256x128xbf16>
    %c0_5 = arith.constant 0 : index
    %c0_6 = arith.constant 0 : index
    %12 = vector.load %arg4[%c0_5, %c0_6] : memref<128x128xbf16, #tpu.memory_space<vmem>>, vector<128x128xbf16>
    %cst_7 = arith.constant dense<0.000000e+00> : vector<256x128xf32>
    %13 = tpu.matmul %11, %12, %cst_7 {dimension_numbers = #tpu.dot_dimension_numbers<[1], [0], [0], [1], [0, 0, 1, 1], [], []>} : vector<256x128xbf16>, vector<128x128xbf16>, vector<256x128xf32> -> vector<256x128xf32>
    %c0_8 = arith.constant 0 : index
    %c0_9 = arith.constant 0 : index
    %14 = vector.load %arg5[%c0_8, %c0_9] : memref<1x128xf32, #tpu.memory_space<vmem>>, vector<1x128xf32>
    %15 = vector.broadcast %14 : vector<1x128xf32> to vector<256x128xf32>
    %16 = arith.addf %13, %15 : vector<256x128xf32>
    %17 = arith.truncf %16 : vector<256x128xf32> to vector<256x128xbf16>
    %c0_10 = arith.constant 0 : index
    %c0_11 = arith.constant 0 : index
    %18 = vector.load %arg6[%c0_10, %c0_11] : memref<256x128xbf16, #tpu.memory_space<vmem>>, vector<256x128xbf16>
    tpu.vector_store %arg6[%c0_10, %c0_11], %17 {strides = array<i32>} : memref<256x128xbf16, #tpu.memory_space<vmem>>, vector<256x128xbf16>,
    %c1_i32 = arith.constant 1 : i32
    %19 = arith.cmpi ne, %arg0, %c1_i32 : i32
    %20 = arith.extui %19 : i1 to i32
    %c0_i32 = arith.constant 0 : i32
    %21 = arith.cmpi ne, %20, %c0_i32 : i32
    scf.if %21 {
      %cst_14 = arith.constant dense<0.000000e+00> : vector<128xf32>
      %25 = vector.multi_reduction <add>, %16, %cst_14 [0] : vector<256x128xf32> to vector<128xf32>
      %26 = vector.shape_cast %25 : vector<128xf32> to vector<1x128xf32>
      %cst_15 = arith.constant 3.906250e-03 : f32
      %27 = vector.broadcast %cst_15 : f32 to vector<1x128xf32>
      %28 = arith.mulf %26, %27 : vector<1x128xf32>
      %29 = vector.broadcast %28 : vector<1x128xf32> to vector<256x128xf32>
      %30 = arith.subf %16, %29 : vector<256x128xf32>
      %31 = arith.mulf %30, %30 : vector<256x128xf32>
      %cst_16 = arith.constant dense<0.000000e+00> : vector<128xf32>
      %32 = vector.multi_reduction <add>, %31, %cst_16 [0] : vector<256x128xf32> to vector<128xf32>
      %33 = vector.shape_cast %32 : vector<128xf32> to vector<1x128xf32>
      %cst_17 = arith.constant 0.000000e+00 : f32
      %34 = vector.broadcast %cst_17 : f32 to vector<6x128xf32>
      %35 = tpu.concatenate %26, %33, %34 in 0 : vector<1x128xf32>, vector<1x128xf32>, vector<6x128xf32> -> vector<8x128xf32>
      %36 = vector.shape_cast %35 : vector<8x128xf32> to vector<1x8x128xf32>
      %c0_18 = arith.constant 0 : index
      %c0_19 = arith.constant 0 : index
      %c0_20 = arith.constant 0 : index
      %37 = vector.load %arg7[%c0_18, %c0_19, %c0_20] : memref<1x8x128xf32, #tpu.memory_space<vmem>>, vector<1x8x128xf32>
      tpu.vector_store %arg7[%c0_18, %c0_19, %c0_20], %36 {strides = array<i32>} : memref<1x8x128xf32, #tpu.memory_space<vmem>>, vector<1x8x128xf32>,
    } else {
    }
    %c1_i32_12 = arith.constant 1 : i32
    %22 = arith.cmpi eq, %arg0, %c1_i32_12 : i32
    %23 = arith.extui %22 : i1 to i32
    %c0_i32_13 = arith.constant 0 : i32
    %24 = arith.cmpi ne, %23, %c0_i32_13 : i32
    scf.if %24 {
      %25 = tpu.iota {dimensions = array<i32: 0>} : vector<256x1xi32>
      %c244_i32 = arith.constant 244 : i32
      %26 = vector.broadcast %c244_i32 : i32 to vector<256x1xi32>
      %27 = arith.cmpi slt, %25, %26 : vector<256x1xi32>
      %cst_14 = arith.constant 0.000000e+00 : f32
      %28 = vector.shape_cast %27 : vector<256x1xi1> to vector<256x1xi1>
      %29 = vector.broadcast %28 : vector<256x1xi1> to vector<256x128xi1>
      %30 = vector.broadcast %cst_14 : f32 to vector<256x128xf32>
      %31 = arith.select %29, %16, %30 : vector<256x128xi1>, vector<256x128xf32>
      %cst_15 = arith.constant dense<0.000000e+00> : vector<128xf32>
      %32 = vector.multi_reduction <add>, %31, %cst_15 [0] : vector<256x128xf32> to vector<128xf32>
      %33 = vector.shape_cast %32 : vector<128xf32> to vector<1x128xf32>
      %cst_16 = arith.constant 0.00409836043 : f32
      %34 = vector.broadcast %cst_16 : f32 to vector<1x128xf32>
      %35 = arith.mulf %33, %34 : vector<1x128xf32>
      %36 = vector.broadcast %35 : vector<1x128xf32> to vector<256x128xf32>
      %37 = arith.subf %16, %36 : vector<256x128xf32>
      %cst_17 = arith.constant 0.000000e+00 : f32
      %38 = vector.shape_cast %27 : vector<256x1xi1> to vector<256x1xi1>
      %39 = vector.broadcast %38 : vector<256x1xi1> to vector<256x128xi1>
      %40 = vector.broadcast %cst_17 : f32 to vector<256x128xf32>
      %41 = arith.select %39, %37, %40 : vector<256x128xi1>, vector<256x128xf32>
      %42 = arith.mulf %41, %41 : vector<256x128xf32>
      %cst_18 = arith.constant dense<0.000000e+00> : vector<128xf32>
      %43 = vector.multi_reduction <add>, %42, %cst_18 [0] : vector<256x128xf32> to vector<128xf32>
      %44 = vector.shape_cast %43 : vector<128xf32> to vector<1x128xf32>
      %cst_19 = arith.constant 0.000000e+00 : f32
      %45 = vector.broadcast %cst_19 : f32 to vector<6x128xf32>
      %46 = tpu.concatenate %33, %44, %45 in 0 : vector<1x128xf32>, vector<1x128xf32>, vector<6x128xf32> -> vector<8x128xf32>
      %47 = vector.shape_cast %46 : vector<8x128xf32> to vector<1x8x128xf32>
      %c0_20 = arith.constant 0 : index
      %c0_21 = arith.constant 0 : index
      %c0_22 = arith.constant 0 : index
      %48 = vector.load %arg7[%c0_20, %c0_21, %c0_22] : memref<1x8x128xf32, #tpu.memory_space<vmem>>, vector<1x8x128xf32>
      tpu.vector_store %arg7[%c0_20, %c0_21, %c0_22], %47 {strides = array<i32>} : memref<1x8x128xf32, #tpu.memory_space<vmem>>, vector<1x8x128xf32>,
    } else {
    }
    return
  }
  func.func @transform_0(%arg0: i32) -> (i32, i32) {
    %c0_i32 = arith.constant 0 : i32
    %c0_i32_0 = arith.constant 0 : i32
    return %arg0, %c0_i32 : i32, i32
  }
  func.func @transform_1(%arg0: i32) -> (i32, i32) {
    %c0_i32 = arith.constant 0 : i32
    %c0_i32_0 = arith.constant 0 : i32
    %c0_i32_1 = arith.constant 0 : i32
    return %c0_i32, %c0_i32_0 : i32, i32
  }
  func.func @transform_2(%arg0: i32) -> (i32, i32) {
    %c0_i32 = arith.constant 0 : i32
    %c0_i32_0 = arith.constant 0 : i32
    %c0_i32_1 = arith.constant 0 : i32
    return %c0_i32, %c0_i32_0 : i32, i32
  }
  func.func @transform_3(%arg0: i32) -> (i32, i32) {
    %c0_i32 = arith.constant 0 : i32
    %c0_i32_0 = arith.constant 0 : i32
    %c0_i32_1 = arith.constant 0 : i32
    return %c0_i32, %c0_i32_0 : i32, i32
  }
  func.func @transform_4(%arg0: i32) -> (i32, i32) {
    %c0_i32 = arith.constant 0 : i32
    %c0_i32_0 = arith.constant 0 : i32
    %c0_i32_1 = arith.constant 0 : i32
    return %c0_i32, %c0_i32_0 : i32, i32
  }
  func.func @transform_5(%arg0: i32) -> (i32, i32) {
    %c0_i32 = arith.constant 0 : i32
    %c0_i32_0 = arith.constant 0 : i32
    return %arg0, %c0_i32 : i32, i32
  }
  func.func @transform_6(%arg0: i32) -> (i32, i32, i32) {
    %c0_i32 = arith.constant 0 : i32
    %c0_i32_0 = arith.constant 0 : i32
    %c0_i32_1 = arith.constant 0 : i32
    return %arg0, %c0_i32, %c0_i32_0 : i32, i32, i32
  }
}

</mosaic_0001>

<llo_original>
// kernel: binary_head_forward.3
$region0: #{binary_head_forward.3}
  #allocation0 [shape = 'u32[]', space=smem, size = 0x4, offset = 0x4, fixed_abs, tag = 'smem constant byte address 0x4 - core index']
  #allocation1 [shape = 'u32[144,128]{1,0:T(1,128)}', space=vmem, size = 0x12000, scoped, tag = 'internal scratch']
  %s0 = inlined_call_operand.vmem [shape: bf16[500,128], index: 0, kind: input, shape index: {}]
  %s1 = inlined_call_operand.vmem [shape: f32[1,128], index: 1, kind: input, shape index: {}]
  %s2 = inlined_call_operand.vmem [shape: f32[1,128], index: 2, kind: input, shape index: {}]
  %s3 = inlined_call_operand.vmem [shape: bf16[128,128], index: 3, kind: input, shape index: {}]
  %s4 = inlined_call_operand.vmem [shape: f32[1,128], index: 4, kind: input, shape index: {}]
  %s5 = inlined_call_operand.vmem [shape: bf16[500,128], index: 5, kind: output, shape index: {0}]
  %s6 = inlined_call_operand.vmem [shape: f32[2,8,128], index: 6, kind: output, shape index: {1}]
  %7 = xla_tuple %s5, %s6
  %s8 = sld [smem:[#allocation0]]
  $region113: #{binary_head_forward.3} parent=0
    _
  %s10 = ssub.s32 1, %s8
  %s11 = scalar_select 0, %s10, %s8
  $region1: #{binary_head_forward.3} parent=0
    #allocation2 [shape = 'u8[131072]{0}', space=vmem, size = 0x20000, scoped, tag = 'output window, operand 0']
    loop: start=0, step=1, limit=4
    $region2: #{binary_head_forward.3} parent=1 // loop_pre_header
      _
    $region3: #{binary_head_forward.3} parent=1 // loop_header
      %s13 = sphi 0, %s17
      %p14 = scmp.ge.s32.totalorder %s13, 4
      %s23 = sphi 0, %s25
      %s26 = sphi 0, %s23
      %s27 = sphi 0, %s26
      %s43 = sphi 0, %s27
      %s47 = sphi 0, %s47
      %s49 = sphi 0, %s47
      %s50 = sphi 0, %s49
      %s64 = sphi 0, %s50
      %s68 = sphi 0, %s68
      %s70 = sphi 0, %s68
      %s71 = sphi 0, %s70
      %s85 = sphi 0, %s71
      %s89 = sphi 0, %s89
      %s91 = sphi 0, %s89
      %s92 = sphi 0, %s91
      %s106 = sphi 0, %s92
      %s110 = sphi 0, %s110
      %s112 = sphi 0, %s110
      %s113 = sphi 0, %s112
      %s127 = sphi 0, %s113
      %s133 = sphi 0, %s135
      %s136 = sphi 0, %s133
      %s137 = sphi 0, %s136
      %s153 = sphi 0, %s137
      %s159 = sphi 0, %s161
      %s162 = sphi 0, %s159
      %s163 = sphi 0, %s162
      %s179 = sphi 0, %s163
    $region4: #{binary_head_forward.3} parent=1 // loop_header_branch
      %16 = sbr.rel (%p14) target = $region8
    $region5: #{binary_head_forward.3} parent=1 // loop_body
      %s18 = ssub.s32 %s13, 1
      %s19 = ssub.s32 %s13, 2
      %s20 = sadd.s32 %s13, 1
      %s21 = ssub.s32 %s13, %s20
      %p22 = scmp.eq.s32.totalorder %s21, 0
      %s24 = sadd.s32 %s23, 1
      %s25 = scalar_select %p22, %s23, %s24
      %p28 = pneg %p22
      %p29 = scmp.eq.s32.totalorder %s13, 1
      %p30 = por %p28, %p29
      %p31 = scmp.ne.s32.totalorder %s23, %s26
      %p32 = scmp.eq.s32.totalorder %s13, 0
      %p33 = por %p31, %p32
      %p34 = scmp.ne.s32.totalorder %s23, %s26
      %p35 = scmp.eq.s32.totalorder %s18, 1
      %p36 = por %p34, %p35
      %p37 = scmp.ne.s32.totalorder %s26, %s27
      %p38 = scmp.eq.s32.totalorder %s18, 0
      %p39 = por %p37, %p38
      %p40 = scmp.ne.s32.totalorder %s26, %s27
      %p41 = scmp.eq.s32.totalorder %s19, 1
      %p42 = por %p40, %p41
      %p44 = scmp.ne.s32.totalorder %s27, %s43
      %p45 = scmp.eq.s32.totalorder %s19, 0
      %p46 = por %p44, %p45
      %s48 = sadd.s32 %s47, 1
      %p51 = scmp.eq.s32.totalorder %s13, 1
      %p52 = scmp.ne.s32.totalorder %s47, %s49
      %p53 = scmp.eq.s32.totalorder %s13, 0
      %p54 = por %p52, %p53
      %p55 = scmp.ne.s32.totalorder %s47, %s49
      %p56 = scmp.eq.s32.totalorder %s18, 1
      %p57 = por %p55, %p56
      %p58 = scmp.ne.s32.totalorder %s49, %s50
      %p59 = scmp.eq.s32.totalorder %s18, 0
      %p60 = por %p58, %p59
      %p61 = scmp.ne.s32.totalorder %s49, %s50
      %p62 = scmp.eq.s32.totalorder %s19, 1
      %p63 = por %p61, %p62
      %p65 = scmp.ne.s32.totalorder %s50, %s64
      %p66 = scmp.eq.s32.totalorder %s19, 0
      %p67 = por %p65, %p66
      %s69 = sadd.s32 %s68, 1
      %p72 = scmp.eq.s32.totalorder %s13, 1
      %p73 = scmp.ne.s32.totalorder %s68, %s70
      %p74 = scmp.eq.s32.totalorder %s13, 0
      %p75 = por %p73, %p74
      %p76 = scmp.ne.s32.totalorder %s68, %s70
      %p77 = scmp.eq.s32.totalorder %s18, 1
      %p78 = por %p76, %p77
      %p79 = scmp.ne.s32.totalorder %s70, %s71
      %p80 = scmp.eq.s32.totalorder %s18, 0
      %p81 = por %p79, %p80
      %p82 = scmp.ne.s32.totalorder %s70, %s71
      %p83 = scmp.eq.s32.totalorder %s19, 1
      %p84 = por %p82, %p83
      %p86 = scmp.ne.s32.totalorder %s71, %s85
      %p87 = scmp.eq.s32.totalorder %s19, 0
      %p88 = por %p86, %p87
      %s90 = sadd.s32 %s89, 1
      %p93 = scmp.eq.s32.totalorder %s13, 1
      %p94 = scmp.ne.s32.totalorder %s89, %s91
      %p95 = scmp.eq.s32.totalorder %s13, 0
      %p96 = por %p94, %p95
      %p97 = scmp.ne.s32.totalorder %s89, %s91
      %p98 = scmp.eq.s32.totalorder %s18, 1
      %p99 = por %p97, %p98
      %p100 = scmp.ne.s32.totalorder %s91, %s92
      %p101 = scmp.eq.s32.totalorder %s18, 0
      %p102 = por %p100, %p101
      %p103 = scmp.ne.s32.totalorder %s91, %s92
      %p104 = scmp.eq.s32.totalorder %s19, 1
      %p105 = por %p103, %p104
      %p107 = scmp.ne.s32.totalorder %s92, %s106
      %p108 = scmp.eq.s32.totalorder %s19, 0
      %p109 = por %p107, %p108
      %s111 = sadd.s32 %s110, 1
      %p114 = scmp.eq.s32.totalorder %s13, 1
      %p115 = scmp.ne.s32.totalorder %s110, %s112
      %p116 = scmp.eq.s32.totalorder %s13, 0
      %p117 = por %p115, %p116
      %p118 = scmp.ne.s32.totalorder %s110, %s112
      %p119 = scmp.eq.s32.totalorder %s18, 1
      %p120 = por %p118, %p119
      %p121 = scmp.ne.s32.totalorder %s112, %s113
      %p122 = scmp.eq.s32.totalorder %s18, 0
      %p123 = por %p121, %p122
      %p124 = scmp.ne.s32.totalorder %s112, %s113
      %p125 = scmp.eq.s32.totalorder %s19, 1
      %p126 = por %p124, %p125
      %p128 = scmp.ne.s32.totalorder %s113, %s127
      %p129 = scmp.eq.s32.totalorder %s19, 0
      %p130 = por %p128, %p129
      %s131 = ssub.s32 %s13, %s20
      %p132 = scmp.eq.s32.totalorder %s131, 0
      %s134 = sadd.s32 %s133, 1
      %s135 = scalar_select %p132, %s133, %s134
      %p138 = pneg %p132
      %p139 = scmp.eq.s32.totalorder %s13, 1
      %p140 = por %p138, %p139
      %p141 = scmp.ne.s32.totalorder %s133, %s136
      %p142 = scmp.eq.s32.totalorder %s13, 0
      %p143 = por %p141, %p142
      %p144 = scmp.ne.s32.totalorder %s133, %s136
      %p145 = scmp.eq.s32.totalorder %s18, 1
      %p146 = por %p144, %p145
      %p147 = scmp.ne.s32.totalorder %s136, %s137
      %p148 = scmp.eq.s32.totalorder %s18, 0
      %p149 = por %p147, %p148
      %p150 = scmp.ne.s32.totalorder %s136, %s137
      %p151 = scmp.eq.s32.totalorder %s19, 1
      %p152 = por %p150, %p151
      %p154 = scmp.ne.s32.totalorder %s137, %s153
      %p155 = scmp.eq.s32.totalorder %s19, 0
      %p156 = por %p154, %p155
      %s157 = ssub.s32 %s13, %s20
      %p158 = scmp.eq.s32.totalorder %s157, 0
      %s160 = sadd.s32 %s159, 1
      %s161 = scalar_select %p158, %s159, %s160
      %p164 = pneg %p158
      %p165 = scmp.eq.s32.totalorder %s13, 1
      %p166 = por %p164, %p165
      %p167 = scmp.ne.s32.totalorder %s159, %s162
      %p168 = scmp.eq.s32.totalorder %s13, 0
      %p169 = por %p167, %p168
      %p170 = scmp.ne.s32.totalorder %s159, %s162
      %p171 = scmp.eq.s32.totalorder %s18, 1
      %p172 = por %p170, %p171
      %p173 = scmp.ne.s32.totalorder %s162, %s163
      %p174 = scmp.eq.s32.totalorder %s18, 0
      %p175 = por %p173, %p174
      %p176 = scmp.ne.s32.totalorder %s162, %s163
      %p177 = scmp.eq.s32.totalorder %s19, 1
      %p178 = por %p176, %p177
      %p180 = scmp.ne.s32.totalorder %s163, %s179
      %p181 = scmp.eq.s32.totalorder %s19, 0
      %p182 = por %p180, %p181
      %p183 = scmp.le.s32.totalorder 1, %s13
      %p184 = scmp.lt.s32.totalorder %s13, 3
      %p185 = pnand %p183, %p184
      %p186 = pneg %p185
      // Predicated region
      $region9: #{binary_head_forward.3} parent=5 // pred_check
        _
      $region10: #{binary_head_forward.3} parent=5 // pred_check_branch
        %188 = sbr.rel (%p185) target = $region12
      $region11: #{binary_head_forward.3} parent=5 // pred_region
        %s189 = ssub.s32 %s13, 1
        // Predicated region
        $region13: #{binary_head_forward.3} parent=11 // pred_check
          %p190 = pneg %p60
        $region14: #{binary_head_forward.3} parent=11 // pred_check_branch
          %192 = sbr.rel (%p190) target = $region16
        $region15: #{binary_head_forward.3} parent=11 // pred_region
          _
        $region16: #{binary_head_forward.3} parent=11 // pred_fallthru
          _
        // Predicated region
        $region17: #{binary_head_forward.3} parent=11 // pred_check
          %p193 = pneg %p81
        $region18: #{binary_head_forward.3} parent=11 // pred_check_branch
          %195 = sbr.rel (%p193) target = $region20
        $region19: #{binary_head_forward.3} parent=11 // pred_region
          _
        $region20: #{binary_head_forward.3} parent=11 // pred_fallthru
          _
        // Predicated region
        $region21: #{binary_head_forward.3} parent=11 // pred_check
          %p196 = pneg %p102
        $region22: #{binary_head_forward.3} parent=11 // pred_check_branch
          %198 = sbr.rel (%p196) target = $region24
        $region23: #{binary_head_forward.3} parent=11 // pred_region
          _
        $region24: #{binary_head_forward.3} parent=11 // pred_fallthru
          _
        // Predicated region
        $region25: #{binary_head_forward.3} parent=11 // pred_check
          %p199 = pneg %p123
        $region26: #{binary_head_forward.3} parent=11 // pred_check_branch
          %201 = sbr.rel (%p199) target = $region28
        $region27: #{binary_head_forward.3} parent=11 // pred_region
          _
        $region28: #{binary_head_forward.3} parent=11 // pred_fallthru
          _
      $region12: #{binary_head_forward.3} parent=5 // pred_fallthru
        _
      %p202 = scmp.lt.s32.totalorder %s13, 2
      // Predicated region
      $region29: #{binary_head_forward.3} parent=5 // pred_check
        %p203 = pneg %p202
      $region30: #{binary_head_forward.3} parent=5 // pred_check_branch
        %205 = sbr.rel (%p203) target = $region32
      $region31: #{binary_head_forward.3} parent=5 // pred_region
        // Predicated region
        $region33: #{binary_head_forward.3} parent=31 // pred_check
          %p206 = pneg %p33
        $region34: #{binary_head_forward.3} parent=31 // pred_check_branch
          %208 = sbr.rel (%p206) target = $region36
        $region35: #{binary_head_forward.3} parent=31 // pred_region
          %s209 = smul.u32 32, %s13
          %s210 = ssub.s32 63, %s209
          %p211 = scmp.lt.s32.totalorder %s210, 32
          %s212 = scalar_select %p211, %s210, 32
          %s213 = smul.u32 64, %s212
          %p214 = scmp.lt.s32.totalorder %s209, 62
          %s215 = scalar_select %p214, %s209, 62
          %s216 = smul.addr %s215, 4
          %s217 = scalar_lea.vmem %s0, %s216
          %s218 = smul.u32 32, %s13
          %s219 = ssub.s32 63, %s218
          %p220 = scmp.lt.s32.totalorder %s219, 32
          %s221 = scalar_select %p220, %s219, 32
          %s222 = smul.u32 64, %s221
        $region36: #{binary_head_forward.3} parent=31 // pred_fallthru
          _
      $region32: #{binary_head_forward.3} parent=5 // pred_fallthru
        _
      %p223 = scmp.le.s32.totalorder 1, %s13
      %p224 = scmp.lt.s32.totalorder %s13, 3
      %p225 = pnand %p223, %p224
      %p226 = pneg %p225
      // Predicated region
      $region37: #{binary_head_forward.3} parent=5 // pred_check
        _
      $region38: #{binary_head_forward.3} parent=5 // pred_check_branch
        %228 = sbr.rel (%p225) target = $region40
      $region39: #{binary_head_forward.3} parent=5 // pred_region
        %s229 = ssub.s32 %s13, 1
        %s230 = smul.u32 32, %s18
        %s231 = ssub.s32 63, %s230
        %p232 = scmp.lt.s32.totalorder %s231, 32
        %s233 = scalar_select %p232, %s231, 32
        %s234 = smul.u32 64, %s233
        %p235 = scmp.lt.s32.totalorder %s230, 62
        %s236 = scalar_select %p235, %s230, 62
        %s237 = smul.addr %s236, 4
        %s238 = scalar_lea.vmem %s0, %s237
        %p239 = pneg %p39
        %p240 = pneg %p36
        %p241 = pneg %p60
        %p242 = pneg %p57
        %p243 = pneg %p81
        %p244 = pneg %p78
        %p245 = pneg %p102
        %p246 = pneg %p99
        %p247 = pneg %p123
        %p248 = pneg %p120
        %p249 = pneg %p149
        %p250 = pneg %p146
        %s251 = sand.u32 %s136, 1
        %s252 = sand.u32 %s136, 1
        %s253 = smul.addr %s252, 128
        %s254 = scalar_lea.vmem [#allocation2], %s253
        %p255 = pneg %p175
        %p256 = pneg %p172
        %p257 = scmp.lt.s32.totalorder %s18, 1
        %s258 = scalar_select %p257, %s18, 1
        %s259 = smul.addr %s258, 8
        %s260 = scalar_lea.vmem %s6, %s259
        %s261 = smul.u32 32, %s18
        %s262 = ssub.s32 63, %s261
        %p263 = scmp.lt.s32.totalorder %s262, 32
        %s264 = scalar_select %p263, %s262, 32
        %s265 = smul.u32 64, %s264
        %p266 = scmp.lt.s32.totalorder %s261, 62
        %s267 = scalar_select %p266, %s261, 62
        %s268 = smul.addr %s267, 4
        %s269 = scalar_lea.vmem %s0, %s268
        %s270 = smul.u32 32, %s18
        %s271 = ssub.s32 63, %s270
        %p272 = scmp.lt.s32.totalorder %s271, 32
        %s273 = scalar_select %p272, %s271, 32
        %s274 = smul.u32 64, %s273
        %s275 = smul.u32 32, %s18
        %s276 = ssub.s32 63, %s275
        %p277 = scmp.lt.s32.totalorder %s276, 32
        %s278 = scalar_select %p277, %s276, 32
        %s279 = smul.u32 64, %s278
        %p280 = scmp.lt.s32.totalorder %s18, 1
        %s281 = scalar_select %p280, %s18, 1
        %s282 = smul.addr %s281, 8
        %s283 = scalar_lea.vmem %s6, %s282
        %v285 = vld [vmem:[%s269] sm:$0xf]
        %v286 = vld [vmem:[%s269 + $0x4] sm:$0xf]
        %v287 = vld [vmem:[%s269 + $0x8] sm:$0xf]
        %v288 = vld [vmem:[%s269 + $0xc] sm:$0xf]
        %v289 = vld [vmem:[%s269 + $0x10] sm:$0xf]
        %v290 = vld [vmem:[%s269 + $0x14] sm:$0xf]
        %v291 = vld [vmem:[%s269 + $0x18] sm:$0xf]
        %v292 = vld [vmem:[%s269 + $0x1c] sm:$0xf]
        %v293 = vld [vmem:[%s269 + $0x20] sm:$0xf]
        %v294 = vld [vmem:[%s269 + $0x24] sm:$0xf]
        %v295 = vld [vmem:[%s269 + $0x28] sm:$0xf]
        %v296 = vld [vmem:[%s269 + $0x2c] sm:$0xf]
        %v297 = vld [vmem:[%s269 + $0x30] sm:$0xf]
        %v298 = vld [vmem:[%s269 + $0x34] sm:$0xf]
        %v299 = vld [vmem:[%s269 + $0x38] sm:$0xf]
        %v300 = vld [vmem:[%s269 + $0x3c] sm:$0xf]
        %v301 = vld [vmem:[%s269 + $0x40] sm:$0xf]
        %v302 = vld [vmem:[%s269 + $0x44] sm:$0xf]
        %v303 = vld [vmem:[%s269 + $0x48] sm:$0xf]
        %v304 = vld [vmem:[%s269 + $0x4c] sm:$0xf]
        %v305 = vld [vmem:[%s269 + $0x50] sm:$0xf]
        %v306 = vld [vmem:[%s269 + $0x54] sm:$0xf]
        %v307 = vld [vmem:[%s269 + $0x58] sm:$0xf]
        %v308 = vld [vmem:[%s269 + $0x5c] sm:$0xf]
        %v309 = vld [vmem:[%s269 + $0x60] sm:$0xf]
        %v310 = vld [vmem:[%s269 + $0x64] sm:$0xf]
        %v311 = vld [vmem:[%s269 + $0x68] sm:$0xf]
        %v312 = vld [vmem:[%s269 + $0x6c] sm:$0xf]
        %v313 = vld [vmem:[%s269 + $0x70] sm:$0xf]
        %v314 = vld [vmem:[%s269 + $0x74] sm:$0xf]
        %v315 = vld [vmem:[%s269 + $0x78] sm:$0xf]
        %v316 = vld [vmem:[%s269 + $0x7c] sm:$0xf]
        %v317 = vunpack.c.l.bf16 %v285
        %v318 = vunpack.c.l.bf16 %v286
        %v319 = vunpack.c.l.bf16 %v287
        %v320 = vunpack.c.l.bf16 %v288
        %v321 = vunpack.c.l.bf16 %v289
        %v322 = vunpack.c.l.bf16 %v290
        %v323 = vunpack.c.l.bf16 %v291
        %v324 = vunpack.c.l.bf16 %v292
        %v325 = vunpack.c.l.bf16 %v293
        %v326 = vunpack.c.l.bf16 %v294
        %v327 = vunpack.c.l.bf16 %v295
        %v328 = vunpack.c.l.bf16 %v296
        %v329 = vunpack.c.l.bf16 %v297
        %v330 = vunpack.c.l.bf16 %v298
        %v331 = vunpack.c.l.bf16 %v299
        %v332 = vunpack.c.l.bf16 %v300
        %v333 = vunpack.c.l.bf16 %v301
        %v334 = vunpack.c.l.bf16 %v302
        %v335 = vunpack.c.l.bf16 %v303
        %v336 = vunpack.c.l.bf16 %v304
        %v337 = vunpack.c.l.bf16 %v305
        %v338 = vunpack.c.l.bf16 %v306
        %v339 = vunpack.c.l.bf16 %v307
        %v340 = vunpack.c.l.bf16 %v308
        %v341 = vunpack.c.l.bf16 %v309
        %v342 = vunpack.c.l.bf16 %v310
        %v343 = vunpack.c.l.bf16 %v311
        %v344 = vunpack.c.l.bf16 %v312
        %v345 = vunpack.c.l.bf16 %v313
        %v346 = vunpack.c.l.bf16 %v314
        %v347 = vunpack.c.l.bf16 %v315
        %v348 = vunpack.c.l.bf16 %v316
        %v349 = vld [vmem:[%s1] sm:$0x1]
        %v351 = vlaneseq
        %v352 = vshrl.u32 %v351, 7
        %v353 = vsub.s32 0, %v352
        %v354 = vrot.slane %v349, %v353
        %v356 = vmul.f32 %v317, %v354
        %v357 = vmul.f32 %v318, %v354
        %v358 = vmul.f32 %v319, %v354
        %v359 = vmul.f32 %v320, %v354
        %v360 = vmul.f32 %v321, %v354
        %v361 = vmul.f32 %v322, %v354
        %v362 = vmul.f32 %v323, %v354
        %v363 = vmul.f32 %v324, %v354
        %v364 = vmul.f32 %v325, %v354
        %v365 = vmul.f32 %v326, %v354
        %v366 = vmul.f32 %v327, %v354
        %v367 = vmul.f32 %v328, %v354
        %v368 = vmul.f32 %v329, %v354
        %v369 = vmul.f32 %v330, %v354
        %v370 = vmul.f32 %v331, %v354
        %v371 = vmul.f32 %v332, %v354
        %v372 = vmul.f32 %v333, %v354
        %v373 = vmul.f32 %v334, %v354
        %v374 = vmul.f32 %v335, %v354
        %v375 = vmul.f32 %v336, %v354
        %v376 = vmul.f32 %v337, %v354
        %v377 = vmul.f32 %v338, %v354
        %v378 = vmul.f32 %v339, %v354
        %v379 = vmul.f32 %v340, %v354
        %v380 = vmul.f32 %v341, %v354
        %v381 = vmul.f32 %v342, %v354
        %v382 = vmul.f32 %v343, %v354
        %v383 = vmul.f32 %v344, %v354
        %v384 = vmul.f32 %v345, %v354
        %v385 = vmul.f32 %v346, %v354
        %v386 = vmul.f32 %v347, %v354
        %v387 = vmul.f32 %v348, %v354
        %v388 = vld [vmem:[%s2] sm:$0x1]
        %v390 = vlaneseq
        %v391 = vshrl.u32 %v390, 7
        %v392 = vsub.s32 0, %v391
        %v393 = vrot.slane %v388, %v392
        %v395 = vadd.f32 %v356, %v393
        %v396 = vadd.f32 %v357, %v393
        %v397 = vadd.f32 %v358, %v393
        %v398 = vadd.f32 %v359, %v393
        %v399 = vadd.f32 %v360, %v393
        %v400 = vadd.f32 %v361, %v393
        %v401 = vadd.f32 %v362, %v393
        %v402 = vadd.f32 %v363, %v393
        %v403 = vadd.f32 %v364, %v393
        %v404 = vadd.f32 %v365, %v393
        %v405 = vadd.f32 %v366, %v393
        %v406 = vadd.f32 %v367, %v393
        %v407 = vadd.f32 %v368, %v393
        %v408 = vadd.f32 %v369, %v393
        %v409 = vadd.f32 %v370, %v393
        %v410 = vadd.f32 %v371, %v393
        %v411 = vadd.f32 %v372, %v393
        %v412 = vadd.f32 %v373, %v393
        %v413 = vadd.f32 %v374, %v393
        %v414 = vadd.f32 %v375, %v393
        %v415 = vadd.f32 %v376, %v393
        %v416 = vadd.f32 %v377, %v393
        %v417 = vadd.f32 %v378, %v393
        %v418 = vadd.f32 %v379, %v393
        %v419 = vadd.f32 %v380, %v393
        %v420 = vadd.f32 %v381, %v393
        %v421 = vadd.f32 %v382, %v393
        %v422 = vadd.f32 %v383, %v393
        %v423 = vadd.f32 %v384, %v393
        %v424 = vadd.f32 %v385, %v393
        %v425 = vadd.f32 %v386, %v393
        %v426 = vadd.f32 %v387, %v393
        %v427 = vmul.f32 %v395, 0.2
        %v428 = vmul.f32 %v396, 0.2
        %v429 = vmul.f32 %v397, 0.2
        %v430 = vmul.f32 %v398, 0.2
        %v431 = vmul.f32 %v399, 0.2
        %v432 = vmul.f32 %v400, 0.2
        %v433 = vmul.f32 %v401, 0.2
        %v434 = vmul.f32 %v402, 0.2
        %v435 = vmul.f32 %v403, 0.2
        %v436 = vmul.f32 %v404, 0.2
        %v437 = vmul.f32 %v405, 0.2
        %v438 = vmul.f32 %v406, 0.2
        %v439 = vmul.f32 %v407, 0.2
        %v440 = vmul.f32 %v408, 0.2
        %v441 = vmul.f32 %v409, 0.2
        %v442 = vmul.f32 %v410, 0.2
        %v443 = vmul.f32 %v411, 0.2
        %v444 = vmul.f32 %v412, 0.2
        %v445 = vmul.f32 %v413, 0.2
        %v446 = vmul.f32 %v414, 0.2
        %v447 = vmul.f32 %v415, 0.2
        %v448 = vmul.f32 %v416, 0.2
        %v449 = vmul.f32 %v417, 0.2
        %v450 = vmul.f32 %v418, 0.2
        %v451 = vmul.f32 %v419, 0.2
        %v452 = vmul.f32 %v420, 0.2
        %v453 = vmul.f32 %v421, 0.2
        %v454 = vmul.f32 %v422, 0.2
        %v455 = vmul.f32 %v423, 0.2
        %v456 = vmul.f32 %v424, 0.2
        %v457 = vmul.f32 %v425, 0.2
        %v458 = vmul.f32 %v426, 0.2
        %v459 = vmax.f32 %v395, %v427
        %v460 = vmax.f32 %v396, %v428
        %v461 = vmax.f32 %v397, %v429
        %v462 = vmax.f32 %v398, %v430
        %v463 = vmax.f32 %v399, %v431
        %v464 = vmax.f32 %v400, %v432
        %v465 = vmax.f32 %v401, %v433
        %v466 = vmax.f32 %v402, %v434
        %v467 = vmax.f32 %v403, %v435
        %v468 = vmax.f32 %v404, %v436
        %v469 = vmax.f32 %v405, %v437
        %v470 = vmax.f32 %v406, %v438
        %v471 = vmax.f32 %v407, %v439
        %v472 = vmax.f32 %v408, %v440
        %v473 = vmax.f32 %v409, %v441
        %v474 = vmax.f32 %v410, %v442
        %v475 = vmax.f32 %v411, %v443
        %v476 = vmax.f32 %v412, %v444
        %v477 = vmax.f32 %v413, %v445
        %v478 = vmax.f32 %v414, %v446
        %v479 = vmax.f32 %v415, %v447
        %v480 = vmax.f32 %v416, %v448
        %v481 = vmax.f32 %v417, %v449
        %v482 = vmax.f32 %v418, %v450
        %v483 = vmax.f32 %v419, %v451
        %v484 = vmax.f32 %v420, %v452
        %v485 = vmax.f32 %v421, %v453
        %v486 = vmax.f32 %v422, %v454
        %v487 = vmax.f32 %v423, %v455
        %v488 = vmax.f32 %v424, %v456
        %v489 = vmax.f32 %v425, %v457
        %v490 = vmax.f32 %v426, %v458
        %v491 = vpack.c.bf16 %v460, %v459
        %v492 = vpack.c.bf16 %v462, %v461
        %v493 = vpack.c.bf16 %v464, %v463
        %v494 = vpack.c.bf16 %v466, %v465
        %v495 = vpack.c.bf16 %v468, %v467
        %v496 = vpack.c.bf16 %v470, %v469
        %v497 = vpack.c.bf16 %v472, %v471
        %v498 = vpack.c.bf16 %v474, %v473
        %v499 = vpack.c.bf16 %v476, %v475
        %v500 = vpack.c.bf16 %v478, %v477
        %v501 = vpack.c.bf16 %v480, %v479
        %v502 = vpack.c.bf16 %v482, %v481
        %v503 = vpack.c.bf16 %v484, %v483
        %v504 = vpack.c.bf16 %v486, %v485
        %v505 = vpack.c.bf16 %v488, %v487
        %v506 = vpack.c.bf16 %v490, %v489
        %v507 = vld [vmem:[%s3] sm:$0xf]
        %v508 = vld [vmem:[%s3 + $0x4] sm:$0xf]
        %v509 = vld [vmem:[%s3 + $0x8] sm:$0xf]
        %v510 = vld [vmem:[%s3 + $0xc] sm:$0xf]
        %v511 = vld [vmem:[%s3 + $0x10] sm:$0xf]
        %v512 = vld [vmem:[%s3 + $0x14] sm:$0xf]
        %v513 = vld [vmem:[%s3 + $0x18] sm:$0xf]
        %v514 = vld [vmem:[%s3 + $0x1c] sm:$0xf]
        %v515 = vld [vmem:[%s3 + $0x20] sm:$0xf]
        %v516 = vld [vmem:[%s3 + $0x24] sm:$0xf]
        %v517 = vld [vmem:[%s3 + $0x28] sm:$0xf]
        %v518 = vld [vmem:[%s3 + $0x2c] sm:$0xf]
        %v519 = vld [vmem:[%s3 + $0x30] sm:$0xf]
        %v520 = vld [vmem:[%s3 + $0x34] sm:$0xf]
        %v521 = vld [vmem:[%s3 + $0x38] sm:$0xf]
        %v522 = vld [vmem:[%s3 + $0x3c] sm:$0xf]
        %v523 = vld [vmem:[%s4] sm:$0x1]
        %v525 = vlaneseq
        %v526 = vshrl.u32 %v525, 7
        %v527 = vsub.s32 0, %v526
        %v528 = vrot.slane %v523, %v527
        %v546 = vunpack.c.l.b16 %v507
        %v547 = vunpack.c.l.b16 %v508
        %v548 = vunpack.c.l.b16 %v509
        %v549 = vunpack.c.l.b16 %v510
        %v550 = vunpack.c.l.b16 %v511
        %v551 = vunpack.c.l.b16 %v512
        %v552 = vunpack.c.l.b16 %v513
        %v553 = vunpack.c.l.b16 %v514
        %v554 = vunpack.c.l.b16 %v515
        %v555 = vunpack.c.l.b16 %v516
        %v556 = vunpack.c.l.b16 %v517
        %v557 = vunpack.c.l.b16 %v518
        %v558 = vunpack.c.l.b16 %v519
        %v559 = vunpack.c.l.b16 %v520
        %v560 = vunpack.c.l.b16 %v521
        %v561 = vunpack.c.l.b16 %v522
        %v562 = vpack.c.b16 %v547, %v546
        %v563 = vpack.c.b16 %v549, %v548
        %v564 = vpack.c.b16 %v551, %v550
        %v565 = vpack.c.b16 %v553, %v552
        %v566 = vpack.c.b16 %v555, %v554
        %v567 = vpack.c.b16 %v557, %v556
        %v568 = vpack.c.b16 %v559, %v558
        %v569 = vpack.c.b16 %v561, %v560
        %578 = vmatprep.subr.bf16.mxu0 0
        %579 = vmatpush1.bf16.msra.mxu0 %v562
        %580 = vmatprep.subr.bf16.mxu0 0
        %581 = vmatpush1.bf16.msra.mxu0 %v563
        %582 = vmatprep.subr.bf16.mxu0 0
        %583 = vmatpush1.bf16.msra.mxu0 %v564
        %584 = vmatprep.subr.bf16.mxu0 0
        %585 = vmatpush1.bf16.msra.mxu0 %v565
        %586 = vmatprep.subr.bf16.mxu0 0
        %587 = vmatpush1.bf16.msra.mxu0 %v566
        %588 = vmatprep.subr.bf16.mxu0 0
        %589 = vmatpush1.bf16.msra.mxu0 %v567
        %590 = vmatprep.subr.bf16.mxu0 0
        %591 = vmatpush1.bf16.msra.mxu0 %v568
        %592 = vmatprep.subr.bf16.mxu0 0
        %593 = vmatpush1.bf16.msra.mxu0 %v569
        %594 = vmatprep.subr.bf16.mxu0 0
        %595 = vmatpush1.bf16.msra.mxu0 0
        %596 = vmatprep.subr.bf16.mxu0 0
        %597 = vmatpush1.bf16.msra.mxu0 0
        %598 = vmatprep.subr.bf16.mxu0 0
        %599 = vmatpush1.bf16.msra.mxu0 0
        %600 = vmatprep.subr.bf16.mxu0 0
        %601 = vmatpush1.bf16.msra.mxu0 0
        %602 = vmatprep.subr.bf16.mxu0 0
        %603 = vmatpush1.bf16.msra.mxu0 0
        %604 = vmatprep.subr.bf16.mxu0 0
        %605 = vmatpush1.bf16.msra.mxu0 0
        %606 = vmatprep.subr.bf16.mxu0 0
        %607 = vmatpush1.bf16.msra.mxu0 0
        %608 = vmatprep.subr.bf16.mxu0 0
        %609 = vmatpush1.bf16.msra.mxu0 0
        %610 = vmatprep.mubr.bf16.mxu0 0
        %611 = vmatmul.mubr.bf16.gmra.mrb[0].mxu0 %v491
        %v612 = vpop.f32.mrb[0].mxu0
        %v613 = vadd.f32 %v528, %v612
        %v614 = vpop.f32.mrb[0].mxu0
        %v615 = vpop.f32.mrb[0].mxu0
        %v616 = vadd.f32 %v528, %v615
        %v617 = vpop.f32.mrb[0].mxu0
        %618 = vmatprep.mubr.bf16.mxu0 0
        %619 = vmatmul.mubr.bf16.gmra.mrb[0].mxu0 %v492
        %v620 = vpop.f32.mrb[0].mxu0
        %v621 = vadd.f32 %v528, %v620
        %v622 = vpop.f32.mrb[0].mxu0
        %v623 = vpop.f32.mrb[0].mxu0
        %v624 = vadd.f32 %v528, %v623
        %v625 = vpop.f32.mrb[0].mxu0
        %626 = vmatprep.mubr.bf16.mxu0 0
        %627 = vmatmul.mubr.bf16.gmra.mrb[0].mxu0 %v493
        %v628 = vpop.f32.mrb[0].mxu0
        %v629 = vadd.f32 %v528, %v628
        %v630 = vpop.f32.mrb[0].mxu0
        %v631 = vpop.f32.mrb[0].mxu0
        %v632 = vadd.f32 %v528, %v631
        %v633 = vpop.f32.mrb[0].mxu0
        %634 = vmatprep.mubr.bf16.mxu0 0
        %635 = vmatmul.mubr.bf16.gmra.mrb[0].mxu0 %v494
        %v636 = vpop.f32.mrb[0].mxu0
        %v637 = vadd.f32 %v528, %v636
        %v638 = vpop.f32.mrb[0].mxu0
        %v639 = vpop.f32.mrb[0].mxu0
        %v640 = vadd.f32 %v528, %v639
        %v641 = vpop.f32.mrb[0].mxu0
        %642 = vmatprep.mubr.bf16.mxu0 0
        %643 = vmatmul.mubr.bf16.gmra.mrb[0].mxu0 %v495
        %v644 = vpop.f32.mrb[0].mxu0
        %v645 = vadd.f32 %v528, %v644
        %v646 = vpop.f32.mrb[0].mxu0
        %v647 = vpop.f32.mrb[0].mxu0
        %v648 = vadd.f32 %v528, %v647
        %v649 = vpop.f32.mrb[0].mxu0
        %650 = vmatprep.mubr.bf16.mxu0 0
        %651 = vmatmul.mubr.bf16.gmra.mrb[0].mxu0 %v496
        %v652 = vpop.f32.mrb[0].mxu0
        %v653 = vadd.f32 %v528, %v652
        %v654 = vpop.f32.mrb[0].mxu0
        %v655 = vpop.f32.mrb[0].mxu0
        %v656 = vadd.f32 %v528, %v655
        %v657 = vpop.f32.mrb[0].mxu0
        %658 = vmatprep.mubr.bf16.mxu0 0
        %659 = vmatmul.mubr.bf16.gmra.mrb[0].mxu0 %v497
        %v660 = vpop.f32.mrb[0].mxu0
        %v661 = vadd.f32 %v528, %v660
        %v662 = vpop.f32.mrb[0].mxu0
        %v663 = vpop.f32.mrb[0].mxu0
        %v664 = vadd.f32 %v528, %v663
        %v665 = vpop.f32.mrb[0].mxu0
        %666 = vmatprep.mubr.bf16.mxu0 0
        %667 = vmatmul.mubr.bf16.gmra.mrb[0].mxu0 %v498
        %v668 = vpop.f32.mrb[0].mxu0
        %v669 = vadd.f32 %v528, %v668
        %v670 = vpop.f32.mrb[0].mxu0
        %v671 = vpop.f32.mrb[0].mxu0
        %v672 = vadd.f32 %v528, %v671
        %v673 = vpop.f32.mrb[0].mxu0
        %674 = vmatprep.mubr.bf16.mxu0 0
        %675 = vmatmul.mubr.bf16.gmra.mrb[0].mxu0 %v499
        %v676 = vpop.f32.mrb[0].mxu0
        %v677 = vadd.f32 %v528, %v676
        %v678 = vpop.f32.mrb[0].mxu0
        %v679 = vpop.f32.mrb[0].mxu0
        %v680 = vadd.f32 %v528, %v679
        %v681 = vpop.f32.mrb[0].mxu0
        %682 = vmatprep.mubr.bf16.mxu0 0
        %683 = vmatmul.mubr.bf16.gmra.mrb[0].mxu0 %v500
        %v684 = vpop.f32.mrb[0].mxu0
        %v685 = vadd.f32 %v528, %v684
        %v686 = vpop.f32.mrb[0].mxu0
        %v687 = vpop.f32.mrb[0].mxu0
        %v688 = vadd.f32 %v528, %v687
        %v689 = vpop.f32.mrb[0].mxu0
        %690 = vmatprep.mubr.bf16.mxu0 0
        %691 = vmatmul.mubr.bf16.gmra.mrb[0].mxu0 %v501
        %v692 = vpop.f32.mrb[0].mxu0
        %v693 = vadd.f32 %v528, %v692
        %v694 = vpop.f32.mrb[0].mxu0
        %v695 = vpop.f32.mrb[0].mxu0
        %v696 = vadd.f32 %v528, %v695
        %v697 = vpop.f32.mrb[0].mxu0
        %698 = vmatprep.mubr.bf16.mxu0 0
        %699 = vmatmul.mubr.bf16.gmra.mrb[0].mxu0 %v502
        %v700 = vpop.f32.mrb[0].mxu0
        %v701 = vadd.f32 %v528, %v700
        %v702 = vpop.f32.mrb[0].mxu0
        %v703 = vpop.f32.mrb[0].mxu0
        %v704 = vadd.f32 %v528, %v703
        %v705 = vpop.f32.mrb[0].mxu0
        %706 = vmatprep.mubr.bf16.mxu0 0
        %707 = vmatmul.mubr.bf16.gmra.mrb[0].mxu0 %v503
        %v708 = vpop.f32.mrb[0].mxu0
        %v709 = vadd.f32 %v528, %v708
        %v710 = vpop.f32.mrb[0].mxu0
        %v711 = vpop.f32.mrb[0].mxu0
        %v712 = vadd.f32 %v528, %v711
        %v713 = vpop.f32.mrb[0].mxu0
        %714 = vmatprep.mubr.bf16.mxu0 0
        %715 = vmatmul.mubr.bf16.gmra.mrb[0].mxu0 %v504
        %v716 = vpop.f32.mrb[0].mxu0
        %v717 = vadd.f32 %v528, %v716
        %v718 = vpop.f32.mrb[0].mxu0
        %v719 = vpop.f32.mrb[0].mxu0
        %v720 = vadd.f32 %v528, %v719
        %v721 = vpop.f32.mrb[0].mxu0
        %722 = vmatprep.mubr.bf16.mxu0 0
        %723 = vmatmul.mubr.bf16.gmra.mrb[0].mxu0 %v505
        %v724 = vpop.f32.mrb[0].mxu0
        %v725 = vadd.f32 %v528, %v724
        %v726 = vpop.f32.mrb[0].mxu0
        %v727 = vpop.f32.mrb[0].mxu0
        %v728 = vadd.f32 %v528, %v727
        %v729 = vpop.f32.mrb[0].mxu0
        %730 = vmatprep.mubr.bf16.mxu0 0
        %731 = vmatmul.mubr.bf16.gmra.mrb[0].mxu0 %v506
        %v732 = vpop.f32.mrb[0].mxu0
        %v733 = vadd.f32 %v528, %v732
        %v734 = vpop.f32.mrb[0].mxu0
        %v735 = vpop.f32.mrb[0].mxu0
        %v736 = vadd.f32 %v528, %v735
        %v737 = vpop.f32.mrb[0].mxu0
        %738 = vdwg.mxu0
        %v739 = vpack.c.bf16 %v616, %v613
        %v740 = vpack.c.bf16 %v624, %v621
        %v741 = vpack.c.bf16 %v632, %v629
        %v742 = vpack.c.bf16 %v640, %v637
        %v743 = vpack.c.bf16 %v648, %v645
        %v744 = vpack.c.bf16 %v656, %v653
        %v745 = vpack.c.bf16 %v664, %v661
        %v746 = vpack.c.bf16 %v672, %v669
        %v747 = vpack.c.bf16 %v680, %v677
        %v748 = vpack.c.bf16 %v688, %v685
        %v749 = vpack.c.bf16 %v696, %v693
        %v750 = vpack.c.bf16 %v704, %v701
        %v751 = vpack.c.bf16 %v712, %v709
        %v752 = vpack.c.bf16 %v720, %v717
        %v753 = vpack.c.bf16 %v728, %v725
        %v754 = vpack.c.bf16 %v736, %v733
        %v771 = vunpack.c.l.b16 %v739
        %v772 = vunpack.c.h.b16 %v739
        %v773 = vunpack.c.l.b16 %v740
        %v774 = vunpack.c.h.b16 %v740
        %v775 = vunpack.c.l.b16 %v741
        %v776 = vunpack.c.h.b16 %v741
        %v777 = vunpack.c.l.b16 %v742
        %v778 = vunpack.c.h.b16 %v742
        %v779 = vunpack.c.l.b16 %v743
        %v780 = vunpack.c.h.b16 %v743
        %v781 = vunpack.c.l.b16 %v744
        %v782 = vunpack.c.h.b16 %v744
        %v783 = vunpack.c.l.b16 %v745
        %v784 = vunpack.c.h.b16 %v745
        %v785 = vunpack.c.l.b16 %v746
        %v786 = vunpack.c.h.b16 %v746
        %v787 = vunpack.c.l.b16 %v747
        %v788 = vunpack.c.h.b16 %v747
        %v789 = vunpack.c.l.b16 %v748
        %v790 = vunpack.c.h.b16 %v748
        %v791 = vunpack.c.l.b16 %v749
        %v792 = vunpack.c.h.b16 %v749
        %v793 = vunpack.c.l.b16 %v750
        %v794 = vunpack.c.h.b16 %v750
        %v795 = vunpack.c.l.b16 %v751
        %v796 = vunpack.c.h.b16 %v751
        %v797 = vunpack.c.l.b16 %v752
        %v798 = vunpack.c.h.b16 %v752
        %v799 = vunpack.c.l.b16 %v753
        %v800 = vunpack.c.h.b16 %v753
        %v801 = vunpack.c.l.b16 %v754
        %v802 = vunpack.c.h.b16 %v754
        %v803 = vpack.c.b16 %v771, %v771
        %v804 = vpack.c.b16 %v772, %v772
        %v805 = vpack.c.b16 %v773, %v773
        %v806 = vpack.c.b16 %v774, %v774
        %v807 = vpack.c.b16 %v775, %v775
        %v808 = vpack.c.b16 %v776, %v776
        %v809 = vpack.c.b16 %v777, %v777
        %v810 = vpack.c.b16 %v778, %v778
        %v811 = vpack.c.b16 %v779, %v779
        %v812 = vpack.c.b16 %v780, %v780
        %v813 = vpack.c.b16 %v781, %v781
        %v814 = vpack.c.b16 %v782, %v782
        %v815 = vpack.c.b16 %v783, %v783
        %v816 = vpack.c.b16 %v784, %v784
        %v817 = vpack.c.b16 %v785, %v785
        %v818 = vpack.c.b16 %v786, %v786
        %v819 = vpack.c.b16 %v787, %v787
        %v820 = vpack.c.b16 %v788, %v788
        %v821 = vpack.c.b16 %v789, %v789
        %v822 = vpack.c.b16 %v790, %v790
        %v823 = vpack.c.b16 %v791, %v791
        %v824 = vpack.c.b16 %v792, %v792
        %v825 = vpack.c.b16 %v793, %v793
        %v826 = vpack.c.b16 %v794, %v794
        %v827 = vpack.c.b16 %v795, %v795
        %v828 = vpack.c.b16 %v796, %v796
        %v829 = vpack.c.b16 %v797, %v797
        %v830 = vpack.c.b16 %v798, %v798
        %v831 = vpack.c.b16 %v799, %v799
        %v832 = vpack.c.b16 %v800, %v800
        %v833 = vpack.c.b16 %v801, %v801
        %v834 = vpack.c.b16 %v802, %v802
        %867 = vst [vmem:[%s254] sm:$0xf] %v803
        %868 = vst [vmem:[%s254 + $0x4] sm:$0xf] %v804
        %869 = vst [vmem:[%s254 + $0x8] sm:$0xf] %v805
        %870 = vst [vmem:[%s254 + $0xc] sm:$0xf] %v806
        %871 = vst [vmem:[%s254 + $0x10] sm:$0xf] %v807
        %872 = vst [vmem:[%s254 + $0x14] sm:$0xf] %v808
        %873 = vst [vmem:[%s254 + $0x18] sm:$0xf] %v809
        %874 = vst [vmem:[%s254 + $0x1c] sm:$0xf] %v810
        %875 = vst [vmem:[%s254 + $0x20] sm:$0xf] %v811
        %876 = vst [vmem:[%s254 + $0x24] sm:$0xf] %v812
        %877 = vst [vmem:[%s254 + $0x28] sm:$0xf] %v813
        %878 = vst [vmem:[%s254 + $0x2c] sm:$0xf] %v814
        %879 = vst [vmem:[%s254 + $0x30] sm:$0xf] %v815
        %880 = vst [vmem:[%s254 + $0x34] sm:$0xf] %v816
        %881 = vst [vmem:[%s254 + $0x38] sm:$0xf] %v817
        %882 = vst [vmem:[%s254 + $0x3c] sm:$0xf] %v818
        %883 = vst [vmem:[%s254 + $0x40] sm:$0xf] %v819
        %884 = vst [vmem:[%s254 + $0x44] sm:$0xf] %v820
        %885 = vst [vmem:[%s254 + $0x48] sm:$0xf] %v821
        %886 = vst [vmem:[%s254 + $0x4c] sm:$0xf] %v822
        %887 = vst [vmem:[%s254 + $0x50] sm:$0xf] %v823
        %888 = vst [vmem:[%s254 + $0x54] sm:$0xf] %v824
        %889 = vst [vmem:[%s254 + $0x58] sm:$0xf] %v825
        %890 = vst [vmem:[%s254 + $0x5c] sm:$0xf] %v826
        %891 = vst [vmem:[%s254 + $0x60] sm:$0xf] %v827
        %892 = vst [vmem:[%s254 + $0x64] sm:$0xf] %v828
        %893 = vst [vmem:[%s254 + $0x68] sm:$0xf] %v829
        %894 = vst [vmem:[%s254 + $0x6c] sm:$0xf] %v830
        %895 = vst [vmem:[%s254 + $0x70] sm:$0xf] %v831
        %896 = vst [vmem:[%s254 + $0x74] sm:$0xf] %v832
        %897 = vst [vmem:[%s254 + $0x78] sm:$0xf] %v833
        %898 = vst [vmem:[%s254 + $0x7c] sm:$0xf] %v834
        %p899 = scmp.ne.s32.totalorder %s18, 1
        // Predicated region
        $region41: #{binary_head_forward.3} parent=39 // pred_check
          %p900 = pneg %p899
        $region42: #{binary_head_forward.3} parent=39 // pred_check_branch
          %902 = sbr.rel (%p900) target = $region44
        $region43: #{binary_head_forward.3} parent=39 // pred_region
          %v903 = vadd.f32 %v613, %v616
          %v904 = vadd.f32 %v903, %v621
          %v905 = vadd.f32 %v904, %v624
          %v906 = vadd.f32 %v905, %v629
          %v907 = vadd.f32 %v906, %v632
          %v908 = vadd.f32 %v907, %v637
          %v909 = vadd.f32 %v908, %v640
          %v910 = vadd.f32 %v909, %v645
          %v911 = vadd.f32 %v910, %v648
          %v912 = vadd.f32 %v911, %v653
          %v913 = vadd.f32 %v912, %v656
          %v914 = vadd.f32 %v913, %v661
          %v915 = vadd.f32 %v914, %v664
          %v916 = vadd.f32 %v915, %v669
          %v917 = vadd.f32 %v916, %v672
          %v918 = vadd.f32 %v917, %v677
          %v919 = vadd.f32 %v918, %v680
          %v920 = vadd.f32 %v919, %v685
          %v921 = vadd.f32 %v920, %v688
          %v922 = vadd.f32 %v921, %v693
          %v923 = vadd.f32 %v922, %v696
          %v924 = vadd.f32 %v923, %v701
          %v925 = vadd.f32 %v924, %v704
          %v926 = vadd.f32 %v925, %v709
          %v927 = vadd.f32 %v926, %v712
          %v928 = vadd.f32 %v927, %v717
          %v929 = vadd.f32 %v928, %v720
          %v930 = vadd.f32 %v929, %v725
          %v931 = vadd.f32 %v930, %v728
          %v932 = vadd.f32 %v931, %v733
          %v933 = vadd.f32 %v932, %v736
          %v934 = vrot.slane %v933, 4
          %v935 = vadd.f32 %v933, %v934
          %v936 = vrot.slane %v935, 2
          %v937 = vadd.f32 %v935, %v936
          %v938 = vrot.slane %v937, 1
          %v939 = vadd.f32 %v937, %v938
          %v940 = vmul.f32 %v939, 0.00390625
          %v941 = vsub.f32 %v613, %v940
          %v942 = vsub.f32 %v616, %v940
          %v943 = vsub.f32 %v621, %v940
          %v944 = vsub.f32 %v624, %v940
          %v945 = vsub.f32 %v629, %v940
          %v946 = vsub.f32 %v632, %v940
          %v947 = vsub.f32 %v637, %v940
          %v948 = vsub.f32 %v640, %v940
          %v949 = vsub.f32 %v645, %v940
          %v950 = vsub.f32 %v648, %v940
          %v951 = vsub.f32 %v653, %v940
          %v952 = vsub.f32 %v656, %v940
          %v953 = vsub.f32 %v661, %v940
          %v954 = vsub.f32 %v664, %v940
          %v955 = vsub.f32 %v669, %v940
          %v956 = vsub.f32 %v672, %v940
          %v957 = vsub.f32 %v677, %v940
          %v958 = vsub.f32 %v680, %v940
          %v959 = vsub.f32 %v685, %v940
          %v960 = vsub.f32 %v688, %v940
          %v961 = vsub.f32 %v693, %v940
          %v962 = vsub.f32 %v696, %v940
          %v963 = vsub.f32 %v701, %v940
          %v964 = vsub.f32 %v704, %v940
          %v965 = vsub.f32 %v709, %v940
          %v966 = vsub.f32 %v712, %v940
          %v967 = vsub.f32 %v717, %v940
          %v968 = vsub.f32 %v720, %v940
          %v969 = vsub.f32 %v725, %v940
          %v970 = vsub.f32 %v728, %v940
          %v971 = vsub.f32 %v733, %v940
          %v972 = vsub.f32 %v736, %v940
          %v973 = vmul.f32 %v941, %v941
          %v974 = vmul.f32 %v942, %v942
          %v975 = vmul.f32 %v943, %v943
          %v976 = vmul.f32 %v944, %v944
          %v977 = vmul.f32 %v945, %v945
          %v978 = vmul.f32 %v946, %v946
          %v979 = vmul.f32 %v947, %v947
          %v980 = vmul.f32 %v948, %v948
          %v981 = vmul.f32 %v949, %v949
          %v982 = vmul.f32 %v950, %v950
          %v983 = vmul.f32 %v951, %v951
          %v984 = vmul.f32 %v952, %v952
          %v985 = vmul.f32 %v953, %v953
          %v986 = vmul.f32 %v954, %v954
          %v987 = vmul.f32 %v955, %v955
          %v988 = vmul.f32 %v956, %v956
          %v989 = vmul.f32 %v957, %v957
          %v990 = vmul.f32 %v958, %v958
          %v991 = vmul.f32 %v959, %v959
          %v992 = vmul.f32 %v960, %v960
          %v993 = vmul.f32 %v961, %v961
          %v994 = vmul.f32 %v962, %v962
          %v995 = vmul.f32 %v963, %v963
          %v996 = vmul.f32 %v964, %v964
          %v997 = vmul.f32 %v965, %v965
          %v998 = vmul.f32 %v966, %v966
          %v999 = vmul.f32 %v967, %v967
          %v1000 = vmul.f32 %v968, %v968
          %v1001 = vmul.f32 %v969, %v969
          %v1002 = vmul.f32 %v970, %v970
          %v1003 = vmul.f32 %v971, %v971
          %v1004 = vmul.f32 %v972, %v972
          %v1005 = vadd.f32 %v973, %v974
          %v1006 = vadd.f32 %v1005, %v975
          %v1007 = vadd.f32 %v1006, %v976
          %v1008 = vadd.f32 %v1007, %v977
          %v1009 = vadd.f32 %v1008, %v978
          %v1010 = vadd.f32 %v1009, %v979
          %v1011 = vadd.f32 %v1010, %v980
          %v1012 = vadd.f32 %v1011, %v981
          %v1013 = vadd.f32 %v1012, %v982
          %v1014 = vadd.f32 %v1013, %v983
          %v1015 = vadd.f32 %v1014, %v984
          %v1016 = vadd.f32 %v1015, %v985
          %v1017 = vadd.f32 %v1016, %v986
          %v1018 = vadd.f32 %v1017, %v987
          %v1019 = vadd.f32 %v1018, %v988
          %v1020 = vadd.f32 %v1019, %v989
          %v1021 = vadd.f32 %v1020, %v990
          %v1022 = vadd.f32 %v1021, %v991
          %v1023 = vadd.f32 %v1022, %v992
          %v1024 = vadd.f32 %v1023, %v993
          %v1025 = vadd.f32 %v1024, %v994
          %v1026 = vadd.f32 %v1025, %v995
          %v1027 = vadd.f32 %v1026, %v996
          %v1028 = vadd.f32 %v1027, %v997
          %v1029 = vadd.f32 %v1028, %v998
          %v1030 = vadd.f32 %v1029, %v999
          %v1031 = vadd.f32 %v1030, %v1000
          %v1032 = vadd.f32 %v1031, %v1001
          %v1033 = vadd.f32 %v1032, %v1002
          %v1034 = vadd.f32 %v1033, %v1003
          %v1035 = vadd.f32 %v1034, %v1004
          %v1036 = vrot.slane %v1035, 4
          %v1037 = vadd.f32 %v1035, %v1036
          %v1038 = vrot.slane %v1037, 2
          %v1039 = vadd.f32 %v1037, %v1038
          %v1040 = vrot.slane %v1039, 1
          %v1041 = vadd.f32 %v1039, %v1040
          %vm1042 = vcmask 1040384
          %v1043 = vsel %vm1042, %v939, %v1041
          %vm1044 = vcmask 1041408
          %v1045 = vsel %vm1044, %v1043, 0.0
          %1046 = vst [vmem:[%s283] sm:$0xff] %v1045
        $region44: #{binary_head_forward.3} parent=39 // pred_fallthru
          _
        %p1047 = scmp.eq.s32.totalorder %s18, 1
        // Predicated region
        $region45: #{binary_head_forward.3} parent=39 // pred_check
          %p1048 = pneg %p1047
        $region46: #{binary_head_forward.3} parent=39 // pred_check_branch
          %1050 = sbr.rel (%p1048) target = $region48
        $region47: #{binary_head_forward.3} parent=39 // pred_region
          %v1051 = vlaneseq
          %v1052 = vshrl.u32 %v1051, 7
          %v1053 = vadd.s32 %v1052, 8
          %v1054 = vadd.s32 %v1052, 16
          %v1055 = vadd.s32 %v1052, 24
          %v1056 = vadd.s32 %v1052, 32
          %v1057 = vadd.s32 %v1052, 40
          %v1058 = vadd.s32 %v1052, 48
          %v1059 = vadd.s32 %v1052, 56
          %v1060 = vadd.s32 %v1052, 64
          %v1061 = vadd.s32 %v1052, 72
          %v1062 = vadd.s32 %v1052, 80
          %v1063 = vadd.s32 %v1052, 88
          %v1064 = vadd.s32 %v1052, 96
          %v1065 = vadd.s32 %v1052, 104
          %v1066 = vadd.s32 %v1052, 112
          %v1067 = vadd.s32 %v1052, 120
          %v1068 = vadd.s32 %v1052, 128
          %v1069 = vadd.s32 %v1052, 136
          %v1070 = vadd.s32 %v1052, 144
          %v1071 = vadd.s32 %v1052, 152
          %v1072 = vadd.s32 %v1052, 160
          %v1073 = vadd.s32 %v1052, 168
          %v1074 = vadd.s32 %v1052, 176
          %v1075 = vadd.s32 %v1052, 184
          %v1076 = vadd.s32 %v1052, 192
          %v1077 = vadd.s32 %v1052, 200
          %v1078 = vadd.s32 %v1052, 208
          %v1079 = vadd.s32 %v1052, 216
          %v1080 = vadd.s32 %v1052, 224
          %v1081 = vadd.s32 %v1052, 232
          %v1082 = vadd.s32 %v1052, 240
          %v1083 = vadd.s32 %v1052, 248
          %vm1084 = vcmp.lt.s32.totalorder %v1052, 244
          %vm1085 = vcmp.lt.s32.totalorder %v1053, 244
          %vm1086 = vcmp.lt.s32.totalorder %v1054, 244
          %vm1087 = vcmp.lt.s32.totalorder %v1055, 244
          %vm1088 = vcmp.lt.s32.totalorder %v1056, 244
          %vm1089 = vcmp.lt.s32.totalorder %v1057, 244
          %vm1090 = vcmp.lt.s32.totalorder %v1058, 244
          %vm1091 = vcmp.lt.s32.totalorder %v1059, 244
          %vm1092 = vcmp.lt.s32.totalorder %v1060, 244
          %vm1093 = vcmp.lt.s32.totalorder %v1061, 244
          %vm1094 = vcmp.lt.s32.totalorder %v1062, 244
          %vm1095 = vcmp.lt.s32.totalorder %v1063, 244
          %vm1096 = vcmp.lt.s32.totalorder %v1064, 244
          %vm1097 = vcmp.lt.s32.totalorder %v1065, 244
          %vm1098 = vcmp.lt.s32.totalorder %v1066, 244
          %vm1099 = vcmp.lt.s32.totalorder %v1067, 244
          %vm1100 = vcmp.lt.s32.totalorder %v1068, 244
          %vm1101 = vcmp.lt.s32.totalorder %v1069, 244
          %vm1102 = vcmp.lt.s32.totalorder %v1070, 244
          %vm1103 = vcmp.lt.s32.totalorder %v1071, 244
          %vm1104 = vcmp.lt.s32.totalorder %v1072, 244
          %vm1105 = vcmp.lt.s32.totalorder %v1073, 244
          %vm1106 = vcmp.lt.s32.totalorder %v1074, 244
          %vm1107 = vcmp.lt.s32.totalorder %v1075, 244
          %vm1108 = vcmp.lt.s32.totalorder %v1076, 244
          %vm1109 = vcmp.lt.s32.totalorder %v1077, 244
          %vm1110 = vcmp.lt.s32.totalorder %v1078, 244
          %vm1111 = vcmp.lt.s32.totalorder %v1079, 244
          %vm1112 = vcmp.lt.s32.totalorder %v1080, 244
          %vm1113 = vcmp.lt.s32.totalorder %v1081, 244
          %vm1114 = vcmp.lt.s32.totalorder %v1082, 244
          %vm1115 = vcmp.lt.s32.totalorder %v1083, 244
          %v1116 = vsel %vm1084, 1, 0
          %v1117 = vsel %vm1085, 1, 0
          %v1118 = vsel %vm1086, 1, 0
          %v1119 = vsel %vm1087, 1, 0
          %v1120 = vsel %vm1088, 1, 0
          %v1121 = vsel %vm1089, 1, 0
          %v1122 = vsel %vm1090, 1, 0
          %v1123 = vsel %vm1091, 1, 0
          %v1124 = vsel %vm1092, 1, 0
          %v1125 = vsel %vm1093, 1, 0
          %v1126 = vsel %vm1094, 1, 0
          %v1127 = vsel %vm1095, 1, 0
          %v1128 = vsel %vm1096, 1, 0
          %v1129 = vsel %vm1097, 1, 0
          %v1130 = vsel %vm1098, 1, 0
          %v1131 = vsel %vm1099, 1, 0
          %v1132 = vsel %vm1100, 1, 0
          %v1133 = vsel %vm1101, 1, 0
          %v1134 = vsel %vm1102, 1, 0
          %v1135 = vsel %vm1103, 1, 0
          %v1136 = vsel %vm1104, 1, 0
          %v1137 = vsel %vm1105, 1, 0
          %v1138 = vsel %vm1106, 1, 0
          %v1139 = vsel %vm1107, 1, 0
          %v1140 = vsel %vm1108, 1, 0
          %v1141 = vsel %vm1109, 1, 0
          %v1142 = vsel %vm1110, 1, 0
          %v1143 = vsel %vm1111, 1, 0
          %v1144 = vsel %vm1112, 1, 0
          %v1145 = vsel %vm1113, 1, 0
          %v1146 = vsel %vm1114, 1, 0
          %v1147 = vsel %vm1115, 1, 0
          %vm1148 = vcmp.eq.s32.totalorder %v1116, 1
          %vm1149 = vcmp.eq.s32.totalorder %v1117, 1
          %vm1150 = vcmp.eq.s32.totalorder %v1118, 1
          %vm1151 = vcmp.eq.s32.totalorder %v1119, 1
          %vm1152 = vcmp.eq.s32.totalorder %v1120, 1
          %vm1153 = vcmp.eq.s32.totalorder %v1121, 1
          %vm1154 = vcmp.eq.s32.totalorder %v1122, 1
          %vm1155 = vcmp.eq.s32.totalorder %v1123, 1
          %vm1156 = vcmp.eq.s32.totalorder %v1124, 1
          %vm1157 = vcmp.eq.s32.totalorder %v1125, 1
          %vm1158 = vcmp.eq.s32.totalorder %v1126, 1
          %vm1159 = vcmp.eq.s32.totalorder %v1127, 1
          %vm1160 = vcmp.eq.s32.totalorder %v1128, 1
          %vm1161 = vcmp.eq.s32.totalorder %v1129, 1
          %vm1162 = vcmp.eq.s32.totalorder %v1130, 1
          %vm1163 = vcmp.eq.s32.totalorder %v1131, 1
          %vm1164 = vcmp.eq.s32.totalorder %v1132, 1
          %vm1165 = vcmp.eq.s32.totalorder %v1133, 1
          %vm1166 = vcmp.eq.s32.totalorder %v1134, 1
          %vm1167 = vcmp.eq.s32.totalorder %v1135, 1
          %vm1168 = vcmp.eq.s32.totalorder %v1136, 1
          %vm1169 = vcmp.eq.s32.totalorder %v1137, 1
          %vm1170 = vcmp.eq.s32.totalorder %v1138, 1
          %vm1171 = vcmp.eq.s32.totalorder %v1139, 1
          %vm1172 = vcmp.eq.s32.totalorder %v1140, 1
          %vm1173 = vcmp.eq.s32.totalorder %v1141, 1
          %vm1174 = vcmp.eq.s32.totalorder %v1142, 1
          %vm1175 = vcmp.eq.s32.totalorder %v1143, 1
          %vm1176 = vcmp.eq.s32.totalorder %v1144, 1
          %vm1177 = vcmp.eq.s32.totalorder %v1145, 1
          %vm1178 = vcmp.eq.s32.totalorder %v1146, 1
          %vm1179 = vcmp.eq.s32.totalorder %v1147, 1
          %v1180 = vsel %vm1148, %v613, 0.0
          %v1181 = vsel %vm1149, %v616, 0.0
          %v1182 = vsel %vm1150, %v621, 0.0
          %v1183 = vsel %vm1151, %v624, 0.0
          %v1184 = vsel %vm1152, %v629, 0.0
          %v1185 = vsel %vm1153, %v632, 0.0
          %v1186 = vsel %vm1154, %v637, 0.0
          %v1187 = vsel %vm1155, %v640, 0.0
          %v1188 = vsel %vm1156, %v645, 0.0
          %v1189 = vsel %vm1157, %v648, 0.0
          %v1190 = vsel %vm1158, %v653, 0.0
          %v1191 = vsel %vm1159, %v656, 0.0
          %v1192 = vsel %vm1160, %v661, 0.0
          %v1193 = vsel %vm1161, %v664, 0.0
          %v1194 = vsel %vm1162, %v669, 0.0
          %v1195 = vsel %vm1163, %v672, 0.0
          %v1196 = vsel %vm1164, %v677, 0.0
          %v1197 = vsel %vm1165, %v680, 0.0
          %v1198 = vsel %vm1166, %v685, 0.0
          %v1199 = vsel %vm1167, %v688, 0.0
          %v1200 = vsel %vm1168, %v693, 0.0
          %v1201 = vsel %vm1169, %v696, 0.0
          %v1202 = vsel %vm1170, %v701, 0.0
          %v1203 = vsel %vm1171, %v704, 0.0
          %v1204 = vsel %vm1172, %v709, 0.0
          %v1205 = vsel %vm1173, %v712, 0.0
          %v1206 = vsel %vm1174, %v717, 0.0
          %v1207 = vsel %vm1175, %v720, 0.0
          %v1208 = vsel %vm1176, %v725, 0.0
          %v1209 = vsel %vm1177, %v728, 0.0
          %v1210 = vsel %vm1178, %v733, 0.0
          %v1211 = vsel %vm1179, %v736, 0.0
          %v1212 = vadd.f32 %v1180, %v1181
          %v1213 = vadd.f32 %v1212, %v1182
          %v1214 = vadd.f32 %v1213, %v1183
          %v1215 = vadd.f32 %v1214, %v1184
          %v1216 = vadd.f32 %v1215, %v1185
          %v1217 = vadd.f32 %v1216, %v1186
          %v1218 = vadd.f32 %v1217, %v1187
          %v1219 = vadd.f32 %v1218, %v1188
          %v1220 = vadd.f32 %v1219, %v1189
          %v1221 = vadd.f32 %v1220, %v1190
          %v1222 = vadd.f32 %v1221, %v1191
          %v1223 = vadd.f32 %v1222, %v1192
          %v1224 = vadd.f32 %v1223, %v1193
          %v1225 = vadd.f32 %v1224, %v1194
          %v1226 = vadd.f32 %v1225, %v1195
          %v1227 = vadd.f32 %v1226, %v1196
          %v1228 = vadd.f32 %v1227, %v1197
          %v1229 = vadd.f32 %v1228, %v1198
          %v1230 = vadd.f32 %v1229, %v1199
          %v1231 = vadd.f32 %v1230, %v1200
          %v1232 = vadd.f32 %v1231, %v1201
          %v1233 = vadd.f32 %v1232, %v1202
          %v1234 = vadd.f32 %v1233, %v1203
          %v1235 = vadd.f32 %v1234, %v1204
          %v1236 = vadd.f32 %v1235, %v1205
          %v1237 = vadd.f32 %v1236, %v1206
          %v1238 = vadd.f32 %v1237, %v1207
          %v1239 = vadd.f32 %v1238, %v1208
          %v1240 = vadd.f32 %v1239, %v1209
          %v1241 = vadd.f32 %v1240, %v1210
          %v1242 = vadd.f32 %v1241, %v1211
          %v1243 = vrot.slane %v1242, 4
          %v1244 = vadd.f32 %v1242, %v1243
          %v1245 = vrot.slane %v1244, 2
          %v1246 = vadd.f32 %v1244, %v1245
          %v1247 = vrot.slane %v1246, 1
          %v1248 = vadd.f32 %v1246, %v1247
          %v1249 = vmul.f32 %v1248, 0.0040983604
          %v1250 = vsub.f32 %v613, %v1249
          %v1251 = vsub.f32 %v616, %v1249
          %v1252 = vsub.f32 %v621, %v1249
          %v1253 = vsub.f32 %v624, %v1249
          %v1254 = vsub.f32 %v629, %v1249
          %v1255 = vsub.f32 %v632, %v1249
          %v1256 = vsub.f32 %v637, %v1249
          %v1257 = vsub.f32 %v640, %v1249
          %v1258 = vsub.f32 %v645, %v1249
          %v1259 = vsub.f32 %v648, %v1249
          %v1260 = vsub.f32 %v653, %v1249
          %v1261 = vsub.f32 %v656, %v1249
          %v1262 = vsub.f32 %v661, %v1249
          %v1263 = vsub.f32 %v664, %v1249
          %v1264 = vsub.f32 %v669, %v1249
          %v1265 = vsub.f32 %v672, %v1249
          %v1266 = vsub.f32 %v677, %v1249
          %v1267 = vsub.f32 %v680, %v1249
          %v1268 = vsub.f32 %v685, %v1249
          %v1269 = vsub.f32 %v688, %v1249
          %v1270 = vsub.f32 %v693, %v1249
          %v1271 = vsub.f32 %v696, %v1249
          %v1272 = vsub.f32 %v701, %v1249
          %v1273 = vsub.f32 %v704, %v1249
          %v1274 = vsub.f32 %v709, %v1249
          %v1275 = vsub.f32 %v712, %v1249
          %v1276 = vsub.f32 %v717, %v1249
          %v1277 = vsub.f32 %v720, %v1249
          %v1278 = vsub.f32 %v725, %v1249
          %v1279 = vsub.f32 %v728, %v1249
          %v1280 = vsub.f32 %v733, %v1249
          %v1281 = vsub.f32 %v736, %v1249
          %v1282 = vsel %vm1148, %v1250, 0.0
          %v1283 = vsel %vm1149, %v1251, 0.0
          %v1284 = vsel %vm1150, %v1252, 0.0
          %v1285 = vsel %vm1151, %v1253, 0.0
          %v1286 = vsel %vm1152, %v1254, 0.0
          %v1287 = vsel %vm1153, %v1255, 0.0
          %v1288 = vsel %vm1154, %v1256, 0.0
          %v1289 = vsel %vm1155, %v1257, 0.0
          %v1290 = vsel %vm1156, %v1258, 0.0
          %v1291 = vsel %vm1157, %v1259, 0.0
          %v1292 = vsel %vm1158, %v1260, 0.0
          %v1293 = vsel %vm1159, %v1261, 0.0
          %v1294 = vsel %vm1160, %v1262, 0.0
          %v1295 = vsel %vm1161, %v1263, 0.0
          %v1296 = vsel %vm1162, %v1264, 0.0
          %v1297 = vsel %vm1163, %v1265, 0.0
          %v1298 = vsel %vm1164, %v1266, 0.0
          %v1299 = vsel %vm1165, %v1267, 0.0
          %v1300 = vsel %vm1166, %v1268, 0.0
          %v1301 = vsel %vm1167, %v1269, 0.0
          %v1302 = vsel %vm1168, %v1270, 0.0
          %v1303 = vsel %vm1169, %v1271, 0.0
          %v1304 = vsel %vm1170, %v1272, 0.0
          %v1305 = vsel %vm1171, %v1273, 0.0
          %v1306 = vsel %vm1172, %v1274, 0.0
          %v1307 = vsel %vm1173, %v1275, 0.0
          %v1308 = vsel %vm1174, %v1276, 0.0
          %v1309 = vsel %vm1175, %v1277, 0.0
          %v1310 = vsel %vm1176, %v1278, 0.0
          %v1311 = vsel %vm1177, %v1279, 0.0
          %v1312 = vsel %vm1178, %v1280, 0.0
          %v1313 = vsel %vm1179, %v1281, 0.0
          %v1314 = vmul.f32 %v1282, %v1282
          %v1315 = vmul.f32 %v1283, %v1283
          %v1316 = vmul.f32 %v1284, %v1284
          %v1317 = vmul.f32 %v1285, %v1285
          %v1318 = vmul.f32 %v1286, %v1286
          %v1319 = vmul.f32 %v1287, %v1287
          %v1320 = vmul.f32 %v1288, %v1288
          %v1321 = vmul.f32 %v1289, %v1289
          %v1322 = vmul.f32 %v1290, %v1290
          %v1323 = vmul.f32 %v1291, %v1291
          %v1324 = vmul.f32 %v1292, %v1292
          %v1325 = vmul.f32 %v1293, %v1293
          %v1326 = vmul.f32 %v1294, %v1294
          %v1327 = vmul.f32 %v1295, %v1295
          %v1328 = vmul.f32 %v1296, %v1296
          %v1329 = vmul.f32 %v1297, %v1297
          %v1330 = vmul.f32 %v1298, %v1298
          %v1331 = vmul.f32 %v1299, %v1299
          %v1332 = vmul.f32 %v1300, %v1300
          %v1333 = vmul.f32 %v1301, %v1301
          %v1334 = vmul.f32 %v1302, %v1302
          %v1335 = vmul.f32 %v1303, %v1303
          %v1336 = vmul.f32 %v1304, %v1304
          %v1337 = vmul.f32 %v1305, %v1305
          %v1338 = vmul.f32 %v1306, %v1306
          %v1339 = vmul.f32 %v1307, %v1307
          %v1340 = vmul.f32 %v1308, %v1308
          %v1341 = vmul.f32 %v1309, %v1309
          %v1342 = vmul.f32 %v1310, %v1310
          %v1343 = vmul.f32 %v1311, %v1311
          %v1344 = vmul.f32 %v1312, %v1312
          %v1345 = vmul.f32 %v1313, %v1313
          %v1346 = vadd.f32 %v1314, %v1315
          %v1347 = vadd.f32 %v1346, %v1316
          %v1348 = vadd.f32 %v1347, %v1317
          %v1349 = vadd.f32 %v1348, %v1318
          %v1350 = vadd.f32 %v1349, %v1319
          %v1351 = vadd.f32 %v1350, %v1320
          %v1352 = vadd.f32 %v1351, %v1321
          %v1353 = vadd.f32 %v1352, %v1322
          %v1354 = vadd.f32 %v1353, %v1323
          %v1355 = vadd.f32 %v1354, %v1324
          %v1356 = vadd.f32 %v1355, %v1325
          %v1357 = vadd.f32 %v1356, %v1326
          %v1358 = vadd.f32 %v1357, %v1327
          %v1359 = vadd.f32 %v1358, %v1328
          %v1360 = vadd.f32 %v1359, %v1329
          %v1361 = vadd.f32 %v1360, %v1330
          %v1362 = vadd.f32 %v1361, %v1331
          %v1363 = vadd.f32 %v1362, %v1332
          %v1364 = vadd.f32 %v1363, %v1333
          %v1365 = vadd.f32 %v1364, %v1334
          %v1366 = vadd.f32 %v1365, %v1335
          %v1367 = vadd.f32 %v1366, %v1336
          %v1368 = vadd.f32 %v1367, %v1337
          %v1369 = vadd.f32 %v1368, %v1338
          %v1370 = vadd.f32 %v1369, %v1339
          %v1371 = vadd.f32 %v1370, %v1340
          %v1372 = vadd.f32 %v1371, %v1341
          %v1373 = vadd.f32 %v1372, %v1342
          %v1374 = vadd.f32 %v1373, %v1343
          %v1375 = vadd.f32 %v1374, %v1344
          %v1376 = vadd.f32 %v1375, %v1345
          %v1377 = vrot.slane %v1376, 4
          %v1378 = vadd.f32 %v1376, %v1377
          %v1379 = vrot.slane %v1378, 2
          %v1380 = vadd.f32 %v1378, %v1379
          %v1381 = vrot.slane %v1380, 1
          %v1382 = vadd.f32 %v1380, %v1381
          %vm1383 = vcmask 1040384
          %v1384 = vsel %vm1383, %v1248, %v1382
          %vm1385 = vcmask 1041408
          %v1386 = vsel %vm1385, %v1384, 0.0
          %1387 = vst [vmem:[%s283] sm:$0xff] %v1386
        $region48: #{binary_head_forward.3} parent=39 // pred_fallthru
          _
        %s1388 = sand.u32 %s136, 1
        %s1389 = sand.u32 %s136, 1
        %s1390 = smul.addr %s1389, 128
        %s1391 = scalar_lea.vmem [#allocation2], %s1390
        %p1392 = scmp.lt.s32.totalorder %s18, 1
        %s1393 = scalar_select %p1392, %s18, 1
        %s1394 = smul.addr %s1393, 8
        %s1395 = scalar_lea.vmem %s6, %s1394
        // Predicated region
        $region49: #{binary_head_forward.3} parent=39 // pred_check
          %p1396 = pneg %p146
        $region50: #{binary_head_forward.3} parent=39 // pred_check_branch
          %1398 = sbr.rel (%p1396) target = $region52
        $region51: #{binary_head_forward.3} parent=39 // pred_region
          %s1399 = smul.u32 32, %s18
          %s1400 = ssub.s32 63, %s1399
          %p1401 = scmp.lt.s32.totalorder %s1400, 32
          %s1402 = scalar_select %p1401, %s1400, 32
          %s1403 = smul.u32 64, %s1402
          %p1404 = scmp.ne.s32.totalorder 0, %s1403
          %s1405 = smul.addr %s1399, 4
          %s1406 = scalar_lea.vmem %s5, %s1405
          // Predicated region
          $region53: #{binary_head_forward.3} parent=51 // pred_check
            %p1407 = pneg %p1404
          $region54: #{binary_head_forward.3} parent=51 // pred_check_branch
            %1409 = sbr.rel (%p1407) target = $region56
          $region55: #{binary_head_forward.3} parent=51 // pred_region
            // Predicated region
            $region57: #{binary_head_forward.3} parent=55 // pred_check
              _
            $region58: #{binary_head_forward.3} parent=55 // pred_check_branch
              %1411 = sbr.rel target = $region60
            $region59: #{binary_head_forward.3} parent=55 // pred_region
              // Predicated region
              $region79: #{binary_head_forward.3} parent=59 // pred_check
                _
              $region80: #{binary_head_forward.3} parent=59 // pred_check_branch
                %1522 = sbr.rel (0) target = $region82
              $region81: #{binary_head_forward.3} parent=59 // pred_region
                %s1524 = sshrl.u32 %s1402, 5
                // While loop
                $region83: #{binary_head_forward.3} parent=81 // loop_pre_header
                  _
                $region84: #{binary_head_forward.3} parent=81 // loop_header
                  %s1526 = sphi 0, %s1528
                  %p1527 = scmp.ge.s32.totalorder %s1526, %s1524
                  %s1531 = sphi 0, %s1600
                  %s1532 = sphi %s1391, %s1603
                  %s1533 = sphi %s1406, %s1604
                $region85: #{binary_head_forward.3} parent=81 // loop_header_branch
                  %1530 = sbr.rel (%p1527) target = $region89
                $region86: #{binary_head_forward.3} parent=81 // loop_body
                  %v1534 = vld [vmem:[%s1532] sm:$0xf]
                  %1535 = vst [vmem:[%s1533] sm:$0xf] %v1534
                  %v1536 = vld [vmem:[%s1532 + $0x4] sm:$0xf]
                  %1537 = vst [vmem:[%s1533 + $0x4] sm:$0xf] %v1536
                  %v1538 = vld [vmem:[%s1532 + $0x8] sm:$0xf]
                  %1539 = vst [vmem:[%s1533 + $0x8] sm:$0xf] %v1538
                  %v1540 = vld [vmem:[%s1532 + $0xc] sm:$0xf]
                  %1541 = vst [vmem:[%s1533 + $0xc] sm:$0xf] %v1540
                  %v1542 = vld [vmem:[%s1532 + $0x10] sm:$0xf]
                  %1543 = vst [vmem:[%s1533 + $0x10] sm:$0xf] %v1542
                  %v1544 = vld [vmem:[%s1532 + $0x14] sm:$0xf]
                  %1545 = vst [vmem:[%s1533 + $0x14] sm:$0xf] %v1544
                  %v1546 = vld [vmem:[%s1532 + $0x18] sm:$0xf]
                  %1547 = vst [vmem:[%s1533 + $0x18] sm:$0xf] %v1546
                  %v1548 = vld [vmem:[%s1532 + $0x1c] sm:$0xf]
                  %1549 = vst [vmem:[%s1533 + $0x1c] sm:$0xf] %v1548
                  %v1550 = vld [vmem:[%s1532 + $0x20] sm:$0xf]
                  %1551 = vst [vmem:[%s1533 + $0x20] sm:$0xf] %v1550
                  %v1552 = vld [vmem:[%s1532 + $0x24] sm:$0xf]
                  %1553 = vst [vmem:[%s1533 + $0x24] sm:$0xf] %v1552
                  %v1554 = vld [vmem:[%s1532 + $0x28] sm:$0xf]
                  %1555 = vst [vmem:[%s1533 + $0x28] sm:$0xf] %v1554
                  %v1556 = vld [vmem:[%s1532 + $0x2c] sm:$0xf]
                  %1557 = vst [vmem:[%s1533 + $0x2c] sm:$0xf] %v1556
                  %v1558 = vld [vmem:[%s1532 + $0x30] sm:$0xf]
                  %1559 = vst [vmem:[%s1533 + $0x30] sm:$0xf] %v1558
                  %v1560 = vld [vmem:[%s1532 + $0x34] sm:$0xf]
                  %1561 = vst [vmem:[%s1533 + $0x34] sm:$0xf] %v1560
                  %v1562 = vld [vmem:[%s1532 + $0x38] sm:$0xf]
                  %1563 = vst [vmem:[%s1533 + $0x38] sm:$0xf] %v1562
                  %v1564 = vld [vmem:[%s1532 + $0x3c] sm:$0xf]
                  %1565 = vst [vmem:[%s1533 + $0x3c] sm:$0xf] %v1564
                  %v1566 = vld [vmem:[%s1532 + $0x40] sm:$0xf]
                  %1567 = vst [vmem:[%s1533 + $0x40] sm:$0xf] %v1566
                  %v1568 = vld [vmem:[%s1532 + $0x44] sm:$0xf]
                  %1569 = vst [vmem:[%s1533 + $0x44] sm:$0xf] %v1568
                  %v1570 = vld [vmem:[%s1532 + $0x48] sm:$0xf]
                  %1571 = vst [vmem:[%s1533 + $0x48] sm:$0xf] %v1570
                  %v1572 = vld [vmem:[%s1532 + $0x4c] sm:$0xf]
                  %1573 = vst [vmem:[%s1533 + $0x4c] sm:$0xf] %v1572
                  %v1574 = vld [vmem:[%s1532 + $0x50] sm:$0xf]
                  %1575 = vst [vmem:[%s1533 + $0x50] sm:$0xf] %v1574
                  %v1576 = vld [vmem:[%s1532 + $0x54] sm:$0xf]
                  %1577 = vst [vmem:[%s1533 + $0x54] sm:$0xf] %v1576
                  %v1578 = vld [vmem:[%s1532 + $0x58] sm:$0xf]
                  %1579 = vst [vmem:[%s1533 + $0x58] sm:$0xf] %v1578
                  %v1580 = vld [vmem:[%s1532 + $0x5c] sm:$0xf]
                  %1581 = vst [vmem:[%s1533 + $0x5c] sm:$0xf] %v1580
                  %v1582 = vld [vmem:[%s1532 + $0x60] sm:$0xf]
                  %1583 = vst [vmem:[%s1533 + $0x60] sm:$0xf] %v1582
                  %v1584 = vld [vmem:[%s1532 + $0x64] sm:$0xf]
                  %1585 = vst [vmem:[%s1533 + $0x64] sm:$0xf] %v1584
                  %v1586 = vld [vmem:[%s1532 + $0x68] sm:$0xf]
                  %1587 = vst [vmem:[%s1533 + $0x68] sm:$0xf] %v1586
                  %v1588 = vld [vmem:[%s1532 + $0x6c] sm:$0xf]
                  %1589 = vst [vmem:[%s1533 + $0x6c] sm:$0xf] %v1588
                  %v1590 = vld [vmem:[%s1532 + $0x70] sm:$0xf]
                  %1591 = vst [vmem:[%s1533 + $0x70] sm:$0xf] %v1590
                  %v1592 = vld [vmem:[%s1532 + $0x74] sm:$0xf]
                  %1593 = vst [vmem:[%s1533 + $0x74] sm:$0xf] %v1592
                  %v1594 = vld [vmem:[%s1532 + $0x78] sm:$0xf]
                  %1595 = vst [vmem:[%s1533 + $0x78] sm:$0xf] %v1594
                  %v1596 = vld [vmem:[%s1532 + $0x7c] sm:$0xf]
                  %1597 = vst [vmem:[%s1533 + $0x7c] sm:$0xf] %v1596
                  %s1598 = sadd.s32 1, %s1531
                  %p1599 = scmp.ge.s32.totalorder %s1598, %s1524
                  %s1600 = scalar_select %p1599, 0, %s1598
                  %s1601 = smul.u32 %s1600, 128
                  %s1602 = smul.u32 %s1600, 128
                  %s1603 = scalar_lea.vmem %s1391, %s1601 [#allocation2]
                  %s1604 = scalar_lea.vmem %s1406, %s1602
                $region87: #{binary_head_forward.3} parent=81 // loop_footer
                  %s1528 = sadd.s32 %s1526, 1
                $region88: #{binary_head_forward.3} parent=81 // loop_footer_branch
                  %1525 = sbr.rel target = $region84
                $region89: #{binary_head_forward.3} parent=81 // loop_exit
                  _
                %s1605 = sshrl.u32 %s1402, 5
                %s1606 = sand.u32 %s1402, 31
                %s1607 = smul.u32 %s1605, 32
                %s1608 = smul.u32 4, %s1607
                %s1609 = scalar_lea.vmem %s1391, %s1608 [#allocation2]
                %s1610 = smul.u32 4, %s1607
                %s1611 = scalar_lea.vmem %s1406, %s1610
                // While loop
                $region90: #{binary_head_forward.3} parent=81 // loop_pre_header
                  _
                $region91: #{binary_head_forward.3} parent=81 // loop_header
                  %s1613 = sphi 0, %s1615
                  %p1614 = scmp.ge.s32.totalorder %s1613, %s1606
                  %s1618 = sphi 0, %s1625
                  %s1619 = sphi %s1609, %s1628
                  %s1620 = sphi %s1611, %s1629
                $region92: #{binary_head_forward.3} parent=81 // loop_header_branch
                  %1617 = sbr.rel (%p1614) target = $region96
                $region93: #{binary_head_forward.3} parent=81 // loop_body
                  %v1621 = vld [vmem:[%s1619] sm:$0xf]
                  %1622 = vst [vmem:[%s1620] sm:$0xf] %v1621
                  %s1623 = sadd.s32 1, %s1618
                  %p1624 = scmp.ge.s32.totalorder %s1623, %s1606
                  %s1625 = scalar_select %p1624, 0, %s1623
                  %s1626 = smul.u32 %s1625, 4
                  %s1627 = smul.u32 %s1625, 4
                  %s1628 = scalar_lea.vmem %s1609, %s1626 [#allocation2]
                  %s1629 = scalar_lea.vmem %s1611, %s1627
                $region94: #{binary_head_forward.3} parent=81 // loop_footer
                  %s1615 = sadd.s32 %s1613, 1
                $region95: #{binary_head_forward.3} parent=81 // loop_footer_branch
                  %1612 = sbr.rel target = $region91
                $region96: #{binary_head_forward.3} parent=81 // loop_exit
                  _
              $region82: #{binary_head_forward.3} parent=59 // pred_fallthru
                _
            $region60: #{binary_head_forward.3} parent=55 // pred_fallthru
              _
            // Predicated region
            $region61: #{binary_head_forward.3} parent=55 // pred_check
              _
            $region62: #{binary_head_forward.3} parent=55 // pred_check_branch
              %1413 = sbr.rel (0) target = $region64
            $region63: #{binary_head_forward.3} parent=55 // pred_region
              %s1415 = sshrl.u32 %s1402, 5
              // While loop
              $region65: #{binary_head_forward.3} parent=63 // loop_pre_header
                _
              $region66: #{binary_head_forward.3} parent=63 // loop_header
                %s1417 = sphi 0, %s1419
                %p1418 = scmp.ge.s32.totalorder %s1417, %s1415
                %s1422 = sphi 0, %s1491
                %s1423 = sphi %s1391, %s1494
                %s1424 = sphi %s1406, %s1495
              $region67: #{binary_head_forward.3} parent=63 // loop_header_branch
                %1421 = sbr.rel (%p1418) target = $region71
              $region68: #{binary_head_forward.3} parent=63 // loop_body
                %v1425 = vld [vmem:[%s1423] sm:$0xf]
                %1426 = vst [vmem:[%s1424] sm:$0xf] %v1425
                %v1427 = vld [vmem:[%s1423 + $0x4] sm:$0xf]
                %1428 = vst [vmem:[%s1424 + $0x4] sm:$0xf] %v1427
                %v1429 = vld [vmem:[%s1423 + $0x8] sm:$0xf]
                %1430 = vst [vmem:[%s1424 + $0x8] sm:$0xf] %v1429
                %v1431 = vld [vmem:[%s1423 + $0xc] sm:$0xf]
                %1432 = vst [vmem:[%s1424 + $0xc] sm:$0xf] %v1431
                %v1433 = vld [vmem:[%s1423 + $0x10] sm:$0xf]
                %1434 = vst [vmem:[%s1424 + $0x10] sm:$0xf] %v1433
                %v1435 = vld [vmem:[%s1423 + $0x14] sm:$0xf]
                %1436 = vst [vmem:[%s1424 + $0x14] sm:$0xf] %v1435
                %v1437 = vld [vmem:[%s1423 + $0x18] sm:$0xf]
                %1438 = vst [vmem:[%s1424 + $0x18] sm:$0xf] %v1437
                %v1439 = vld [vmem:[%s1423 + $0x1c] sm:$0xf]
                %1440 = vst [vmem:[%s1424 + $0x1c] sm:$0xf] %v1439
                %v1441 = vld [vmem:[%s1423 + $0x20] sm:$0xf]
                %1442 = vst [vmem:[%s1424 + $0x20] sm:$0xf] %v1441
                %v1443 = vld [vmem:[%s1423 + $0x24] sm:$0xf]
                %1444 = vst [vmem:[%s1424 + $0x24] sm:$0xf] %v1443
                %v1445 = vld [vmem:[%s1423 + $0x28] sm:$0xf]
                %1446 = vst [vmem:[%s1424 + $0x28] sm:$0xf] %v1445
                %v1447 = vld [vmem:[%s1423 + $0x2c] sm:$0xf]
                %1448 = vst [vmem:[%s1424 + $0x2c] sm:$0xf] %v1447
                %v1449 = vld [vmem:[%s1423 + $0x30] sm:$0xf]
                %1450 = vst [vmem:[%s1424 + $0x30] sm:$0xf] %v1449
                %v1451 = vld [vmem:[%s1423 + $0x34] sm:$0xf]
                %1452 = vst [vmem:[%s1424 + $0x34] sm:$0xf] %v1451
                %v1453 = vld [vmem:[%s1423 + $0x38] sm:$0xf]
                %1454 = vst [vmem:[%s1424 + $0x38] sm:$0xf] %v1453
                %v1455 = vld [vmem:[%s1423 + $0x3c] sm:$0xf]
                %1456 = vst [vmem:[%s1424 + $0x3c] sm:$0xf] %v1455
                %v1457 = vld [vmem:[%s1423 + $0x40] sm:$0xf]
                %1458 = vst [vmem:[%s1424 + $0x40] sm:$0xf] %v1457
                %v1459 = vld [vmem:[%s1423 + $0x44] sm:$0xf]
                %1460 = vst [vmem:[%s1424 + $0x44] sm:$0xf] %v1459
                %v1461 = vld [vmem:[%s1423 + $0x48] sm:$0xf]
                %1462 = vst [vmem:[%s1424 + $0x48] sm:$0xf] %v1461
                %v1463 = vld [vmem:[%s1423 + $0x4c] sm:$0xf]
                %1464 = vst [vmem:[%s1424 + $0x4c] sm:$0xf] %v1463
                %v1465 = vld [vmem:[%s1423 + $0x50] sm:$0xf]
                %1466 = vst [vmem:[%s1424 + $0x50] sm:$0xf] %v1465
                %v1467 = vld [vmem:[%s1423 + $0x54] sm:$0xf]
                %1468 = vst [vmem:[%s1424 + $0x54] sm:$0xf] %v1467
                %v1469 = vld [vmem:[%s1423 + $0x58] sm:$0xf]
                %1470 = vst [vmem:[%s1424 + $0x58] sm:$0xf] %v1469
                %v1471 = vld [vmem:[%s1423 + $0x5c] sm:$0xf]
                %1472 = vst [vmem:[%s1424 + $0x5c] sm:$0xf] %v1471
                %v1473 = vld [vmem:[%s1423 + $0x60] sm:$0xf]
                %1474 = vst [vmem:[%s1424 + $0x60] sm:$0xf] %v1473
                %v1475 = vld [vmem:[%s1423 + $0x64] sm:$0xf]
                %1476 = vst [vmem:[%s1424 + $0x64] sm:$0xf] %v1475
                %v1477 = vld [vmem:[%s1423 + $0x68] sm:$0xf]
                %1478 = vst [vmem:[%s1424 + $0x68] sm:$0xf] %v1477
                %v1479 = vld [vmem:[%s1423 + $0x6c] sm:$0xf]
                %1480 = vst [vmem:[%s1424 + $0x6c] sm:$0xf] %v1479
                %v1481 = vld [vmem:[%s1423 + $0x70] sm:$0xf]
                %1482 = vst [vmem:[%s1424 + $0x70] sm:$0xf] %v1481
                %v1483 = vld [vmem:[%s1423 + $0x74] sm:$0xf]
                %1484 = vst [vmem:[%s1424 + $0x74] sm:$0xf] %v1483
                %v1485 = vld [vmem:[%s1423 + $0x78] sm:$0xf]
                %1486 = vst [vmem:[%s1424 + $0x78] sm:$0xf] %v1485
                %v1487 = vld [vmem:[%s1423 + $0x7c] sm:$0xf]
                %1488 = vst [vmem:[%s1424 + $0x7c] sm:$0xf] %v1487
                %s1489 = sadd.s32 1, %s1422
                %p1490 = scmp.ge.s32.totalorder %s1489, %s1415
                %s1491 = scalar_select %p1490, 0, %s1489
                %s1492 = smul.u32 %s1491, 128
                %s1493 = smul.u32 %s1491, 128
                %s1494 = scalar_lea.vmem %s1391, %s1492 [#allocation2]
                %s1495 = scalar_lea.vmem %s1406, %s1493
              $region69: #{binary_head_forward.3} parent=63 // loop_footer
                %s1419 = sadd.s32 %s1417, 1
              $region70: #{binary_head_forward.3} parent=63 // loop_footer_branch
                %1416 = sbr.rel target = $region66
              $region71: #{binary_head_forward.3} parent=63 // loop_exit
                _
              %s1496 = sshrl.u32 %s1402, 5
              %s1497 = sand.u32 %s1402, 31
              %s1498 = smul.u32 %s1496, 32
              %s1499 = smul.u32 4, %s1498
              %s1500 = scalar_lea.vmem %s1391, %s1499 [#allocation2]
              %s1501 = smul.u32 4, %s1498
              %s1502 = scalar_lea.vmem %s1406, %s1501
              // While loop
              $region72: #{binary_head_forward.3} parent=63 // loop_pre_header
                _
              $region73: #{binary_head_forward.3} parent=63 // loop_header
                %s1504 = sphi 0, %s1506
                %p1505 = scmp.ge.s32.totalorder %s1504, %s1497
                %s1509 = sphi 0, %s1516
                %s1510 = sphi %s1500, %s1519
                %s1511 = sphi %s1502, %s1520
              $region74: #{binary_head_forward.3} parent=63 // loop_header_branch
                %1508 = sbr.rel (%p1505) target = $region78
              $region75: #{binary_head_forward.3} parent=63 // loop_body
                %v1512 = vld [vmem:[%s1510] sm:$0xf]
                %1513 = vst [vmem:[%s1511] sm:$0xf] %v1512
                %s1514 = sadd.s32 1, %s1509
                %p1515 = scmp.ge.s32.totalorder %s1514, %s1497
                %s1516 = scalar_select %p1515, 0, %s1514
                %s1517 = smul.u32 %s1516, 4
                %s1518 = smul.u32 %s1516, 4
                %s1519 = scalar_lea.vmem %s1500, %s1517 [#allocation2]
                %s1520 = scalar_lea.vmem %s1502, %s1518
              $region76: #{binary_head_forward.3} parent=63 // loop_footer
                %s1506 = sadd.s32 %s1504, 1
              $region77: #{binary_head_forward.3} parent=63 // loop_footer_branch
                %1503 = sbr.rel target = $region73
              $region78: #{binary_head_forward.3} parent=63 // loop_exit
                _
            $region64: #{binary_head_forward.3} parent=55 // pred_fallthru
              _
          $region56: #{binary_head_forward.3} parent=51 // pred_fallthru
            _
          %1630 = vnop
        $region52: #{binary_head_forward.3} parent=39 // pred_fallthru
          _
        // Predicated region
        $region97: #{binary_head_forward.3} parent=39 // pred_check
          %p1631 = pneg %p172
        $region98: #{binary_head_forward.3} parent=39 // pred_check_branch
          %1633 = sbr.rel (%p1631) target = $region100
        $region99: #{binary_head_forward.3} parent=39 // pred_region
          _
        $region100: #{binary_head_forward.3} parent=39 // pred_fallthru
          _
      $region40: #{binary_head_forward.3} parent=5 // pred_fallthru
        _
      %p1634 = scmp.le.s32.totalorder 2, %s13
      // Predicated region
      $region101: #{binary_head_forward.3} parent=5 // pred_check
        %p1635 = pneg %p1634
      $region102: #{binary_head_forward.3} parent=5 // pred_check_branch
        %1637 = sbr.rel (%p1635) target = $region104
      $region103: #{binary_head_forward.3} parent=5 // pred_region
        %s1638 = ssub.s32 %s13, 2
        // Predicated region
        $region105: #{binary_head_forward.3} parent=103 // pred_check
          %p1639 = pneg %p152
        $region106: #{binary_head_forward.3} parent=103 // pred_check_branch
          %1641 = sbr.rel (%p1639) target = $region108
        $region107: #{binary_head_forward.3} parent=103 // pred_region
          %s1642 = sand.u32 %s137, 1
          %s1643 = sand.u32 %s137, 1
          %s1644 = smul.addr %s1643, 128
          %s1645 = scalar_lea.vmem [#allocation2], %s1644
        $region108: #{binary_head_forward.3} parent=103 // pred_fallthru
          _
        // Predicated region
        $region109: #{binary_head_forward.3} parent=103 // pred_check
          %p1646 = pneg %p178
        $region110: #{binary_head_forward.3} parent=103 // pred_check_branch
          %1648 = sbr.rel (%p1646) target = $region112
        $region111: #{binary_head_forward.3} parent=103 // pred_region
          %p1649 = scmp.lt.s32.totalorder %s19, 1
          %s1650 = scalar_select %p1649, %s19, 1
          %s1651 = smul.addr %s1650, 8
          %s1652 = scalar_lea.vmem %s6, %s1651
        $region112: #{binary_head_forward.3} parent=103 // pred_fallthru
          _
      $region104: #{binary_head_forward.3} parent=5 // pred_fallthru
        _
    $region6: #{binary_head_forward.3} parent=1 // loop_footer
      %s17 = sadd.s32 1, %s13
    $region7: #{binary_head_forward.3} parent=1 // loop_footer_branch
      %12 = sbr.rel target = $region3
    $region8: #{binary_head_forward.3} parent=1 // loop_exit
      _

// kernel: binary_head_forward.2
$region0: #{binary_head_forward.2}
  #allocation0 [shape = 'u32[]', space=smem, size = 0x4, offset = 0x4, fixed_abs, tag = 'smem constant byte address 0x4 - core index']
  #allocation1 [shape = 'u32[144,128]{1,0:T(1,128)}', space=vmem, size = 0x12000, scoped, tag = 'internal scratch']
  %s0 = inlined_call_operand.vmem [shape: f32[500,96], index: 0, kind: input, shape index: {}]
  %s1 = inlined_call_operand.vmem [shape: bf16[96,128], index: 1, kind: input, shape index: {}]
  %s2 = inlined_call_operand.vmem [shape: f32[1,128], index: 2, kind: input, shape index: {}]
  %s3 = inlined_call_operand.vmem [shape: f32[1,128], index: 3, kind: input, shape index: {}]
  %s4 = inlined_call_operand.vmem [shape: f32[1,128], index: 4, kind: input, shape index: {}]
  %s5 = inlined_call_operand.vmem [shape: bf16[128,128], index: 5, kind: input, shape index: {}]
  %s6 = inlined_call_operand.vmem [shape: f32[1,128], index: 6, kind: input, shape index: {}]
  %s7 = inlined_call_operand.vmem [shape: bf16[500,128], index: 7, kind: output, shape index: {0}]
  %s8 = inlined_call_operand.vmem [shape: f32[2,8,128], index: 8, kind: output, shape index: {1}]
  %9 = xla_tuple %s7, %s8
  %s10 = sld [smem:[#allocation0]]
  $region121: #{binary_head_forward.2} parent=0
    _
  %s12 = ssub.s32 1, %s10
  %s13 = scalar_select 0, %s12, %s10
  $region1: #{binary_head_forward.2} parent=0
    #allocation2 [shape = 'u8[131072]{0}', space=vmem, size = 0x20000, scoped, tag = 'output window, operand 0']
    loop: start=0, step=1, limit=4
    $region2: #{binary_head_forward.2} parent=1 // loop_pre_header
      _
    $region3: #{binary_head_forward.2} parent=1 // loop_header
      %s15 = sphi 0, %s19
      %p16 = scmp.ge.s32.totalorder %s15, 4
      %s25 = sphi 0, %s27
      %s28 = sphi 0, %s25
      %s29 = sphi 0, %s28
      %s45 = sphi 0, %s29
      %s49 = sphi 0, %s49
      %s51 = sphi 0, %s49
      %s52 = sphi 0, %s51
      %s66 = sphi 0, %s52
      %s70 = sphi 0, %s70
      %s72 = sphi 0, %s70
      %s73 = sphi 0, %s72
      %s87 = sphi 0, %s73
      %s91 = sphi 0, %s91
      %s93 = sphi 0, %s91
      %s94 = sphi 0, %s93
      %s108 = sphi 0, %s94
      %s112 = sphi 0, %s112
      %s114 = sphi 0, %s112
      %s115 = sphi 0, %s114
      %s129 = sphi 0, %s115
      %s133 = sphi 0, %s133
      %s135 = sphi 0, %s133
      %s136 = sphi 0, %s135
      %s150 = sphi 0, %s136
      %s154 = sphi 0, %s154
      %s156 = sphi 0, %s154
      %s157 = sphi 0, %s156
      %s171 = sphi 0, %s157
      %s177 = sphi 0, %s179
      %s180 = sphi 0, %s177
      %s181 = sphi 0, %s180
      %s197 = sphi 0, %s181
      %s203 = sphi 0, %s205
      %s206 = sphi 0, %s203
      %s207 = sphi 0, %s206
      %s223 = sphi 0, %s207
    $region4: #{binary_head_forward.2} parent=1 // loop_header_branch
      %18 = sbr.rel (%p16) target = $region8
    $region5: #{binary_head_forward.2} parent=1 // loop_body
      %s20 = ssub.s32 %s15, 1
      %s21 = ssub.s32 %s15, 2
      %s22 = sadd.s32 %s15, 1
      %s23 = ssub.s32 %s15, %s22
      %p24 = scmp.eq.s32.totalorder %s23, 0
      %s26 = sadd.s32 %s25, 1
      %s27 = scalar_select %p24, %s25, %s26
      %p30 = pneg %p24
      %p31 = scmp.eq.s32.totalorder %s15, 1
      %p32 = por %p30, %p31
      %p33 = scmp.ne.s32.totalorder %s25, %s28
      %p34 = scmp.eq.s32.totalorder %s15, 0
      %p35 = por %p33, %p34
      %p36 = scmp.ne.s32.totalorder %s25, %s28
      %p37 = scmp.eq.s32.totalorder %s20, 1
      %p38 = por %p36, %p37
      %p39 = scmp.ne.s32.totalorder %s28, %s29
      %p40 = scmp.eq.s32.totalorder %s20, 0
      %p41 = por %p39, %p40
      %p42 = scmp.ne.s32.totalorder %s28, %s29
      %p43 = scmp.eq.s32.totalorder %s21, 1
      %p44 = por %p42, %p43
      %p46 = scmp.ne.s32.totalorder %s29, %s45
      %p47 = scmp.eq.s32.totalorder %s21, 0
      %p48 = por %p46, %p47
      %s50 = sadd.s32 %s49, 1
      %p53 = scmp.eq.s32.totalorder %s15, 1
      %p54 = scmp.ne.s32.totalorder %s49, %s51
      %p55 = scmp.eq.s32.totalorder %s15, 0
      %p56 = por %p54, %p55
      %p57 = scmp.ne.s32.totalorder %s49, %s51
      %p58 = scmp.eq.s32.totalorder %s20, 1
      %p59 = por %p57, %p58
      %p60 = scmp.ne.s32.totalorder %s51, %s52
      %p61 = scmp.eq.s32.totalorder %s20, 0
      %p62 = por %p60, %p61
      %p63 = scmp.ne.s32.totalorder %s51, %s52
      %p64 = scmp.eq.s32.totalorder %s21, 1
      %p65 = por %p63, %p64
      %p67 = scmp.ne.s32.totalorder %s52, %s66
      %p68 = scmp.eq.s32.totalorder %s21, 0
      %p69 = por %p67, %p68
      %s71 = sadd.s32 %s70, 1
      %p74 = scmp.eq.s32.totalorder %s15, 1
      %p75 = scmp.ne.s32.totalorder %s70, %s72
      %p76 = scmp.eq.s32.totalorder %s15, 0
      %p77 = por %p75, %p76
      %p78 = scmp.ne.s32.totalorder %s70, %s72
      %p79 = scmp.eq.s32.totalorder %s20, 1
      %p80 = por %p78, %p79
      %p81 = scmp.ne.s32.totalorder %s72, %s73
      %p82 = scmp.eq.s32.totalorder %s20, 0
      %p83 = por %p81, %p82
      %p84 = scmp.ne.s32.totalorder %s72, %s73
      %p85 = scmp.eq.s32.totalorder %s21, 1
      %p86 = por %p84, %p85
      %p88 = scmp.ne.s32.totalorder %s73, %s87
      %p89 = scmp.eq.s32.totalorder %s21, 0
      %p90 = por %p88, %p89
      %s92 = sadd.s32 %s91, 1
      %p95 = scmp.eq.s32.totalorder %s15, 1
      %p96 = scmp.ne.s32.totalorder %s91, %s93
      %p97 = scmp.eq.s32.totalorder %s15, 0
      %p98 = por %p96, %p97
      %p99 = scmp.ne.s32.totalorder %s91, %s93
      %p100 = scmp.eq.s32.totalorder %s20, 1
      %p101 = por %p99, %p100
      %p102 = scmp.ne.s32.totalorder %s93, %s94
      %p103 = scmp.eq.s32.totalorder %s20, 0
      %p104 = por %p102, %p103
      %p105 = scmp.ne.s32.totalorder %s93, %s94
      %p106 = scmp.eq.s32.totalorder %s21, 1
      %p107 = por %p105, %p106
      %p109 = scmp.ne.s32.totalorder %s94, %s108
      %p110 = scmp.eq.s32.totalorder %s21, 0
      %p111 = por %p109, %p110
      %s113 = sadd.s32 %s112, 1
      %p116 = scmp.eq.s32.totalorder %s15, 1
      %p117 = scmp.ne.s32.totalorder %s112, %s114
      %p118 = scmp.eq.s32.totalorder %s15, 0
      %p119 = por %p117, %p118
      %p120 = scmp.ne.s32.totalorder %s112, %s114
      %p121 = scmp.eq.s32.totalorder %s20, 1
      %p122 = por %p120, %p121
      %p123 = scmp.ne.s32.totalorder %s114, %s115
      %p124 = scmp.eq.s32.totalorder %s20, 0
      %p125 = por %p123, %p124
      %p126 = scmp.ne.s32.totalorder %s114, %s115
      %p127 = scmp.eq.s32.totalorder %s21, 1
      %p128 = por %p126, %p127
      %p130 = scmp.ne.s32.totalorder %s115, %s129
      %p131 = scmp.eq.s32.totalorder %s21, 0
      %p132 = por %p130, %p131
      %s134 = sadd.s32 %s133, 1
      %p137 = scmp.eq.s32.totalorder %s15, 1
      %p138 = scmp.ne.s32.totalorder %s133, %s135
      %p139 = scmp.eq.s32.totalorder %s15, 0
      %p140 = por %p138, %p139
      %p141 = scmp.ne.s32.totalorder %s133, %s135
      %p142 = scmp.eq.s32.totalorder %s20, 1
      %p143 = por %p141, %p142
      %p144 = scmp.ne.s32.totalorder %s135, %s136
      %p145 = scmp.eq.s32.totalorder %s20, 0
      %p146 = por %p144, %p145
      %p147 = scmp.ne.s32.totalorder %s135, %s136
      %p148 = scmp.eq.s32.totalorder %s21, 1
      %p149 = por %p147, %p148
      %p151 = scmp.ne.s32.totalorder %s136, %s150
      %p152 = scmp.eq.s32.totalorder %s21, 0
      %p153 = por %p151, %p152
      %s155 = sadd.s32 %s154, 1
      %p158 = scmp.eq.s32.totalorder %s15, 1
      %p159 = scmp.ne.s32.totalorder %s154, %s156
      %p160 = scmp.eq.s32.totalorder %s15, 0
      %p161 = por %p159, %p160
      %p162 = scmp.ne.s32.totalorder %s154, %s156
      %p163 = scmp.eq.s32.totalorder %s20, 1
      %p164 = por %p162, %p163
      %p165 = scmp.ne.s32.totalorder %s156, %s157
      %p166 = scmp.eq.s32.totalorder %s20, 0
      %p167 = por %p165, %p166
      %p168 = scmp.ne.s32.totalorder %s156, %s157
      %p169 = scmp.eq.s32.totalorder %s21, 1
      %p170 = por %p168, %p169
      %p172 = scmp.ne.s32.totalorder %s157, %s171
      %p173 = scmp.eq.s32.totalorder %s21, 0
      %p174 = por %p172, %p173
      %s175 = ssub.s32 %s15, %s22
      %p176 = scmp.eq.s32.totalorder %s175, 0
      %s178 = sadd.s32 %s177, 1
      %s179 = scalar_select %p176, %s177, %s178
      %p182 = pneg %p176
      %p183 = scmp.eq.s32.totalorder %s15, 1
      %p184 = por %p182, %p183
      %p185 = scmp.ne.s32.totalorder %s177, %s180
      %p186 = scmp.eq.s32.totalorder %s15, 0
      %p187 = por %p185, %p186
      %p188 = scmp.ne.s32.totalorder %s177, %s180
      %p189 = scmp.eq.s32.totalorder %s20, 1
      %p190 = por %p188, %p189
      %p191 = scmp.ne.s32.totalorder %s180, %s181
      %p192 = scmp.eq.s32.totalorder %s20, 0
      %p193 = por %p191, %p192
      %p194 = scmp.ne.s32.totalorder %s180, %s181
      %p195 = scmp.eq.s32.totalorder %s21, 1
      %p196 = por %p194, %p195
      %p198 = scmp.ne.s32.totalorder %s181, %s197
      %p199 = scmp.eq.s32.totalorder %s21, 0
      %p200 = por %p198, %p199
      %s201 = ssub.s32 %s15, %s22
      %p202 = scmp.eq.s32.totalorder %s201, 0
      %s204 = sadd.s32 %s203, 1
      %s205 = scalar_select %p202, %s203, %s204
      %p208 = pneg %p202
      %p209 = scmp.eq.s32.totalorder %s15, 1
      %p210 = por %p208, %p209
      %p211 = scmp.ne.s32.totalorder %s203, %s206
      %p212 = scmp.eq.s32.totalorder %s15, 0
      %p213 = por %p211, %p212
      %p214 = scmp.ne.s32.totalorder %s203, %s206
      %p215 = scmp.eq.s32.totalorder %s20, 1
      %p216 = por %p214, %p215
      %p217 = scmp.ne.s32.totalorder %s206, %s207
      %p218 = scmp.eq.s32.totalorder %s20, 0
      %p219 = por %p217, %p218
      %p220 = scmp.ne.s32.totalorder %s206, %s207
      %p221 = scmp.eq.s32.totalorder %s21, 1
      %p222 = por %p220, %p221
      %p224 = scmp.ne.s32.totalorder %s207, %s223
      %p225 = scmp.eq.s32.totalorder %s21, 0
      %p226 = por %p224, %p225
      %p227 = scmp.le.s32.totalorder 1, %s15
      %p228 = scmp.lt.s32.totalorder %s15, 3
      %p229 = pnand %p227, %p228
      %p230 = pneg %p229
      // Predicated region
      $region9: #{binary_head_forward.2} parent=5 // pred_check
        _
      $region10: #{binary_head_forward.2} parent=5 // pred_check_branch
        %232 = sbr.rel (%p229) target = $region12
      $region11: #{binary_head_forward.2} parent=5 // pred_region
        %s233 = ssub.s32 %s15, 1
        // Predicated region
        $region13: #{binary_head_forward.2} parent=11 // pred_check
          %p234 = pneg %p62
        $region14: #{binary_head_forward.2} parent=11 // pred_check_branch
          %236 = sbr.rel (%p234) target = $region16
        $region15: #{binary_head_forward.2} parent=11 // pred_region
          _
        $region16: #{binary_head_forward.2} parent=11 // pred_fallthru
          _
        // Predicated region
        $region17: #{binary_head_forward.2} parent=11 // pred_check
          %p237 = pneg %p83
        $region18: #{binary_head_forward.2} parent=11 // pred_check_branch
          %239 = sbr.rel (%p237) target = $region20
        $region19: #{binary_head_forward.2} parent=11 // pred_region
          _
        $region20: #{binary_head_forward.2} parent=11 // pred_fallthru
          _
        // Predicated region
        $region21: #{binary_head_forward.2} parent=11 // pred_check
          %p240 = pneg %p104
        $region22: #{binary_head_forward.2} parent=11 // pred_check_branch
          %242 = sbr.rel (%p240) target = $region24
        $region23: #{binary_head_forward.2} parent=11 // pred_region
          _
        $region24: #{binary_head_forward.2} parent=11 // pred_fallthru
          _
        // Predicated region
        $region25: #{binary_head_forward.2} parent=11 // pred_check
          %p243 = pneg %p125
        $region26: #{binary_head_forward.2} parent=11 // pred_check_branch
          %245 = sbr.rel (%p243) target = $region28
        $region27: #{binary_head_forward.2} parent=11 // pred_region
          _
        $region28: #{binary_head_forward.2} parent=11 // pred_fallthru
          _
        // Predicated region
        $region29: #{binary_head_forward.2} parent=11 // pred_check
          %p246 = pneg %p146
        $region30: #{binary_head_forward.2} parent=11 // pred_check_branch
          %248 = sbr.rel (%p246) target = $region32
        $region31: #{binary_head_forward.2} parent=11 // pred_region
          _
        $region32: #{binary_head_forward.2} parent=11 // pred_fallthru
          _
        // Predicated region
        $region33: #{binary_head_forward.2} parent=11 // pred_check
          %p249 = pneg %p167
        $region34: #{binary_head_forward.2} parent=11 // pred_check_branch
          %251 = sbr.rel (%p249) target = $region36
        $region35: #{binary_head_forward.2} parent=11 // pred_region
          _
        $region36: #{binary_head_forward.2} parent=11 // pred_fallthru
          _
      $region12: #{binary_head_forward.2} parent=5 // pred_fallthru
        _
      %p252 = scmp.lt.s32.totalorder %s15, 2
      // Predicated region
      $region37: #{binary_head_forward.2} parent=5 // pred_check
        %p253 = pneg %p252
      $region38: #{binary_head_forward.2} parent=5 // pred_check_branch
        %255 = sbr.rel (%p253) target = $region40
      $region39: #{binary_head_forward.2} parent=5 // pred_region
        // Predicated region
        $region41: #{binary_head_forward.2} parent=39 // pred_check
          %p256 = pneg %p35
        $region42: #{binary_head_forward.2} parent=39 // pred_check_branch
          %258 = sbr.rel (%p256) target = $region44
        $region43: #{binary_head_forward.2} parent=39 // pred_region
          %s259 = smul.u32 32, %s15
          %s260 = ssub.s32 63, %s259
          %p261 = scmp.lt.s32.totalorder %s260, 32
          %s262 = scalar_select %p261, %s260, 32
          %s263 = smul.u32 128, %s262
          %p264 = scmp.lt.s32.totalorder %s259, 62
          %s265 = scalar_select %p264, %s259, 62
          %s266 = smul.addr %s265, 8
          %s267 = scalar_lea.vmem %s0, %s266
          %s268 = smul.u32 32, %s15
          %s269 = ssub.s32 63, %s268
          %p270 = scmp.lt.s32.totalorder %s269, 32
          %s271 = scalar_select %p270, %s269, 32
          %s272 = smul.u32 128, %s271
        $region44: #{binary_head_forward.2} parent=39 // pred_fallthru
          _
      $region40: #{binary_head_forward.2} parent=5 // pred_fallthru
        _
      %p273 = scmp.le.s32.totalorder 1, %s15
      %p274 = scmp.lt.s32.totalorder %s15, 3
      %p275 = pnand %p273, %p274
      %p276 = pneg %p275
      // Predicated region
      $region45: #{binary_head_forward.2} parent=5 // pred_check
        _
      $region46: #{binary_head_forward.2} parent=5 // pred_check_branch
        %278 = sbr.rel (%p275) target = $region48
      $region47: #{binary_head_forward.2} parent=5 // pred_region
        %s279 = ssub.s32 %s15, 1
        %s280 = smul.u32 32, %s20
        %s281 = ssub.s32 63, %s280
        %p282 = scmp.lt.s32.totalorder %s281, 32
        %s283 = scalar_select %p282, %s281, 32
        %s284 = smul.u32 128, %s283
        %p285 = scmp.lt.s32.totalorder %s280, 62
        %s286 = scalar_select %p285, %s280, 62
        %s287 = smul.addr %s286, 8
        %s288 = scalar_lea.vmem %s0, %s287
        %p289 = pneg %p41
        %p290 = pneg %p38
        %p291 = pneg %p62
        %p292 = pneg %p59
        %p293 = pneg %p83
        %p294 = pneg %p80
        %p295 = pneg %p104
        %p296 = pneg %p101
        %p297 = pneg %p125
        %p298 = pneg %p122
        %p299 = pneg %p146
        %p300 = pneg %p143
        %p301 = pneg %p167
        %p302 = pneg %p164
        %p303 = pneg %p193
        %p304 = pneg %p190
        %s305 = sand.u32 %s180, 1
        %s306 = sand.u32 %s180, 1
        %s307 = smul.addr %s306, 128
        %s308 = scalar_lea.vmem [#allocation2], %s307
        %p309 = pneg %p219
        %p310 = pneg %p216
        %p311 = scmp.lt.s32.totalorder %s20, 1
        %s312 = scalar_select %p311, %s20, 1
        %s313 = smul.addr %s312, 8
        %s314 = scalar_lea.vmem %s8, %s313
        %s315 = smul.u32 32, %s20
        %s316 = ssub.s32 63, %s315
        %p317 = scmp.lt.s32.totalorder %s316, 32
        %s318 = scalar_select %p317, %s316, 32
        %s319 = smul.u32 128, %s318
        %p320 = scmp.lt.s32.totalorder %s315, 62
        %s321 = scalar_select %p320, %s315, 62
        %s322 = smul.addr %s321, 8
        %s323 = scalar_lea.vmem %s0, %s322
        %s324 = smul.u32 32, %s20
        %s325 = ssub.s32 63, %s324
        %p326 = scmp.lt.s32.totalorder %s325, 32
        %s327 = scalar_select %p326, %s325, 32
        %s328 = smul.u32 128, %s327
        %s329 = smul.u32 32, %s20
        %s330 = ssub.s32 63, %s329
        %p331 = scmp.lt.s32.totalorder %s330, 32
        %s332 = scalar_select %p331, %s330, 32
        %s333 = smul.u32 64, %s332
        %p334 = scmp.lt.s32.totalorder %s20, 1
        %s335 = scalar_select %p334, %s20, 1
        %s336 = smul.addr %s335, 8
        %s337 = scalar_lea.vmem %s8, %s336
        %v339 = vld [vmem:[%s323] sm:$0xff]
        %v340 = vld [vmem:[%s323 + $0x8] sm:$0xff]
        %v341 = vld [vmem:[%s323 + $0x10] sm:$0xff]
        %v342 = vld [vmem:[%s323 + $0x18] sm:$0xff]
        %v343 = vld [vmem:[%s323 + $0x20] sm:$0xff]
        %v344 = vld [vmem:[%s323 + $0x28] sm:$0xff]
        %v345 = vld [vmem:[%s323 + $0x30] sm:$0xff]
        %v346 = vld [vmem:[%s323 + $0x38] sm:$0xff]
        %v347 = vld [vmem:[%s323 + $0x40] sm:$0xff]
        %v348 = vld [vmem:[%s323 + $0x48] sm:$0xff]
        %v349 = vld [vmem:[%s323 + $0x50] sm:$0xff]
        %v350 = vld [vmem:[%s323 + $0x58] sm:$0xff]
        %v351 = vld [vmem:[%s323 + $0x60] sm:$0xff]
        %v352 = vld [vmem:[%s323 + $0x68] sm:$0xff]
        %v353 = vld [vmem:[%s323 + $0x70] sm:$0xff]
        %v354 = vld [vmem:[%s323 + $0x78] sm:$0xff]
        %v355 = vld [vmem:[%s323 + $0x80] sm:$0xff]
        %v356 = vld [vmem:[%s323 + $0x88] sm:$0xff]
        %v357 = vld [vmem:[%s323 + $0x90] sm:$0xff]
        %v358 = vld [vmem:[%s323 + $0x98] sm:$0xff]
        %v359 = vld [vmem:[%s323 + $0xa0] sm:$0xff]
        %v360 = vld [vmem:[%s323 + $0xa8] sm:$0xff]
        %v361 = vld [vmem:[%s323 + $0xb0] sm:$0xff]
        %v362 = vld [vmem:[%s323 + $0xb8] sm:$0xff]
        %v363 = vld [vmem:[%s323 + $0xc0] sm:$0xff]
        %v364 = vld [vmem:[%s323 + $0xc8] sm:$0xff]
        %v365 = vld [vmem:[%s323 + $0xd0] sm:$0xff]
        %v366 = vld [vmem:[%s323 + $0xd8] sm:$0xff]
        %v367 = vld [vmem:[%s323 + $0xe0] sm:$0xff]
        %v368 = vld [vmem:[%s323 + $0xe8] sm:$0xff]
        %v369 = vld [vmem:[%s323 + $0xf0] sm:$0xff]
        %v370 = vld [vmem:[%s323 + $0xf8] sm:$0xff]
        %v371 = vpack.c.bf16 %v340, %v339
        %v372 = vpack.c.bf16 %v342, %v341
        %v373 = vpack.c.bf16 %v344, %v343
        %v374 = vpack.c.bf16 %v346, %v345
        %v375 = vpack.c.bf16 %v348, %v347
        %v376 = vpack.c.bf16 %v350, %v349
        %v377 = vpack.c.bf16 %v352, %v351
        %v378 = vpack.c.bf16 %v354, %v353
        %v379 = vpack.c.bf16 %v356, %v355
        %v380 = vpack.c.bf16 %v358, %v357
        %v381 = vpack.c.bf16 %v360, %v359
        %v382 = vpack.c.bf16 %v362, %v361
        %v383 = vpack.c.bf16 %v364, %v363
        %v384 = vpack.c.bf16 %v366, %v365
        %v385 = vpack.c.bf16 %v368, %v367
        %v386 = vpack.c.bf16 %v370, %v369
        %v387 = vld [vmem:[%s1] sm:$0xf]
        %v388 = vld [vmem:[%s1 + $0x4] sm:$0xf]
        %v389 = vld [vmem:[%s1 + $0x8] sm:$0xf]
        %v390 = vld [vmem:[%s1 + $0xc] sm:$0xf]
        %v391 = vld [vmem:[%s1 + $0x10] sm:$0xf]
        %v392 = vld [vmem:[%s1 + $0x14] sm:$0xf]
        %v393 = vld [vmem:[%s1 + $0x18] sm:$0xf]
        %v394 = vld [vmem:[%s1 + $0x1c] sm:$0xf]
        %v395 = vld [vmem:[%s1 + $0x20] sm:$0xf]
        %v396 = vld [vmem:[%s1 + $0x24] sm:$0xf]
        %v397 = vld [vmem:[%s1 + $0x28] sm:$0xf]
        %v398 = vld [vmem:[%s1 + $0x2c] sm:$0xf]
        %v399 = vld [vmem:[%s2] sm:$0x1]
        %v401 = vlaneseq
        %v402 = vshrl.u32 %v401, 7
        %v403 = vsub.s32 0, %v402
        %v404 = vrot.slane %v399, %v403
        %v418 = vunpack.c.l.b16 %v387
        %v419 = vunpack.c.l.b16 %v388
        %v420 = vunpack.c.l.b16 %v389
        %v421 = vunpack.c.l.b16 %v390
        %v422 = vunpack.c.l.b16 %v391
        %v423 = vunpack.c.l.b16 %v392
        %v424 = vunpack.c.l.b16 %v393
        %v425 = vunpack.c.l.b16 %v394
        %v426 = vunpack.c.l.b16 %v395
        %v427 = vunpack.c.l.b16 %v396
        %v428 = vunpack.c.l.b16 %v397
        %v429 = vunpack.c.l.b16 %v398
        %v430 = vpack.c.b16 %v419, %v418
        %v431 = vpack.c.b16 %v421, %v420
        %v432 = vpack.c.b16 %v423, %v422
        %v433 = vpack.c.b16 %v425, %v424
        %v434 = vpack.c.b16 %v427, %v426
        %v435 = vpack.c.b16 %v429, %v428
        %vm442 = vcmask 785408
        %v444 = vsel %vm442, %v371, 0
        %v447 = vsel %vm442, %v372, 0
        %v450 = vsel %vm442, %v373, 0
        %v453 = vsel %vm442, %v374, 0
        %v456 = vsel %vm442, %v375, 0
        %v459 = vsel %vm442, %v376, 0
        %v462 = vsel %vm442, %v377, 0
        %v465 = vsel %vm442, %v378, 0
        %v468 = vsel %vm442, %v379, 0
        %v471 = vsel %vm442, %v380, 0
        %v474 = vsel %vm442, %v381, 0
        %v477 = vsel %vm442, %v382, 0
        %v480 = vsel %vm442, %v383, 0
        %v483 = vsel %vm442, %v384, 0
        %v486 = vsel %vm442, %v385, 0
        %v489 = vsel %vm442, %v386, 0
        %491 = vmatprep.subr.bf16.mxu0 0
        %492 = vmatpush1.bf16.msra.mxu0 %v430
        %493 = vmatprep.subr.bf16.mxu0 0
        %494 = vmatpush1.bf16.msra.mxu0 %v431
        %495 = vmatprep.subr.bf16.mxu0 0
        %496 = vmatpush1.bf16.msra.mxu0 %v432
        %497 = vmatprep.subr.bf16.mxu0 0
        %498 = vmatpush1.bf16.msra.mxu0 %v433
        %499 = vmatprep.subr.bf16.mxu0 0
        %500 = vmatpush1.bf16.msra.mxu0 %v434
        %501 = vmatprep.subr.bf16.mxu0 0
        %502 = vmatpush1.bf16.msra.mxu0 %v435
        %503 = vmatprep.subr.bf16.mxu0 0
        %504 = vmatpush1.bf16.msra.mxu0 0
        %505 = vmatprep.subr.bf16.mxu0 0
        %506 = vmatpush1.bf16.msra.mxu0 0
        %507 = vmatprep.subr.bf16.mxu0 0
        %508 = vmatpush1.bf16.msra.mxu0 0
        %509 = vmatprep.subr.bf16.mxu0 0
        %510 = vmatpush1.bf16.msra.mxu0 0
        %511 = vmatprep.subr.bf16.mxu0 0
        %512 = vmatpush1.bf16.msra.mxu0 0
        %513 = vmatprep.subr.bf16.mxu0 0
        %514 = vmatpush1.bf16.msra.mxu0 0
        %515 = vmatprep.subr.bf16.mxu0 0
        %516 = vmatpush1.bf16.msra.mxu0 0
        %517 = vmatprep.subr.bf16.mxu0 0
        %518 = vmatpush1.bf16.msra.mxu0 0
        %519 = vmatprep.subr.bf16.mxu0 0
        %520 = vmatpush1.bf16.msra.mxu0 0
        %521 = vmatprep.subr.bf16.mxu0 0
        %522 = vmatpush1.bf16.msra.mxu0 0
        %523 = vmatprep.mubr.bf16.mxu0 0
        %524 = vmatmul.mubr.bf16.gmra.mrb[0].mxu0 %v444
        %v525 = vpop.f32.mrb[0].mxu0
        %v526 = vadd.f32 %v404, %v525
        %v527 = vpop.f32.mrb[0].mxu0
        %v528 = vpop.f32.mrb[0].mxu0
        %v529 = vadd.f32 %v404, %v528
        %v530 = vpop.f32.mrb[0].mxu0
        %531 = vmatprep.mubr.bf16.mxu0 0
        %532 = vmatmul.mubr.bf16.gmra.mrb[0].mxu0 %v447
        %v533 = vpop.f32.mrb[0].mxu0
        %v534 = vadd.f32 %v404, %v533
        %v535 = vpop.f32.mrb[0].mxu0
        %v536 = vpop.f32.mrb[0].mxu0
        %v537 = vadd.f32 %v404, %v536
        %v538 = vpop.f32.mrb[0].mxu0
        %539 = vmatprep.mubr.bf16.mxu0 0
        %540 = vmatmul.mubr.bf16.gmra.mrb[0].mxu0 %v450
        %v541 = vpop.f32.mrb[0].mxu0
        %v542 = vadd.f32 %v404, %v541
        %v543 = vpop.f32.mrb[0].mxu0
        %v544 = vpop.f32.mrb[0].mxu0
        %v545 = vadd.f32 %v404, %v544
        %v546 = vpop.f32.mrb[0].mxu0
        %547 = vmatprep.mubr.bf16.mxu0 0
        %548 = vmatmul.mubr.bf16.gmra.mrb[0].mxu0 %v453
        %v549 = vpop.f32.mrb[0].mxu0
        %v550 = vadd.f32 %v404, %v549
        %v551 = vpop.f32.mrb[0].mxu0
        %v552 = vpop.f32.mrb[0].mxu0
        %v553 = vadd.f32 %v404, %v552
        %v554 = vpop.f32.mrb[0].mxu0
        %555 = vmatprep.mubr.bf16.mxu0 0
        %556 = vmatmul.mubr.bf16.gmra.mrb[0].mxu0 %v456
        %v557 = vpop.f32.mrb[0].mxu0
        %v558 = vadd.f32 %v404, %v557
        %v559 = vpop.f32.mrb[0].mxu0
        %v560 = vpop.f32.mrb[0].mxu0
        %v561 = vadd.f32 %v404, %v560
        %v562 = vpop.f32.mrb[0].mxu0
        %563 = vmatprep.mubr.bf16.mxu0 0
        %564 = vmatmul.mubr.bf16.gmra.mrb[0].mxu0 %v459
        %v565 = vpop.f32.mrb[0].mxu0
        %v566 = vadd.f32 %v404, %v565
        %v567 = vpop.f32.mrb[0].mxu0
        %v568 = vpop.f32.mrb[0].mxu0
        %v569 = vadd.f32 %v404, %v568
        %v570 = vpop.f32.mrb[0].mxu0
        %571 = vmatprep.mubr.bf16.mxu0 0
        %572 = vmatmul.mubr.bf16.gmra.mrb[0].mxu0 %v462
        %v573 = vpop.f32.mrb[0].mxu0
        %v574 = vadd.f32 %v404, %v573
        %v575 = vpop.f32.mrb[0].mxu0
        %v576 = vpop.f32.mrb[0].mxu0
        %v577 = vadd.f32 %v404, %v576
        %v578 = vpop.f32.mrb[0].mxu0
        %579 = vmatprep.mubr.bf16.mxu0 0
        %580 = vmatmul.mubr.bf16.gmra.mrb[0].mxu0 %v465
        %v581 = vpop.f32.mrb[0].mxu0
        %v582 = vadd.f32 %v404, %v581
        %v583 = vpop.f32.mrb[0].mxu0
        %v584 = vpop.f32.mrb[0].mxu0
        %v585 = vadd.f32 %v404, %v584
        %v586 = vpop.f32.mrb[0].mxu0
        %587 = vmatprep.mubr.bf16.mxu0 0
        %588 = vmatmul.mubr.bf16.gmra.mrb[0].mxu0 %v468
        %v589 = vpop.f32.mrb[0].mxu0
        %v590 = vadd.f32 %v404, %v589
        %v591 = vpop.f32.mrb[0].mxu0
        %v592 = vpop.f32.mrb[0].mxu0
        %v593 = vadd.f32 %v404, %v592
        %v594 = vpop.f32.mrb[0].mxu0
        %595 = vmatprep.mubr.bf16.mxu0 0
        %596 = vmatmul.mubr.bf16.gmra.mrb[0].mxu0 %v471
        %v597 = vpop.f32.mrb[0].mxu0
        %v598 = vadd.f32 %v404, %v597
        %v599 = vpop.f32.mrb[0].mxu0
        %v600 = vpop.f32.mrb[0].mxu0
        %v601 = vadd.f32 %v404, %v600
        %v602 = vpop.f32.mrb[0].mxu0
        %603 = vmatprep.mubr.bf16.mxu0 0
        %604 = vmatmul.mubr.bf16.gmra.mrb[0].mxu0 %v474
        %v605 = vpop.f32.mrb[0].mxu0
        %v606 = vadd.f32 %v404, %v605
        %v607 = vpop.f32.mrb[0].mxu0
        %v608 = vpop.f32.mrb[0].mxu0
        %v609 = vadd.f32 %v404, %v608
        %v610 = vpop.f32.mrb[0].mxu0
        %611 = vmatprep.mubr.bf16.mxu0 0
        %612 = vmatmul.mubr.bf16.gmra.mrb[0].mxu0 %v477
        %v613 = vpop.f32.mrb[0].mxu0
        %v614 = vadd.f32 %v404, %v613
        %v615 = vpop.f32.mrb[0].mxu0
        %v616 = vpop.f32.mrb[0].mxu0
        %v617 = vadd.f32 %v404, %v616
        %v618 = vpop.f32.mrb[0].mxu0
        %619 = vmatprep.mubr.bf16.mxu0 0
        %620 = vmatmul.mubr.bf16.gmra.mrb[0].mxu0 %v480
        %v621 = vpop.f32.mrb[0].mxu0
        %v622 = vadd.f32 %v404, %v621
        %v623 = vpop.f32.mrb[0].mxu0
        %v624 = vpop.f32.mrb[0].mxu0
        %v625 = vadd.f32 %v404, %v624
        %v626 = vpop.f32.mrb[0].mxu0
        %627 = vmatprep.mubr.bf16.mxu0 0
        %628 = vmatmul.mubr.bf16.gmra.mrb[0].mxu0 %v483
        %v629 = vpop.f32.mrb[0].mxu0
        %v630 = vadd.f32 %v404, %v629
        %v631 = vpop.f32.mrb[0].mxu0
        %v632 = vpop.f32.mrb[0].mxu0
        %v633 = vadd.f32 %v404, %v632
        %v634 = vpop.f32.mrb[0].mxu0
        %635 = vmatprep.mubr.bf16.mxu0 0
        %636 = vmatmul.mubr.bf16.gmra.mrb[0].mxu0 %v486
        %v637 = vpop.f32.mrb[0].mxu0
        %v638 = vadd.f32 %v404, %v637
        %v639 = vpop.f32.mrb[0].mxu0
        %v640 = vpop.f32.mrb[0].mxu0
        %v641 = vadd.f32 %v404, %v640
        %v642 = vpop.f32.mrb[0].mxu0
        %643 = vmatprep.mubr.bf16.mxu0 0
        %644 = vmatmul.mubr.bf16.gmra.mrb[0].mxu0 %v489
        %v645 = vpop.f32.mrb[0].mxu0
        %v646 = vadd.f32 %v404, %v645
        %v647 = vpop.f32.mrb[0].mxu0
        %v648 = vpop.f32.mrb[0].mxu0
        %v649 = vadd.f32 %v404, %v648
        %v650 = vpop.f32.mrb[0].mxu0
        %651 = vdwg.mxu0
        %652 = vadd.xlane.f32.xlu0 %v526
        %v653 = vpop.xlane.xlu0 %652
        %654 = vadd.xlane.f32.xlu0 %v529
        %v655 = vpop.xlane.xlu0 %654
        %656 = vadd.xlane.f32.xlu0 %v534
        %v657 = vpop.xlane.xlu0 %656
        %658 = vadd.xlane.f32.xlu0 %v537
        %v659 = vpop.xlane.xlu0 %658
        %660 = vadd.xlane.f32.xlu0 %v542
        %v661 = vpop.xlane.xlu0 %660
        %662 = vadd.xlane.f32.xlu0 %v545
        %v663 = vpop.xlane.xlu0 %662
        %664 = vadd.xlane.f32.xlu0 %v550
        %v665 = vpop.xlane.xlu0 %664
        %666 = vadd.xlane.f32.xlu0 %v553
        %v667 = vpop.xlane.xlu0 %666
        %668 = vadd.xlane.f32.xlu0 %v558
        %v669 = vpop.xlane.xlu0 %668
        %670 = vadd.xlane.f32.xlu0 %v561
        %v671 = vpop.xlane.xlu0 %670
        %672 = vadd.xlane.f32.xlu0 %v566
        %v673 = vpop.xlane.xlu0 %672
        %674 = vadd.xlane.f32.xlu0 %v569
        %v675 = vpop.xlane.xlu0 %674
        %676 = vadd.xlane.f32.xlu0 %v574
        %v677 = vpop.xlane.xlu0 %676
        %678 = vadd.xlane.f32.xlu0 %v577
        %v679 = vpop.xlane.xlu0 %678
        %680 = vadd.xlane.f32.xlu0 %v582
        %v681 = vpop.xlane.xlu0 %680
        %682 = vadd.xlane.f32.xlu0 %v585
        %v683 = vpop.xlane.xlu0 %682
        %684 = vadd.xlane.f32.xlu0 %v590
        %v685 = vpop.xlane.xlu0 %684
        %686 = vadd.xlane.f32.xlu0 %v593
        %v687 = vpop.xlane.xlu0 %686
        %688 = vadd.xlane.f32.xlu0 %v598
        %v689 = vpop.xlane.xlu0 %688
        %690 = vadd.xlane.f32.xlu0 %v601
        %v691 = vpop.xlane.xlu0 %690
        %692 = vadd.xlane.f32.xlu0 %v606
        %v693 = vpop.xlane.xlu0 %692
        %694 = vadd.xlane.f32.xlu0 %v609
        %v695 = vpop.xlane.xlu0 %694
        %696 = vadd.xlane.f32.xlu0 %v614
        %v697 = vpop.xlane.xlu0 %696
        %698 = vadd.xlane.f32.xlu0 %v617
        %v699 = vpop.xlane.xlu0 %698
        %700 = vadd.xlane.f32.xlu0 %v622
        %v701 = vpop.xlane.xlu0 %700
        %702 = vadd.xlane.f32.xlu0 %v625
        %v703 = vpop.xlane.xlu0 %702
        %704 = vadd.xlane.f32.xlu0 %v630
        %v705 = vpop.xlane.xlu0 %704
        %706 = vadd.xlane.f32.xlu0 %v633
        %v707 = vpop.xlane.xlu0 %706
        %708 = vadd.xlane.f32.xlu0 %v638
        %v709 = vpop.xlane.xlu0 %708
        %710 = vadd.xlane.f32.xlu0 %v641
        %v711 = vpop.xlane.xlu0 %710
        %712 = vadd.xlane.f32.xlu0 %v646
        %v713 = vpop.xlane.xlu0 %712
        %714 = vadd.xlane.f32.xlu0 %v649
        %v715 = vpop.xlane.xlu0 %714
        %v716 = vmul.f32 %v653, 0.015625
        %v717 = vmul.f32 %v655, 0.015625
        %v718 = vmul.f32 %v657, 0.015625
        %v719 = vmul.f32 %v659, 0.015625
        %v720 = vmul.f32 %v661, 0.015625
        %v721 = vmul.f32 %v663, 0.015625
        %v722 = vmul.f32 %v665, 0.015625
        %v723 = vmul.f32 %v667, 0.015625
        %v724 = vmul.f32 %v669, 0.015625
        %v725 = vmul.f32 %v671, 0.015625
        %v726 = vmul.f32 %v673, 0.015625
        %v727 = vmul.f32 %v675, 0.015625
        %v728 = vmul.f32 %v677, 0.015625
        %v729 = vmul.f32 %v679, 0.015625
        %v730 = vmul.f32 %v681, 0.015625
        %v731 = vmul.f32 %v683, 0.015625
        %v732 = vmul.f32 %v685, 0.015625
        %v733 = vmul.f32 %v687, 0.015625
        %v734 = vmul.f32 %v689, 0.015625
        %v735 = vmul.f32 %v691, 0.015625
        %v736 = vmul.f32 %v693, 0.015625
        %v737 = vmul.f32 %v695, 0.015625
        %v738 = vmul.f32 %v697, 0.015625
        %v739 = vmul.f32 %v699, 0.015625
        %v740 = vmul.f32 %v701, 0.015625
        %v741 = vmul.f32 %v703, 0.015625
        %v742 = vmul.f32 %v705, 0.015625
        %v743 = vmul.f32 %v707, 0.015625
        %v744 = vmul.f32 %v709, 0.015625
        %v745 = vmul.f32 %v711, 0.015625
        %v746 = vmul.f32 %v713, 0.015625
        %v747 = vmul.f32 %v715, 0.015625
        %v748 = vsub.f32 %v526, %v716
        %v749 = vsub.f32 %v529, %v717
        %v750 = vsub.f32 %v534, %v718
        %v751 = vsub.f32 %v537, %v719
        %v752 = vsub.f32 %v542, %v720
        %v753 = vsub.f32 %v545, %v721
        %v754 = vsub.f32 %v550, %v722
        %v755 = vsub.f32 %v553, %v723
        %v756 = vsub.f32 %v558, %v724
        %v757 = vsub.f32 %v561, %v725
        %v758 = vsub.f32 %v566, %v726
        %v759 = vsub.f32 %v569, %v727
        %v760 = vsub.f32 %v574, %v728
        %v761 = vsub.f32 %v577, %v729
        %v762 = vsub.f32 %v582, %v730
        %v763 = vsub.f32 %v585, %v731
        %v764 = vsub.f32 %v590, %v732
        %v765 = vsub.f32 %v593, %v733
        %v766 = vsub.f32 %v598, %v734
        %v767 = vsub.f32 %v601, %v735
        %v768 = vsub.f32 %v606, %v736
        %v769 = vsub.f32 %v609, %v737
        %v770 = vsub.f32 %v614, %v738
        %v771 = vsub.f32 %v617, %v739
        %v772 = vsub.f32 %v622, %v740
        %v773 = vsub.f32 %v625, %v741
        %v774 = vsub.f32 %v630, %v742
        %v775 = vsub.f32 %v633, %v743
        %v776 = vsub.f32 %v638, %v744
        %v777 = vsub.f32 %v641, %v745
        %v778 = vsub.f32 %v646, %v746
        %v779 = vsub.f32 %v649, %v747
        %v780 = vlaneseq
        %v781 = vand.u32 %v780, 127
        %vm782 = vcmp.lt.s32.totalorder %v781, 64
        %v783 = vsel %vm782, 1, 0
        %vm784 = vcmp.eq.s32.totalorder %v783, 1
        %v785 = vsel %vm784, %v748, 0.0
        %v786 = vsel %vm784, %v749, 0.0
        %v787 = vsel %vm784, %v750, 0.0
        %v788 = vsel %vm784, %v751, 0.0
        %v789 = vsel %vm784, %v752, 0.0
        %v790 = vsel %vm784, %v753, 0.0
        %v791 = vsel %vm784, %v754, 0.0
        %v792 = vsel %vm784, %v755, 0.0
        %v793 = vsel %vm784, %v756, 0.0
        %v794 = vsel %vm784, %v757, 0.0
        %v795 = vsel %vm784, %v758, 0.0
        %v796 = vsel %vm784, %v759, 0.0
        %v797 = vsel %vm784, %v760, 0.0
        %v798 = vsel %vm784, %v761, 0.0
        %v799 = vsel %vm784, %v762, 0.0
        %v800 = vsel %vm784, %v763, 0.0
        %v801 = vsel %vm784, %v764, 0.0
        %v802 = vsel %vm784, %v765, 0.0
        %v803 = vsel %vm784, %v766, 0.0
        %v804 = vsel %vm784, %v767, 0.0
        %v805 = vsel %vm784, %v768, 0.0
        %v806 = vsel %vm784, %v769, 0.0
        %v807 = vsel %vm784, %v770, 0.0
        %v808 = vsel %vm784, %v771, 0.0
        %v809 = vsel %vm784, %v772, 0.0
        %v810 = vsel %vm784, %v773, 0.0
        %v811 = vsel %vm784, %v774, 0.0
        %v812 = vsel %vm784, %v775, 0.0
        %v813 = vsel %vm784, %v776, 0.0
        %v814 = vsel %vm784, %v777, 0.0
        %v815 = vsel %vm784, %v778, 0.0
        %v816 = vsel %vm784, %v779, 0.0
        %v817 = vmul.f32 %v785, %v785
        %v818 = vmul.f32 %v786, %v786
        %v819 = vmul.f32 %v787, %v787
        %v820 = vmul.f32 %v788, %v788
        %v821 = vmul.f32 %v789, %v789
        %v822 = vmul.f32 %v790, %v790
        %v823 = vmul.f32 %v791, %v791
        %v824 = vmul.f32 %v792, %v792
        %v825 = vmul.f32 %v793, %v793
        %v826 = vmul.f32 %v794, %v794
        %v827 = vmul.f32 %v795, %v795
        %v828 = vmul.f32 %v796, %v796
        %v829 = vmul.f32 %v797, %v797
        %v830 = vmul.f32 %v798, %v798
        %v831 = vmul.f32 %v799, %v799
        %v832 = vmul.f32 %v800, %v800
        %v833 = vmul.f32 %v801, %v801
        %v834 = vmul.f32 %v802, %v802
        %v835 = vmul.f32 %v803, %v803
        %v836 = vmul.f32 %v804, %v804
        %v837 = vmul.f32 %v805, %v805
        %v838 = vmul.f32 %v806, %v806
        %v839 = vmul.f32 %v807, %v807
        %v840 = vmul.f32 %v808, %v808
        %v841 = vmul.f32 %v809, %v809
        %v842 = vmul.f32 %v810, %v810
        %v843 = vmul.f32 %v811, %v811
        %v844 = vmul.f32 %v812, %v812
        %v845 = vmul.f32 %v813, %v813
        %v846 = vmul.f32 %v814, %v814
        %v847 = vmul.f32 %v815, %v815
        %v848 = vmul.f32 %v816, %v816
        %849 = vadd.xlane.f32.xlu0 %v817
        %v850 = vpop.xlane.xlu0 %849
        %851 = vadd.xlane.f32.xlu0 %v818
        %v852 = vpop.xlane.xlu0 %851
        %853 = vadd.xlane.f32.xlu0 %v819
        %v854 = vpop.xlane.xlu0 %853
        %855 = vadd.xlane.f32.xlu0 %v820
        %v856 = vpop.xlane.xlu0 %855
        %857 = vadd.xlane.f32.xlu0 %v821
        %v858 = vpop.xlane.xlu0 %857
        %859 = vadd.xlane.f32.xlu0 %v822
        %v860 = vpop.xlane.xlu0 %859
        %861 = vadd.xlane.f32.xlu0 %v823
        %v862 = vpop.xlane.xlu0 %861
        %863 = vadd.xlane.f32.xlu0 %v824
        %v864 = vpop.xlane.xlu0 %863
        %865 = vadd.xlane.f32.xlu0 %v825
        %v866 = vpop.xlane.xlu0 %865
        %867 = vadd.xlane.f32.xlu0 %v826
        %v868 = vpop.xlane.xlu0 %867
        %869 = vadd.xlane.f32.xlu0 %v827
        %v870 = vpop.xlane.xlu0 %869
        %871 = vadd.xlane.f32.xlu0 %v828
        %v872 = vpop.xlane.xlu0 %871
        %873 = vadd.xlane.f32.xlu0 %v829
        %v874 = vpop.xlane.xlu0 %873
        %875 = vadd.xlane.f32.xlu0 %v830
        %v876 = vpop.xlane.xlu0 %875
        %877 = vadd.xlane.f32.xlu0 %v831
        %v878 = vpop.xlane.xlu0 %877
        %879 = vadd.xlane.f32.xlu0 %v832
        %v880 = vpop.xlane.xlu0 %879
        %881 = vadd.xlane.f32.xlu0 %v833
        %v882 = vpop.xlane.xlu0 %881
        %883 = vadd.xlane.f32.xlu0 %v834
        %v884 = vpop.xlane.xlu0 %883
        %885 = vadd.xlane.f32.xlu0 %v835
        %v886 = vpop.xlane.xlu0 %885
        %887 = vadd.xlane.f32.xlu0 %v836
        %v888 = vpop.xlane.xlu0 %887
        %889 = vadd.xlane.f32.xlu0 %v837
        %v890 = vpop.xlane.xlu0 %889
        %891 = vadd.xlane.f32.xlu0 %v838
        %v892 = vpop.xlane.xlu0 %891
        %893 = vadd.xlane.f32.xlu0 %v839
        %v894 = vpop.xlane.xlu0 %893
        %895 = vadd.xlane.f32.xlu0 %v840
        %v896 = vpop.xlane.xlu0 %895
        %897 = vadd.xlane.f32.xlu0 %v841
        %v898 = vpop.xlane.xlu0 %897
        %899 = vadd.xlane.f32.xlu0 %v842
        %v900 = vpop.xlane.xlu0 %899
        %901 = vadd.xlane.f32.xlu0 %v843
        %v902 = vpop.xlane.xlu0 %901
        %903 = vadd.xlane.f32.xlu0 %v844
        %v904 = vpop.xlane.xlu0 %903
        %905 = vadd.xlane.f32.xlu0 %v845
        %v906 = vpop.xlane.xlu0 %905
        %907 = vadd.xlane.f32.xlu0 %v846
        %v908 = vpop.xlane.xlu0 %907
        %909 = vadd.xlane.f32.xlu0 %v847
        %v910 = vpop.xlane.xlu0 %909
        %911 = vadd.xlane.f32.xlu0 %v848
        %v912 = vpop.xlane.xlu0 %911
        %v913 = vmul.f32 %v850, 0.015625
        %v914 = vmul.f32 %v852, 0.015625
        %v915 = vmul.f32 %v854, 0.015625
        %v916 = vmul.f32 %v856, 0.015625
        %v917 = vmul.f32 %v858, 0.015625
        %v918 = vmul.f32 %v860, 0.015625
        %v919 = vmul.f32 %v862, 0.015625
        %v920 = vmul.f32 %v864, 0.015625
        %v921 = vmul.f32 %v866, 0.015625
        %v922 = vmul.f32 %v868, 0.015625
        %v923 = vmul.f32 %v870, 0.015625
        %v924 = vmul.f32 %v872, 0.015625
        %v925 = vmul.f32 %v874, 0.015625
        %v926 = vmul.f32 %v876, 0.015625
        %v927 = vmul.f32 %v878, 0.015625
        %v928 = vmul.f32 %v880, 0.015625
        %v929 = vmul.f32 %v882, 0.015625
        %v930 = vmul.f32 %v884, 0.015625
        %v931 = vmul.f32 %v886, 0.015625
        %v932 = vmul.f32 %v888, 0.015625
        %v933 = vmul.f32 %v890, 0.015625
        %v934 = vmul.f32 %v892, 0.015625
        %v935 = vmul.f32 %v894, 0.015625
        %v936 = vmul.f32 %v896, 0.015625
        %v937 = vmul.f32 %v898, 0.015625
        %v938 = vmul.f32 %v900, 0.015625
        %v939 = vmul.f32 %v902, 0.015625
        %v940 = vmul.f32 %v904, 0.015625
        %v941 = vmul.f32 %v906, 0.015625
        %v942 = vmul.f32 %v908, 0.015625
        %v943 = vmul.f32 %v910, 0.015625
        %v944 = vmul.f32 %v912, 0.015625
        %v945 = vadd.f32 %v913, 1e-05
        %v946 = vadd.f32 %v914, 1e-05
        %v947 = vadd.f32 %v915, 1e-05
        %v948 = vadd.f32 %v916, 1e-05
        %v949 = vadd.f32 %v917, 1e-05
        %v950 = vadd.f32 %v918, 1e-05
        %v951 = vadd.f32 %v919, 1e-05
        %v952 = vadd.f32 %v920, 1e-05
        %v953 = vadd.f32 %v921, 1e-05
        %v954 = vadd.f32 %v922, 1e-05
        %v955 = vadd.f32 %v923, 1e-05
        %v956 = vadd.f32 %v924, 1e-05
        %v957 = vadd.f32 %v925, 1e-05
        %v958 = vadd.f32 %v926, 1e-05
        %v959 = vadd.f32 %v927, 1e-05
        %v960 = vadd.f32 %v928, 1e-05
        %v961 = vadd.f32 %v929, 1e-05
        %v962 = vadd.f32 %v930, 1e-05
        %v963 = vadd.f32 %v931, 1e-05
        %v964 = vadd.f32 %v932, 1e-05
        %v965 = vadd.f32 %v933, 1e-05
        %v966 = vadd.f32 %v934, 1e-05
        %v967 = vadd.f32 %v935, 1e-05
        %v968 = vadd.f32 %v936, 1e-05
        %v969 = vadd.f32 %v937, 1e-05
        %v970 = vadd.f32 %v938, 1e-05
        %v971 = vadd.f32 %v939, 1e-05
        %v972 = vadd.f32 %v940, 1e-05
        %v973 = vadd.f32 %v941, 1e-05
        %v974 = vadd.f32 %v942, 1e-05
        %v975 = vadd.f32 %v943, 1e-05
        %v976 = vadd.f32 %v944, 1e-05
        %v977 = vrsqrt.pop %v945
        %v978 = vrsqrt.pop %v946
        %v979 = vrsqrt.pop %v947
        %v980 = vrsqrt.pop %v948
        %v981 = vrsqrt.pop %v949
        %v982 = vrsqrt.pop %v950
        %v983 = vrsqrt.pop %v951
        %v984 = vrsqrt.pop %v952
        %v985 = vrsqrt.pop %v953
        %v986 = vrsqrt.pop %v954
        %v987 = vrsqrt.pop %v955
        %v988 = vrsqrt.pop %v956
        %v989 = vrsqrt.pop %v957
        %v990 = vrsqrt.pop %v958
        %v991 = vrsqrt.pop %v959
        %v992 = vrsqrt.pop %v960
        %v993 = vrsqrt.pop %v961
        %v994 = vrsqrt.pop %v962
        %v995 = vrsqrt.pop %v963
        %v996 = vrsqrt.pop %v964
        %v997 = vrsqrt.pop %v965
        %v998 = vrsqrt.pop %v966
        %v999 = vrsqrt.pop %v967
        %v1000 = vrsqrt.pop %v968
        %v1001 = vrsqrt.pop %v969
        %v1002 = vrsqrt.pop %v970
        %v1003 = vrsqrt.pop %v971
        %v1004 = vrsqrt.pop %v972
        %v1005 = vrsqrt.pop %v973
        %v1006 = vrsqrt.pop %v974
        %v1007 = vrsqrt.pop %v975
        %v1008 = vrsqrt.pop %v976
        %v1009 = vmul.f32 %v785, %v977
        %v1010 = vmul.f32 %v786, %v978
        %v1011 = vmul.f32 %v787, %v979
        %v1012 = vmul.f32 %v788, %v980
        %v1013 = vmul.f32 %v789, %v981
        %v1014 = vmul.f32 %v790, %v982
        %v1015 = vmul.f32 %v791, %v983
        %v1016 = vmul.f32 %v792, %v984
        %v1017 = vmul.f32 %v793, %v985
        %v1018 = vmul.f32 %v794, %v986
        %v1019 = vmul.f32 %v795, %v987
        %v1020 = vmul.f32 %v796, %v988
        %v1021 = vmul.f32 %v797, %v989
        %v1022 = vmul.f32 %v798, %v990
        %v1023 = vmul.f32 %v799, %v991
        %v1024 = vmul.f32 %v800, %v992
        %v1025 = vmul.f32 %v801, %v993
        %v1026 = vmul.f32 %v802, %v994
        %v1027 = vmul.f32 %v803, %v995
        %v1028 = vmul.f32 %v804, %v996
        %v1029 = vmul.f32 %v805, %v997
        %v1030 = vmul.f32 %v806, %v998
        %v1031 = vmul.f32 %v807, %v999
        %v1032 = vmul.f32 %v808, %v1000
        %v1033 = vmul.f32 %v809, %v1001
        %v1034 = vmul.f32 %v810, %v1002
        %v1035 = vmul.f32 %v811, %v1003
        %v1036 = vmul.f32 %v812, %v1004
        %v1037 = vmul.f32 %v813, %v1005
        %v1038 = vmul.f32 %v814, %v1006
        %v1039 = vmul.f32 %v815, %v1007
        %v1040 = vmul.f32 %v816, %v1008
        %v1041 = vld [vmem:[%s3] sm:$0x1]
        %v1043 = vlaneseq
        %v1044 = vshrl.u32 %v1043, 7
        %v1045 = vsub.s32 0, %v1044
        %v1046 = vrot.slane %v1041, %v1045
        %v1048 = vmul.f32 %v1009, %v1046
        %v1049 = vmul.f32 %v1010, %v1046
        %v1050 = vmul.f32 %v1011, %v1046
        %v1051 = vmul.f32 %v1012, %v1046
        %v1052 = vmul.f32 %v1013, %v1046
        %v1053 = vmul.f32 %v1014, %v1046
        %v1054 = vmul.f32 %v1015, %v1046
        %v1055 = vmul.f32 %v1016, %v1046
        %v1056 = vmul.f32 %v1017, %v1046
        %v1057 = vmul.f32 %v1018, %v1046
        %v1058 = vmul.f32 %v1019, %v1046
        %v1059 = vmul.f32 %v1020, %v1046
        %v1060 = vmul.f32 %v1021, %v1046
        %v1061 = vmul.f32 %v1022, %v1046
        %v1062 = vmul.f32 %v1023, %v1046
        %v1063 = vmul.f32 %v1024, %v1046
        %v1064 = vmul.f32 %v1025, %v1046
        %v1065 = vmul.f32 %v1026, %v1046
        %v1066 = vmul.f32 %v1027, %v1046
        %v1067 = vmul.f32 %v1028, %v1046
        %v1068 = vmul.f32 %v1029, %v1046
        %v1069 = vmul.f32 %v1030, %v1046
        %v1070 = vmul.f32 %v1031, %v1046
        %v1071 = vmul.f32 %v1032, %v1046
        %v1072 = vmul.f32 %v1033, %v1046
        %v1073 = vmul.f32 %v1034, %v1046
        %v1074 = vmul.f32 %v1035, %v1046
        %v1075 = vmul.f32 %v1036, %v1046
        %v1076 = vmul.f32 %v1037, %v1046
        %v1077 = vmul.f32 %v1038, %v1046
        %v1078 = vmul.f32 %v1039, %v1046
        %v1079 = vmul.f32 %v1040, %v1046
        %v1080 = vld [vmem:[%s4] sm:$0x1]
        %v1082 = vlaneseq
        %v1083 = vshrl.u32 %v1082, 7
        %v1084 = vsub.s32 0, %v1083
        %v1085 = vrot.slane %v1080, %v1084
        %v1087 = vadd.f32 %v1048, %v1085
        %v1088 = vadd.f32 %v1049, %v1085
        %v1089 = vadd.f32 %v1050, %v1085
        %v1090 = vadd.f32 %v1051, %v1085
        %v1091 = vadd.f32 %v1052, %v1085
        %v1092 = vadd.f32 %v1053, %v1085
        %v1093 = vadd.f32 %v1054, %v1085
        %v1094 = vadd.f32 %v1055, %v1085
        %v1095 = vadd.f32 %v1056, %v1085
        %v1096 = vadd.f32 %v1057, %v1085
        %v1097 = vadd.f32 %v1058, %v1085
        %v1098 = vadd.f32 %v1059, %v1085
        %v1099 = vadd.f32 %v1060, %v1085
        %v1100 = vadd.f32 %v1061, %v1085
        %v1101 = vadd.f32 %v1062, %v1085
        %v1102 = vadd.f32 %v1063, %v1085
        %v1103 = vadd.f32 %v1064, %v1085
        %v1104 = vadd.f32 %v1065, %v1085
        %v1105 = vadd.f32 %v1066, %v1085
        %v1106 = vadd.f32 %v1067, %v1085
        %v1107 = vadd.f32 %v1068, %v1085
        %v1108 = vadd.f32 %v1069, %v1085
        %v1109 = vadd.f32 %v1070, %v1085
        %v1110 = vadd.f32 %v1071, %v1085
        %v1111 = vadd.f32 %v1072, %v1085
        %v1112 = vadd.f32 %v1073, %v1085
        %v1113 = vadd.f32 %v1074, %v1085
        %v1114 = vadd.f32 %v1075, %v1085
        %v1115 = vadd.f32 %v1076, %v1085
        %v1116 = vadd.f32 %v1077, %v1085
        %v1117 = vadd.f32 %v1078, %v1085
        %v1118 = vadd.f32 %v1079, %v1085
        %v1119 = vpack.c.bf16 %v1088, %v1087
        %v1120 = vpack.c.bf16 %v1090, %v1089
        %v1121 = vpack.c.bf16 %v1092, %v1091
        %v1122 = vpack.c.bf16 %v1094, %v1093
        %v1123 = vpack.c.bf16 %v1096, %v1095
        %v1124 = vpack.c.bf16 %v1098, %v1097
        %v1125 = vpack.c.bf16 %v1100, %v1099
        %v1126 = vpack.c.bf16 %v1102, %v1101
        %v1127 = vpack.c.bf16 %v1104, %v1103
        %v1128 = vpack.c.bf16 %v1106, %v1105
        %v1129 = vpack.c.bf16 %v1108, %v1107
        %v1130 = vpack.c.bf16 %v1110, %v1109
        %v1131 = vpack.c.bf16 %v1112, %v1111
        %v1132 = vpack.c.bf16 %v1114, %v1113
        %v1133 = vpack.c.bf16 %v1116, %v1115
        %v1134 = vpack.c.bf16 %v1118, %v1117
        %v1135 = vld [vmem:[%s5] sm:$0xf]
        %v1136 = vld [vmem:[%s5 + $0x4] sm:$0xf]
        %v1137 = vld [vmem:[%s5 + $0x8] sm:$0xf]
        %v1138 = vld [vmem:[%s5 + $0xc] sm:$0xf]
        %v1139 = vld [vmem:[%s5 + $0x10] sm:$0xf]
        %v1140 = vld [vmem:[%s5 + $0x14] sm:$0xf]
        %v1141 = vld [vmem:[%s5 + $0x18] sm:$0xf]
        %v1142 = vld [vmem:[%s5 + $0x1c] sm:$0xf]
        %v1143 = vld [vmem:[%s5 + $0x20] sm:$0xf]
        %v1144 = vld [vmem:[%s5 + $0x24] sm:$0xf]
        %v1145 = vld [vmem:[%s5 + $0x28] sm:$0xf]
        %v1146 = vld [vmem:[%s5 + $0x2c] sm:$0xf]
        %v1147 = vld [vmem:[%s5 + $0x30] sm:$0xf]
        %v1148 = vld [vmem:[%s5 + $0x34] sm:$0xf]
        %v1149 = vld [vmem:[%s5 + $0x38] sm:$0xf]
        %v1150 = vld [vmem:[%s5 + $0x3c] sm:$0xf]
        %v1151 = vld [vmem:[%s6] sm:$0x1]
        %v1153 = vlaneseq
        %v1154 = vshrl.u32 %v1153, 7
        %v1155 = vsub.s32 0, %v1154
        %v1156 = vrot.slane %v1151, %v1155
        %v1174 = vunpack.c.l.b16 %v1135
        %v1175 = vunpack.c.l.b16 %v1136
        %v1176 = vunpack.c.l.b16 %v1137
        %v1177 = vunpack.c.l.b16 %v1138
        %v1178 = vunpack.c.l.b16 %v1139
        %v1179 = vunpack.c.l.b16 %v1140
        %v1180 = vunpack.c.l.b16 %v1141
        %v1181 = vunpack.c.l.b16 %v1142
        %v1182 = vunpack.c.l.b16 %v1143
        %v1183 = vunpack.c.l.b16 %v1144
        %v1184 = vunpack.c.l.b16 %v1145
        %v1185 = vunpack.c.l.b16 %v1146
        %v1186 = vunpack.c.l.b16 %v1147
        %v1187 = vunpack.c.l.b16 %v1148
        %v1188 = vunpack.c.l.b16 %v1149
        %v1189 = vunpack.c.l.b16 %v1150
        %v1190 = vpack.c.b16 %v1175, %v1174
        %v1191 = vpack.c.b16 %v1177, %v1176
        %v1192 = vpack.c.b16 %v1179, %v1178
        %v1193 = vpack.c.b16 %v1181, %v1180
        %v1194 = vpack.c.b16 %v1183, %v1182
        %v1195 = vpack.c.b16 %v1185, %v1184
        %v1196 = vpack.c.b16 %v1187, %v1186
        %v1197 = vpack.c.b16 %v1189, %v1188
        %1206 = vmatprep.subr.bf16.mxu0 0
        %1207 = vmatpush1.bf16.msra.mxu0 %v1190
        %1208 = vmatprep.subr.bf16.mxu0 0
        %1209 = vmatpush1.bf16.msra.mxu0 %v1191
        %1210 = vmatprep.subr.bf16.mxu0 0
        %1211 = vmatpush1.bf16.msra.mxu0 %v1192
        %1212 = vmatprep.subr.bf16.mxu0 0
        %1213 = vmatpush1.bf16.msra.mxu0 %v1193
        %1214 = vmatprep.subr.bf16.mxu0 0
        %1215 = vmatpush1.bf16.msra.mxu0 %v1194
        %1216 = vmatprep.subr.bf16.mxu0 0
        %1217 = vmatpush1.bf16.msra.mxu0 %v1195
        %1218 = vmatprep.subr.bf16.mxu0 0
        %1219 = vmatpush1.bf16.msra.mxu0 %v1196
        %1220 = vmatprep.subr.bf16.mxu0 0
        %1221 = vmatpush1.bf16.msra.mxu0 %v1197
        %1222 = vmatprep.subr.bf16.mxu0 0
        %1223 = vmatpush1.bf16.msra.mxu0 0
        %1224 = vmatprep.subr.bf16.mxu0 0
        %1225 = vmatpush1.bf16.msra.mxu0 0
        %1226 = vmatprep.subr.bf16.mxu0 0
        %1227 = vmatpush1.bf16.msra.mxu0 0
        %1228 = vmatprep.subr.bf16.mxu0 0
        %1229 = vmatpush1.bf16.msra.mxu0 0
        %1230 = vmatprep.subr.bf16.mxu0 0
        %1231 = vmatpush1.bf16.msra.mxu0 0
        %1232 = vmatprep.subr.bf16.mxu0 0
        %1233 = vmatpush1.bf16.msra.mxu0 0
        %1234 = vmatprep.subr.bf16.mxu0 0
        %1235 = vmatpush1.bf16.msra.mxu0 0
        %1236 = vmatprep.subr.bf16.mxu0 0
        %1237 = vmatpush1.bf16.msra.mxu0 0
        %1238 = vmatprep.mubr.bf16.mxu0 0
        %1239 = vmatmul.mubr.bf16.gmra.mrb[0].mxu0 %v1119
        %v1240 = vpop.f32.mrb[0].mxu0
        %v1241 = vadd.f32 %v1156, %v1240
        %v1242 = vpop.f32.mrb[0].mxu0
        %v1243 = vpop.f32.mrb[0].mxu0
        %v1244 = vadd.f32 %v1156, %v1243
        %v1245 = vpop.f32.mrb[0].mxu0
        %1246 = vmatprep.mubr.bf16.mxu0 0
        %1247 = vmatmul.mubr.bf16.gmra.mrb[0].mxu0 %v1120
        %v1248 = vpop.f32.mrb[0].mxu0
        %v1249 = vadd.f32 %v1156, %v1248
        %v1250 = vpop.f32.mrb[0].mxu0
        %v1251 = vpop.f32.mrb[0].mxu0
        %v1252 = vadd.f32 %v1156, %v1251
        %v1253 = vpop.f32.mrb[0].mxu0
        %1254 = vmatprep.mubr.bf16.mxu0 0
        %1255 = vmatmul.mubr.bf16.gmra.mrb[0].mxu0 %v1121
        %v1256 = vpop.f32.mrb[0].mxu0
        %v1257 = vadd.f32 %v1156, %v1256
        %v1258 = vpop.f32.mrb[0].mxu0
        %v1259 = vpop.f32.mrb[0].mxu0
        %v1260 = vadd.f32 %v1156, %v1259
        %v1261 = vpop.f32.mrb[0].mxu0
        %1262 = vmatprep.mubr.bf16.mxu0 0
        %1263 = vmatmul.mubr.bf16.gmra.mrb[0].mxu0 %v1122
        %v1264 = vpop.f32.mrb[0].mxu0
        %v1265 = vadd.f32 %v1156, %v1264
        %v1266 = vpop.f32.mrb[0].mxu0
        %v1267 = vpop.f32.mrb[0].mxu0
        %v1268 = vadd.f32 %v1156, %v1267
        %v1269 = vpop.f32.mrb[0].mxu0
        %1270 = vmatprep.mubr.bf16.mxu0 0
        %1271 = vmatmul.mubr.bf16.gmra.mrb[0].mxu0 %v1123
        %v1272 = vpop.f32.mrb[0].mxu0
        %v1273 = vadd.f32 %v1156, %v1272
        %v1274 = vpop.f32.mrb[0].mxu0
        %v1275 = vpop.f32.mrb[0].mxu0
        %v1276 = vadd.f32 %v1156, %v1275
        %v1277 = vpop.f32.mrb[0].mxu0
        %1278 = vmatprep.mubr.bf16.mxu0 0
        %1279 = vmatmul.mubr.bf16.gmra.mrb[0].mxu0 %v1124
        %v1280 = vpop.f32.mrb[0].mxu0
        %v1281 = vadd.f32 %v1156, %v1280
        %v1282 = vpop.f32.mrb[0].mxu0
        %v1283 = vpop.f32.mrb[0].mxu0
        %v1284 = vadd.f32 %v1156, %v1283
        %v1285 = vpop.f32.mrb[0].mxu0
        %1286 = vmatprep.mubr.bf16.mxu0 0
        %1287 = vmatmul.mubr.bf16.gmra.mrb[0].mxu0 %v1125
        %v1288 = vpop.f32.mrb[0].mxu0
        %v1289 = vadd.f32 %v1156, %v1288
        %v1290 = vpop.f32.mrb[0].mxu0
        %v1291 = vpop.f32.mrb[0].mxu0
        %v1292 = vadd.f32 %v1156, %v1291
        %v1293 = vpop.f32.mrb[0].mxu0
        %1294 = vmatprep.mubr.bf16.mxu0 0
        %1295 = vmatmul.mubr.bf16.gmra.mrb[0].mxu0 %v1126
        %v1296 = vpop.f32.mrb[0].mxu0
        %v1297 = vadd.f32 %v1156, %v1296
        %v1298 = vpop.f32.mrb[0].mxu0
        %v1299 = vpop.f32.mrb[0].mxu0
        %v1300 = vadd.f32 %v1156, %v1299
        %v1301 = vpop.f32.mrb[0].mxu0
        %1302 = vmatprep.mubr.bf16.mxu0 0
        %1303 = vmatmul.mubr.bf16.gmra.mrb[0].mxu0 %v1127
        %v1304 = vpop.f32.mrb[0].mxu0
        %v1305 = vadd.f32 %v1156, %v1304
        %v1306 = vpop.f32.mrb[0].mxu0
        %v1307 = vpop.f32.mrb[0].mxu0
        %v1308 = vadd.f32 %v1156, %v1307
        %v1309 = vpop.f32.mrb[0].mxu0
        %1310 = vmatprep.mubr.bf16.mxu0 0
        %1311 = vmatmul.mubr.bf16.gmra.mrb[0].mxu0 %v1128
        %v1312 = vpop.f32.mrb[0].mxu0
        %v1313 = vadd.f32 %v1156, %v1312
        %v1314 = vpop.f32.mrb[0].mxu0
        %v1315 = vpop.f32.mrb[0].mxu0
        %v1316 = vadd.f32 %v1156, %v1315
        %v1317 = vpop.f32.mrb[0].mxu0
        %1318 = vmatprep.mubr.bf16.mxu0 0
        %1319 = vmatmul.mubr.bf16.gmra.mrb[0].mxu0 %v1129
        %v1320 = vpop.f32.mrb[0].mxu0
        %v1321 = vadd.f32 %v1156, %v1320
        %v1322 = vpop.f32.mrb[0].mxu0
        %v1323 = vpop.f32.mrb[0].mxu0
        %v1324 = vadd.f32 %v1156, %v1323
        %v1325 = vpop.f32.mrb[0].mxu0
        %1326 = vmatprep.mubr.bf16.mxu0 0
        %1327 = vmatmul.mubr.bf16.gmra.mrb[0].mxu0 %v1130
        %v1328 = vpop.f32.mrb[0].mxu0
        %v1329 = vadd.f32 %v1156, %v1328
        %v1330 = vpop.f32.mrb[0].mxu0
        %v1331 = vpop.f32.mrb[0].mxu0
        %v1332 = vadd.f32 %v1156, %v1331
        %v1333 = vpop.f32.mrb[0].mxu0
        %1334 = vmatprep.mubr.bf16.mxu0 0
        %1335 = vmatmul.mubr.bf16.gmra.mrb[0].mxu0 %v1131
        %v1336 = vpop.f32.mrb[0].mxu0
        %v1337 = vadd.f32 %v1156, %v1336
        %v1338 = vpop.f32.mrb[0].mxu0
        %v1339 = vpop.f32.mrb[0].mxu0
        %v1340 = vadd.f32 %v1156, %v1339
        %v1341 = vpop.f32.mrb[0].mxu0
        %1342 = vmatprep.mubr.bf16.mxu0 0
        %1343 = vmatmul.mubr.bf16.gmra.mrb[0].mxu0 %v1132
        %v1344 = vpop.f32.mrb[0].mxu0
        %v1345 = vadd.f32 %v1156, %v1344
        %v1346 = vpop.f32.mrb[0].mxu0
        %v1347 = vpop.f32.mrb[0].mxu0
        %v1348 = vadd.f32 %v1156, %v1347
        %v1349 = vpop.f32.mrb[0].mxu0
        %1350 = vmatprep.mubr.bf16.mxu0 0
        %1351 = vmatmul.mubr.bf16.gmra.mrb[0].mxu0 %v1133
        %v1352 = vpop.f32.mrb[0].mxu0
        %v1353 = vadd.f32 %v1156, %v1352
        %v1354 = vpop.f32.mrb[0].mxu0
        %v1355 = vpop.f32.mrb[0].mxu0
        %v1356 = vadd.f32 %v1156, %v1355
        %v1357 = vpop.f32.mrb[0].mxu0
        %1358 = vmatprep.mubr.bf16.mxu0 0
        %1359 = vmatmul.mubr.bf16.gmra.mrb[0].mxu0 %v1134
        %v1360 = vpop.f32.mrb[0].mxu0
        %v1361 = vadd.f32 %v1156, %v1360
        %v1362 = vpop.f32.mrb[0].mxu0
        %v1363 = vpop.f32.mrb[0].mxu0
        %v1364 = vadd.f32 %v1156, %v1363
        %v1365 = vpop.f32.mrb[0].mxu0
        %1366 = vdwg.mxu0
        %v1367 = vpack.c.bf16 %v1244, %v1241
        %v1368 = vpack.c.bf16 %v1252, %v1249
        %v1369 = vpack.c.bf16 %v1260, %v1257
        %v1370 = vpack.c.bf16 %v1268, %v1265
        %v1371 = vpack.c.bf16 %v1276, %v1273
        %v1372 = vpack.c.bf16 %v1284, %v1281
        %v1373 = vpack.c.bf16 %v1292, %v1289
        %v1374 = vpack.c.bf16 %v1300, %v1297
        %v1375 = vpack.c.bf16 %v1308, %v1305
        %v1376 = vpack.c.bf16 %v1316, %v1313
        %v1377 = vpack.c.bf16 %v1324, %v1321
        %v1378 = vpack.c.bf16 %v1332, %v1329
        %v1379 = vpack.c.bf16 %v1340, %v1337
        %v1380 = vpack.c.bf16 %v1348, %v1345
        %v1381 = vpack.c.bf16 %v1356, %v1353
        %v1382 = vpack.c.bf16 %v1364, %v1361
        %v1399 = vunpack.c.l.b16 %v1367
        %v1400 = vunpack.c.h.b16 %v1367
        %v1401 = vunpack.c.l.b16 %v1368
        %v1402 = vunpack.c.h.b16 %v1368
        %v1403 = vunpack.c.l.b16 %v1369
        %v1404 = vunpack.c.h.b16 %v1369
        %v1405 = vunpack.c.l.b16 %v1370
        %v1406 = vunpack.c.h.b16 %v1370
        %v1407 = vunpack.c.l.b16 %v1371
        %v1408 = vunpack.c.h.b16 %v1371
        %v1409 = vunpack.c.l.b16 %v1372
        %v1410 = vunpack.c.h.b16 %v1372
        %v1411 = vunpack.c.l.b16 %v1373
        %v1412 = vunpack.c.h.b16 %v1373
        %v1413 = vunpack.c.l.b16 %v1374
        %v1414 = vunpack.c.h.b16 %v1374
        %v1415 = vunpack.c.l.b16 %v1375
        %v1416 = vunpack.c.h.b16 %v1375
        %v1417 = vunpack.c.l.b16 %v1376
        %v1418 = vunpack.c.h.b16 %v1376
        %v1419 = vunpack.c.l.b16 %v1377
        %v1420 = vunpack.c.h.b16 %v1377
        %v1421 = vunpack.c.l.b16 %v1378
        %v1422 = vunpack.c.h.b16 %v1378
        %v1423 = vunpack.c.l.b16 %v1379
        %v1424 = vunpack.c.h.b16 %v1379
        %v1425 = vunpack.c.l.b16 %v1380
        %v1426 = vunpack.c.h.b16 %v1380
        %v1427 = vunpack.c.l.b16 %v1381
        %v1428 = vunpack.c.h.b16 %v1381
        %v1429 = vunpack.c.l.b16 %v1382
        %v1430 = vunpack.c.h.b16 %v1382
        %v1431 = vpack.c.b16 %v1399, %v1399
        %v1432 = vpack.c.b16 %v1400, %v1400
        %v1433 = vpack.c.b16 %v1401, %v1401
        %v1434 = vpack.c.b16 %v1402, %v1402
        %v1435 = vpack.c.b16 %v1403, %v1403
        %v1436 = vpack.c.b16 %v1404, %v1404
        %v1437 = vpack.c.b16 %v1405, %v1405
        %v1438 = vpack.c.b16 %v1406, %v1406
        %v1439 = vpack.c.b16 %v1407, %v1407
        %v1440 = vpack.c.b16 %v1408, %v1408
        %v1441 = vpack.c.b16 %v1409, %v1409
        %v1442 = vpack.c.b16 %v1410, %v1410
        %v1443 = vpack.c.b16 %v1411, %v1411
        %v1444 = vpack.c.b16 %v1412, %v1412
        %v1445 = vpack.c.b16 %v1413, %v1413
        %v1446 = vpack.c.b16 %v1414, %v1414
        %v1447 = vpack.c.b16 %v1415, %v1415
        %v1448 = vpack.c.b16 %v1416, %v1416
        %v1449 = vpack.c.b16 %v1417, %v1417
        %v1450 = vpack.c.b16 %v1418, %v1418
        %v1451 = vpack.c.b16 %v1419, %v1419
        %v1452 = vpack.c.b16 %v1420, %v1420
        %v1453 = vpack.c.b16 %v1421, %v1421
        %v1454 = vpack.c.b16 %v1422, %v1422
        %v1455 = vpack.c.b16 %v1423, %v1423
        %v1456 = vpack.c.b16 %v1424, %v1424
        %v1457 = vpack.c.b16 %v1425, %v1425
        %v1458 = vpack.c.b16 %v1426, %v1426
        %v1459 = vpack.c.b16 %v1427, %v1427
        %v1460 = vpack.c.b16 %v1428, %v1428
        %v1461 = vpack.c.b16 %v1429, %v1429
        %v1462 = vpack.c.b16 %v1430, %v1430
        %1495 = vst [vmem:[%s308] sm:$0xf] %v1431
        %1496 = vst [vmem:[%s308 + $0x4] sm:$0xf] %v1432
        %1497 = vst [vmem:[%s308 + $0x8] sm:$0xf] %v1433
        %1498 = vst [vmem:[%s308 + $0xc] sm:$0xf] %v1434
        %1499 = vst [vmem:[%s308 + $0x10] sm:$0xf] %v1435
        %1500 = vst [vmem:[%s308 + $0x14] sm:$0xf] %v1436
        %1501 = vst [vmem:[%s308 + $0x18] sm:$0xf] %v1437
        %1502 = vst [vmem:[%s308 + $0x1c] sm:$0xf] %v1438
        %1503 = vst [vmem:[%s308 + $0x20] sm:$0xf] %v1439
        %1504 = vst [vmem:[%s308 + $0x24] sm:$0xf] %v1440
        %1505 = vst [vmem:[%s308 + $0x28] sm:$0xf] %v1441
        %1506 = vst [vmem:[%s308 + $0x2c] sm:$0xf] %v1442
        %1507 = vst [vmem:[%s308 + $0x30] sm:$0xf] %v1443
        %1508 = vst [vmem:[%s308 + $0x34] sm:$0xf] %v1444
        %1509 = vst [vmem:[%s308 + $0x38] sm:$0xf] %v1445
        %1510 = vst [vmem:[%s308 + $0x3c] sm:$0xf] %v1446
        %1511 = vst [vmem:[%s308 + $0x40] sm:$0xf] %v1447
        %1512 = vst [vmem:[%s308 + $0x44] sm:$0xf] %v1448
        %1513 = vst [vmem:[%s308 + $0x48] sm:$0xf] %v1449
        %1514 = vst [vmem:[%s308 + $0x4c] sm:$0xf] %v1450
        %1515 = vst [vmem:[%s308 + $0x50] sm:$0xf] %v1451
        %1516 = vst [vmem:[%s308 + $0x54] sm:$0xf] %v1452
        %1517 = vst [vmem:[%s308 + $0x58] sm:$0xf] %v1453
        %1518 = vst [vmem:[%s308 + $0x5c] sm:$0xf] %v1454
        %1519 = vst [vmem:[%s308 + $0x60] sm:$0xf] %v1455
        %1520 = vst [vmem:[%s308 + $0x64] sm:$0xf] %v1456
        %1521 = vst [vmem:[%s308 + $0x68] sm:$0xf] %v1457
        %1522 = vst [vmem:[%s308 + $0x6c] sm:$0xf] %v1458
        %1523 = vst [vmem:[%s308 + $0x70] sm:$0xf] %v1459
        %1524 = vst [vmem:[%s308 + $0x74] sm:$0xf] %v1460
        %1525 = vst [vmem:[%s308 + $0x78] sm:$0xf] %v1461
        %1526 = vst [vmem:[%s308 + $0x7c] sm:$0xf] %v1462
        %p1527 = scmp.ne.s32.totalorder %s20, 1
        // Predicated region
        $region49: #{binary_head_forward.2} parent=47 // pred_check
          %p1528 = pneg %p1527
        $region50: #{binary_head_forward.2} parent=47 // pred_check_branch
          %1530 = sbr.rel (%p1528) target = $region52
        $region51: #{binary_head_forward.2} parent=47 // pred_region
          %v1531 = vadd.f32 %v1241, %v1244
          %v1532 = vadd.f32 %v1531, %v1249
          %v1533 = vadd.f32 %v1532, %v1252
          %v1534 = vadd.f32 %v1533, %v1257
          %v1535 = vadd.f32 %v1534, %v1260
          %v1536 = vadd.f32 %v1535, %v1265
          %v1537 = vadd.f32 %v1536, %v1268
          %v1538 = vadd.f32 %v1537, %v1273
          %v1539 = vadd.f32 %v1538, %v1276
          %v1540 = vadd.f32 %v1539, %v1281
          %v1541 = vadd.f32 %v1540, %v1284
          %v1542 = vadd.f32 %v1541, %v1289
          %v1543 = vadd.f32 %v1542, %v1292
          %v1544 = vadd.f32 %v1543, %v1297
          %v1545 = vadd.f32 %v1544, %v1300
          %v1546 = vadd.f32 %v1545, %v1305
          %v1547 = vadd.f32 %v1546, %v1308
          %v1548 = vadd.f32 %v1547, %v1313
          %v1549 = vadd.f32 %v1548, %v1316
          %v1550 = vadd.f32 %v1549, %v1321
          %v1551 = vadd.f32 %v1550, %v1324
          %v1552 = vadd.f32 %v1551, %v1329
          %v1553 = vadd.f32 %v1552, %v1332
          %v1554 = vadd.f32 %v1553, %v1337
          %v1555 = vadd.f32 %v1554, %v1340
          %v1556 = vadd.f32 %v1555, %v1345
          %v1557 = vadd.f32 %v1556, %v1348
          %v1558 = vadd.f32 %v1557, %v1353
          %v1559 = vadd.f32 %v1558, %v1356
          %v1560 = vadd.f32 %v1559, %v1361
          %v1561 = vadd.f32 %v1560, %v1364
          %v1562 = vrot.slane %v1561, 4
          %v1563 = vadd.f32 %v1561, %v1562
          %v1564 = vrot.slane %v1563, 2
          %v1565 = vadd.f32 %v1563, %v1564
          %v1566 = vrot.slane %v1565, 1
          %v1567 = vadd.f32 %v1565, %v1566
          %v1568 = vmul.f32 %v1567, 0.00390625
          %v1569 = vsub.f32 %v1241, %v1568
          %v1570 = vsub.f32 %v1244, %v1568
          %v1571 = vsub.f32 %v1249, %v1568
          %v1572 = vsub.f32 %v1252, %v1568
          %v1573 = vsub.f32 %v1257, %v1568
          %v1574 = vsub.f32 %v1260, %v1568
          %v1575 = vsub.f32 %v1265, %v1568
          %v1576 = vsub.f32 %v1268, %v1568
          %v1577 = vsub.f32 %v1273, %v1568
          %v1578 = vsub.f32 %v1276, %v1568
          %v1579 = vsub.f32 %v1281, %v1568
          %v1580 = vsub.f32 %v1284, %v1568
          %v1581 = vsub.f32 %v1289, %v1568
          %v1582 = vsub.f32 %v1292, %v1568
          %v1583 = vsub.f32 %v1297, %v1568
          %v1584 = vsub.f32 %v1300, %v1568
          %v1585 = vsub.f32 %v1305, %v1568
          %v1586 = vsub.f32 %v1308, %v1568
          %v1587 = vsub.f32 %v1313, %v1568
          %v1588 = vsub.f32 %v1316, %v1568
          %v1589 = vsub.f32 %v1321, %v1568
          %v1590 = vsub.f32 %v1324, %v1568
          %v1591 = vsub.f32 %v1329, %v1568
          %v1592 = vsub.f32 %v1332, %v1568
          %v1593 = vsub.f32 %v1337, %v1568
          %v1594 = vsub.f32 %v1340, %v1568
          %v1595 = vsub.f32 %v1345, %v1568
          %v1596 = vsub.f32 %v1348, %v1568
          %v1597 = vsub.f32 %v1353, %v1568
          %v1598 = vsub.f32 %v1356, %v1568
          %v1599 = vsub.f32 %v1361, %v1568
          %v1600 = vsub.f32 %v1364, %v1568
          %v1601 = vmul.f32 %v1569, %v1569
          %v1602 = vmul.f32 %v1570, %v1570
          %v1603 = vmul.f32 %v1571, %v1571
          %v1604 = vmul.f32 %v1572, %v1572
          %v1605 = vmul.f32 %v1573, %v1573
          %v1606 = vmul.f32 %v1574, %v1574
          %v1607 = vmul.f32 %v1575, %v1575
          %v1608 = vmul.f32 %v1576, %v1576
          %v1609 = vmul.f32 %v1577, %v1577
          %v1610 = vmul.f32 %v1578, %v1578
          %v1611 = vmul.f32 %v1579, %v1579
          %v1612 = vmul.f32 %v1580, %v1580
          %v1613 = vmul.f32 %v1581, %v1581
          %v1614 = vmul.f32 %v1582, %v1582
          %v1615 = vmul.f32 %v1583, %v1583
          %v1616 = vmul.f32 %v1584, %v1584
          %v1617 = vmul.f32 %v1585, %v1585
          %v1618 = vmul.f32 %v1586, %v1586
          %v1619 = vmul.f32 %v1587, %v1587
          %v1620 = vmul.f32 %v1588, %v1588
          %v1621 = vmul.f32 %v1589, %v1589
          %v1622 = vmul.f32 %v1590, %v1590
          %v1623 = vmul.f32 %v1591, %v1591
          %v1624 = vmul.f32 %v1592, %v1592
          %v1625 = vmul.f32 %v1593, %v1593
          %v1626 = vmul.f32 %v1594, %v1594
          %v1627 = vmul.f32 %v1595, %v1595
          %v1628 = vmul.f32 %v1596, %v1596
          %v1629 = vmul.f32 %v1597, %v1597
          %v1630 = vmul.f32 %v1598, %v1598
          %v1631 = vmul.f32 %v1599, %v1599
          %v1632 = vmul.f32 %v1600, %v1600
          %v1633 = vadd.f32 %v1601, %v1602
          %v1634 = vadd.f32 %v1633, %v1603
          %v1635 = vadd.f32 %v1634, %v1604
          %v1636 = vadd.f32 %v1635, %v1605
          %v1637 = vadd.f32 %v1636, %v1606
          %v1638 = vadd.f32 %v1637, %v1607
          %v1639 = vadd.f32 %v1638, %v1608
          %v1640 = vadd.f32 %v1639, %v1609
          %v1641 = vadd.f32 %v1640, %v1610
          %v1642 = vadd.f32 %v1641, %v1611
          %v1643 = vadd.f32 %v1642, %v1612
          %v1644 = vadd.f32 %v1643, %v1613
          %v1645 = vadd.f32 %v1644, %v1614
          %v1646 = vadd.f32 %v1645, %v1615
          %v1647 = vadd.f32 %v1646, %v1616
          %v1648 = vadd.f32 %v1647, %v1617
          %v1649 = vadd.f32 %v1648, %v1618
          %v1650 = vadd.f32 %v1649, %v1619
          %v1651 = vadd.f32 %v1650, %v1620
          %v1652 = vadd.f32 %v1651, %v1621
          %v1653 = vadd.f32 %v1652, %v1622
          %v1654 = vadd.f32 %v1653, %v1623
          %v1655 = vadd.f32 %v1654, %v1624
          %v1656 = vadd.f32 %v1655, %v1625
          %v1657 = vadd.f32 %v1656, %v1626
          %v1658 = vadd.f32 %v1657, %v1627
          %v1659 = vadd.f32 %v1658, %v1628
          %v1660 = vadd.f32 %v1659, %v1629
          %v1661 = vadd.f32 %v1660, %v1630
          %v1662 = vadd.f32 %v1661, %v1631
          %v1663 = vadd.f32 %v1662, %v1632
          %v1664 = vrot.slane %v1663, 4
          %v1665 = vadd.f32 %v1663, %v1664
          %v1666 = vrot.slane %v1665, 2
          %v1667 = vadd.f32 %v1665, %v1666
          %v1668 = vrot.slane %v1667, 1
          %v1669 = vadd.f32 %v1667, %v1668
          %vm1670 = vcmask 1040384
          %v1671 = vsel %vm1670, %v1567, %v1669
          %vm1672 = vcmask 1041408
          %v1673 = vsel %vm1672, %v1671, 0.0
          %1674 = vst [vmem:[%s337] sm:$0xff] %v1673
        $region52: #{binary_head_forward.2} parent=47 // pred_fallthru
          _
        %p1675 = scmp.eq.s32.totalorder %s20, 1
        // Predicated region
        $region53: #{binary_head_forward.2} parent=47 // pred_check
          %p1676 = pneg %p1675
        $region54: #{binary_head_forward.2} parent=47 // pred_check_branch
          %1678 = sbr.rel (%p1676) target = $region56
        $region55: #{binary_head_forward.2} parent=47 // pred_region
          %v1679 = vlaneseq
          %v1680 = vshrl.u32 %v1679, 7
          %v1681 = vadd.s32 %v1680, 8
          %v1682 = vadd.s32 %v1680, 16
          %v1683 = vadd.s32 %v1680, 24
          %v1684 = vadd.s32 %v1680, 32
          %v1685 = vadd.s32 %v1680, 40
          %v1686 = vadd.s32 %v1680, 48
          %v1687 = vadd.s32 %v1680, 56
          %v1688 = vadd.s32 %v1680, 64
          %v1689 = vadd.s32 %v1680, 72
          %v1690 = vadd.s32 %v1680, 80
          %v1691 = vadd.s32 %v1680, 88
          %v1692 = vadd.s32 %v1680, 96
          %v1693 = vadd.s32 %v1680, 104
          %v1694 = vadd.s32 %v1680, 112
          %v1695 = vadd.s32 %v1680, 120
          %v1696 = vadd.s32 %v1680, 128
          %v1697 = vadd.s32 %v1680, 136
          %v1698 = vadd.s32 %v1680, 144
          %v1699 = vadd.s32 %v1680, 152
          %v1700 = vadd.s32 %v1680, 160
          %v1701 = vadd.s32 %v1680, 168
          %v1702 = vadd.s32 %v1680, 176
          %v1703 = vadd.s32 %v1680, 184
          %v1704 = vadd.s32 %v1680, 192
          %v1705 = vadd.s32 %v1680, 200
          %v1706 = vadd.s32 %v1680, 208
          %v1707 = vadd.s32 %v1680, 216
          %v1708 = vadd.s32 %v1680, 224
          %v1709 = vadd.s32 %v1680, 232
          %v1710 = vadd.s32 %v1680, 240
          %v1711 = vadd.s32 %v1680, 248
          %vm1712 = vcmp.lt.s32.totalorder %v1680, 244
          %vm1713 = vcmp.lt.s32.totalorder %v1681, 244
          %vm1714 = vcmp.lt.s32.totalorder %v1682, 244
          %vm1715 = vcmp.lt.s32.totalorder %v1683, 244
          %vm1716 = vcmp.lt.s32.totalorder %v1684, 244
          %vm1717 = vcmp.lt.s32.totalorder %v1685, 244
          %vm1718 = vcmp.lt.s32.totalorder %v1686, 244
          %vm1719 = vcmp.lt.s32.totalorder %v1687, 244
          %vm1720 = vcmp.lt.s32.totalorder %v1688, 244
          %vm1721 = vcmp.lt.s32.totalorder %v1689, 244
          %vm1722 = vcmp.lt.s32.totalorder %v1690, 244
          %vm1723 = vcmp.lt.s32.totalorder %v1691, 244
          %vm1724 = vcmp.lt.s32.totalorder %v1692, 244
          %vm1725 = vcmp.lt.s32.totalorder %v1693, 244
          %vm1726 = vcmp.lt.s32.totalorder %v1694, 244
          %vm1727 = vcmp.lt.s32.totalorder %v1695, 244
          %vm1728 = vcmp.lt.s32.totalorder %v1696, 244
          %vm1729 = vcmp.lt.s32.totalorder %v1697, 244
          %vm1730 = vcmp.lt.s32.totalorder %v1698, 244
          %vm1731 = vcmp.lt.s32.totalorder %v1699, 244
          %vm1732 = vcmp.lt.s32.totalorder %v1700, 244
          %vm1733 = vcmp.lt.s32.totalorder %v1701, 244
          %vm1734 = vcmp.lt.s32.totalorder %v1702, 244
          %vm1735 = vcmp.lt.s32.totalorder %v1703, 244
          %vm1736 = vcmp.lt.s32.totalorder %v1704, 244
          %vm1737 = vcmp.lt.s32.totalorder %v1705, 244
          %vm1738 = vcmp.lt.s32.totalorder %v1706, 244
          %vm1739 = vcmp.lt.s32.totalorder %v1707, 244
          %vm1740 = vcmp.lt.s32.totalorder %v1708, 244
          %vm1741 = vcmp.lt.s32.totalorder %v1709, 244
          %vm1742 = vcmp.lt.s32.totalorder %v1710, 244
          %vm1743 = vcmp.lt.s32.totalorder %v1711, 244
          %v1744 = vsel %vm1712, 1, 0
          %v1745 = vsel %vm1713, 1, 0
          %v1746 = vsel %vm1714, 1, 0
          %v1747 = vsel %vm1715, 1, 0
          %v1748 = vsel %vm1716, 1, 0
          %v1749 = vsel %vm1717, 1, 0
          %v1750 = vsel %vm1718, 1, 0
          %v1751 = vsel %vm1719, 1, 0
          %v1752 = vsel %vm1720, 1, 0
          %v1753 = vsel %vm1721, 1, 0
          %v1754 = vsel %vm1722, 1, 0
          %v1755 = vsel %vm1723, 1, 0
          %v1756 = vsel %vm1724, 1, 0
          %v1757 = vsel %vm1725, 1, 0
          %v1758 = vsel %vm1726, 1, 0
          %v1759 = vsel %vm1727, 1, 0
          %v1760 = vsel %vm1728, 1, 0
          %v1761 = vsel %vm1729, 1, 0
          %v1762 = vsel %vm1730, 1, 0
          %v1763 = vsel %vm1731, 1, 0
          %v1764 = vsel %vm1732, 1, 0
          %v1765 = vsel %vm1733, 1, 0
          %v1766 = vsel %vm1734, 1, 0
          %v1767 = vsel %vm1735, 1, 0
          %v1768 = vsel %vm1736, 1, 0
          %v1769 = vsel %vm1737, 1, 0
          %v1770 = vsel %vm1738, 1, 0
          %v1771 = vsel %vm1739, 1, 0
          %v1772 = vsel %vm1740, 1, 0
          %v1773 = vsel %vm1741, 1, 0
          %v1774 = vsel %vm1742, 1, 0
          %v1775 = vsel %vm1743, 1, 0
          %vm1776 = vcmp.eq.s32.totalorder %v1744, 1
          %vm1777 = vcmp.eq.s32.totalorder %v1745, 1
          %vm1778 = vcmp.eq.s32.totalorder %v1746, 1
          %vm1779 = vcmp.eq.s32.totalorder %v1747, 1
          %vm1780 = vcmp.eq.s32.totalorder %v1748, 1
          %vm1781 = vcmp.eq.s32.totalorder %v1749, 1
          %vm1782 = vcmp.eq.s32.totalorder %v1750, 1
          %vm1783 = vcmp.eq.s32.totalorder %v1751, 1
          %vm1784 = vcmp.eq.s32.totalorder %v1752, 1
          %vm1785 = vcmp.eq.s32.totalorder %v1753, 1
          %vm1786 = vcmp.eq.s32.totalorder %v1754, 1
          %vm1787 = vcmp.eq.s32.totalorder %v1755, 1
          %vm1788 = vcmp.eq.s32.totalorder %v1756, 1
          %vm1789 = vcmp.eq.s32.totalorder %v1757, 1
          %vm1790 = vcmp.eq.s32.totalorder %v1758, 1
          %vm1791 = vcmp.eq.s32.totalorder %v1759, 1
          %vm1792 = vcmp.eq.s32.totalorder %v1760, 1
          %vm1793 = vcmp.eq.s32.totalorder %v1761, 1
          %vm1794 = vcmp.eq.s32.totalorder %v1762, 1
          %vm1795 = vcmp.eq.s32.totalorder %v1763, 1
          %vm1796 = vcmp.eq.s32.totalorder %v1764, 1
          %vm1797 = vcmp.eq.s32.totalorder %v1765, 1
          %vm1798 = vcmp.eq.s32.totalorder %v1766, 1
          %vm1799 = vcmp.eq.s32.totalorder %v1767, 1
          %vm1800 = vcmp.eq.s32.totalorder %v1768, 1
          %vm1801 = vcmp.eq.s32.totalorder %v1769, 1
          %vm1802 = vcmp.eq.s32.totalorder %v1770, 1
          %vm1803 = vcmp.eq.s32.totalorder %v1771, 1
          %vm1804 = vcmp.eq.s32.totalorder %v1772, 1
          %vm1805 = vcmp.eq.s32.totalorder %v1773, 1
          %vm1806 = vcmp.eq.s32.totalorder %v1774, 1
          %vm1807 = vcmp.eq.s32.totalorder %v1775, 1
          %v1808 = vsel %vm1776, %v1241, 0.0
          %v1809 = vsel %vm1777, %v1244, 0.0
          %v1810 = vsel %vm1778, %v1249, 0.0
          %v1811 = vsel %vm1779, %v1252, 0.0
          %v1812 = vsel %vm1780, %v1257, 0.0
          %v1813 = vsel %vm1781, %v1260, 0.0
          %v1814 = vsel %vm1782, %v1265, 0.0
          %v1815 = vsel %vm1783, %v1268, 0.0
          %v1816 = vsel %vm1784, %v1273, 0.0
          %v1817 = vsel %vm1785, %v1276, 0.0
          %v1818 = vsel %vm1786, %v1281, 0.0
          %v1819 = vsel %vm1787, %v1284, 0.0
          %v1820 = vsel %vm1788, %v1289, 0.0
          %v1821 = vsel %vm1789, %v1292, 0.0
          %v1822 = vsel %vm1790, %v1297, 0.0
          %v1823 = vsel %vm1791, %v1300, 0.0
          %v1824 = vsel %vm1792, %v1305, 0.0
          %v1825 = vsel %vm1793, %v1308, 0.0
          %v1826 = vsel %vm1794, %v1313, 0.0
          %v1827 = vsel %vm1795, %v1316, 0.0
          %v1828 = vsel %vm1796, %v1321, 0.0
          %v1829 = vsel %vm1797, %v1324, 0.0
          %v1830 = vsel %vm1798, %v1329, 0.0
          %v1831 = vsel %vm1799, %v1332, 0.0
          %v1832 = vsel %vm1800, %v1337, 0.0
          %v1833 = vsel %vm1801, %v1340, 0.0
          %v1834 = vsel %vm1802, %v1345, 0.0
          %v1835 = vsel %vm1803, %v1348, 0.0
          %v1836 = vsel %vm1804, %v1353, 0.0
          %v1837 = vsel %vm1805, %v1356, 0.0
          %v1838 = vsel %vm1806, %v1361, 0.0
          %v1839 = vsel %vm1807, %v1364, 0.0
          %v1840 = vadd.f32 %v1808, %v1809
          %v1841 = vadd.f32 %v1840, %v1810
          %v1842 = vadd.f32 %v1841, %v1811
          %v1843 = vadd.f32 %v1842, %v1812
          %v1844 = vadd.f32 %v1843, %v1813
          %v1845 = vadd.f32 %v1844, %v1814
          %v1846 = vadd.f32 %v1845, %v1815
          %v1847 = vadd.f32 %v1846, %v1816
          %v1848 = vadd.f32 %v1847, %v1817
          %v1849 = vadd.f32 %v1848, %v1818
          %v1850 = vadd.f32 %v1849, %v1819
          %v1851 = vadd.f32 %v1850, %v1820
          %v1852 = vadd.f32 %v1851, %v1821
          %v1853 = vadd.f32 %v1852, %v1822
          %v1854 = vadd.f32 %v1853, %v1823
          %v1855 = vadd.f32 %v1854, %v1824
          %v1856 = vadd.f32 %v1855, %v1825
          %v1857 = vadd.f32 %v1856, %v1826
          %v1858 = vadd.f32 %v1857, %v1827
          %v1859 = vadd.f32 %v1858, %v1828
          %v1860 = vadd.f32 %v1859, %v1829
          %v1861 = vadd.f32 %v1860, %v1830
          %v1862 = vadd.f32 %v1861, %v1831
          %v1863 = vadd.f32 %v1862, %v1832
          %v1864 = vadd.f32 %v1863, %v1833
          %v1865 = vadd.f32 %v1864, %v1834
          %v1866 = vadd.f32 %v1865, %v1835
          %v1867 = vadd.f32 %v1866, %v1836
          %v1868 = vadd.f32 %v1867, %v1837
          %v1869 = vadd.f32 %v1868, %v1838
          %v1870 = vadd.f32 %v1869, %v1839
          %v1871 = vrot.slane %v1870, 4
          %v1872 = vadd.f32 %v1870, %v1871
          %v1873 = vrot.slane %v1872, 2
          %v1874 = vadd.f32 %v1872, %v1873
          %v1875 = vrot.slane %v1874, 1
          %v1876 = vadd.f32 %v1874, %v1875
          %v1877 = vmul.f32 %v1876, 0.0040983604
          %v1878 = vsub.f32 %v1241, %v1877
          %v1879 = vsub.f32 %v1244, %v1877
          %v1880 = vsub.f32 %v1249, %v1877
          %v1881 = vsub.f32 %v1252, %v1877
          %v1882 = vsub.f32 %v1257, %v1877
          %v1883 = vsub.f32 %v1260, %v1877
          %v1884 = vsub.f32 %v1265, %v1877
          %v1885 = vsub.f32 %v1268, %v1877
          %v1886 = vsub.f32 %v1273, %v1877
          %v1887 = vsub.f32 %v1276, %v1877
          %v1888 = vsub.f32 %v1281, %v1877
          %v1889 = vsub.f32 %v1284, %v1877
          %v1890 = vsub.f32 %v1289, %v1877
          %v1891 = vsub.f32 %v1292, %v1877
          %v1892 = vsub.f32 %v1297, %v1877
          %v1893 = vsub.f32 %v1300, %v1877
          %v1894 = vsub.f32 %v1305, %v1877
          %v1895 = vsub.f32 %v1308, %v1877
          %v1896 = vsub.f32 %v1313, %v1877
          %v1897 = vsub.f32 %v1316, %v1877
          %v1898 = vsub.f32 %v1321, %v1877
          %v1899 = vsub.f32 %v1324, %v1877
          %v1900 = vsub.f32 %v1329, %v1877
          %v1901 = vsub.f32 %v1332, %v1877
          %v1902 = vsub.f32 %v1337, %v1877
          %v1903 = vsub.f32 %v1340, %v1877
          %v1904 = vsub.f32 %v1345, %v1877
          %v1905 = vsub.f32 %v1348, %v1877
          %v1906 = vsub.f32 %v1353, %v1877
          %v1907 = vsub.f32 %v1356, %v1877
          %v1908 = vsub.f32 %v1361, %v1877
          %v1909 = vsub.f32 %v1364, %v1877
          %v1910 = vsel %vm1776, %v1878, 0.0
          %v1911 = vsel %vm1777, %v1879, 0.0
          %v1912 = vsel %vm1778, %v1880, 0.0
          %v1913 = vsel %vm1779, %v1881, 0.0
          %v1914 = vsel %vm1780, %v1882, 0.0
          %v1915 = vsel %vm1781, %v1883, 0.0
          %v1916 = vsel %vm1782, %v1884, 0.0
          %v1917 = vsel %vm1783, %v1885, 0.0
          %v1918 = vsel %vm1784, %v1886, 0.0
          %v1919 = vsel %vm1785, %v1887, 0.0
          %v1920 = vsel %vm1786, %v1888, 0.0
          %v1921 = vsel %vm1787, %v1889, 0.0
          %v1922 = vsel %vm1788, %v1890, 0.0
          %v1923 = vsel %vm1789, %v1891, 0.0
          %v1924 = vsel %vm1790, %v1892, 0.0
          %v1925 = vsel %vm1791, %v1893, 0.0
          %v1926 = vsel %vm1792, %v1894, 0.0
          %v1927 = vsel %vm1793, %v1895, 0.0
          %v1928 = vsel %vm1794, %v1896, 0.0
          %v1929 = vsel %vm1795, %v1897, 0.0
          %v1930 = vsel %vm1796, %v1898, 0.0
          %v1931 = vsel %vm1797, %v1899, 0.0
          %v1932 = vsel %vm1798, %v1900, 0.0
          %v1933 = vsel %vm1799, %v1901, 0.0
          %v1934 = vsel %vm1800, %v1902, 0.0
          %v1935 = vsel %vm1801, %v1903, 0.0
          %v1936 = vsel %vm1802, %v1904, 0.0
          %v1937 = vsel %vm1803, %v1905, 0.0
          %v1938 = vsel %vm1804, %v1906, 0.0
          %v1939 = vsel %vm1805, %v1907, 0.0
          %v1940 = vsel %vm1806, %v1908, 0.0
          %v1941 = vsel %vm1807, %v1909, 0.0
          %v1942 = vmul.f32 %v1910, %v1910
          %v1943 = vmul.f32 %v1911, %v1911
          %v1944 = vmul.f32 %v1912, %v1912
          %v1945 = vmul.f32 %v1913, %v1913
          %v1946 = vmul.f32 %v1914, %v1914
          %v1947 = vmul.f32 %v1915, %v1915
          %v1948 = vmul.f32 %v1916, %v1916
          %v1949 = vmul.f32 %v1917, %v1917
          %v1950 = vmul.f32 %v1918, %v1918
          %v1951 = vmul.f32 %v1919, %v1919
          %v1952 = vmul.f32 %v1920, %v1920
          %v1953 = vmul.f32 %v1921, %v1921
          %v1954 = vmul.f32 %v1922, %v1922
          %v1955 = vmul.f32 %v1923, %v1923
          %v1956 = vmul.f32 %v1924, %v1924
          %v1957 = vmul.f32 %v1925, %v1925
          %v1958 = vmul.f32 %v1926, %v1926
          %v1959 = vmul.f32 %v1927, %v1927
          %v1960 = vmul.f32 %v1928, %v1928
          %v1961 = vmul.f32 %v1929, %v1929
          %v1962 = vmul.f32 %v1930, %v1930
          %v1963 = vmul.f32 %v1931, %v1931
          %v1964 = vmul.f32 %v1932, %v1932
          %v1965 = vmul.f32 %v1933, %v1933
          %v1966 = vmul.f32 %v1934, %v1934
          %v1967 = vmul.f32 %v1935, %v1935
          %v1968 = vmul.f32 %v1936, %v1936
          %v1969 = vmul.f32 %v1937, %v1937
          %v1970 = vmul.f32 %v1938, %v1938
          %v1971 = vmul.f32 %v1939, %v1939
          %v1972 = vmul.f32 %v1940, %v1940
          %v1973 = vmul.f32 %v1941, %v1941
          %v1974 = vadd.f32 %v1942, %v1943
          %v1975 = vadd.f32 %v1974, %v1944
          %v1976 = vadd.f32 %v1975, %v1945
          %v1977 = vadd.f32 %v1976, %v1946
          %v1978 = vadd.f32 %v1977, %v1947
          %v1979 = vadd.f32 %v1978, %v1948
          %v1980 = vadd.f32 %v1979, %v1949
          %v1981 = vadd.f32 %v1980, %v1950
          %v1982 = vadd.f32 %v1981, %v1951
          %v1983 = vadd.f32 %v1982, %v1952
          %v1984 = vadd.f32 %v1983, %v1953
          %v1985 = vadd.f32 %v1984, %v1954
          %v1986 = vadd.f32 %v1985, %v1955
          %v1987 = vadd.f32 %v1986, %v1956
          %v1988 = vadd.f32 %v1987, %v1957
          %v1989 = vadd.f32 %v1988, %v1958
          %v1990 = vadd.f32 %v1989, %v1959
          %v1991 = vadd.f32 %v1990, %v1960
          %v1992 = vadd.f32 %v1991, %v1961
          %v1993 = vadd.f32 %v1992, %v1962
          %v1994 = vadd.f32 %v1993, %v1963
          %v1995 = vadd.f32 %v1994, %v1964
          %v1996 = vadd.f32 %v1995, %v1965
          %v1997 = vadd.f32 %v1996, %v1966
          %v1998 = vadd.f32 %v1997, %v1967
          %v1999 = vadd.f32 %v1998, %v1968
          %v2000 = vadd.f32 %v1999, %v1969
          %v2001 = vadd.f32 %v2000, %v1970
          %v2002 = vadd.f32 %v2001, %v1971
          %v2003 = vadd.f32 %v2002, %v1972
          %v2004 = vadd.f32 %v2003, %v1973
          %v2005 = vrot.slane %v2004, 4
          %v2006 = vadd.f32 %v2004, %v2005
          %v2007 = vrot.slane %v2006, 2
          %v2008 = vadd.f32 %v2006, %v2007
          %v2009 = vrot.slane %v2008, 1
          %v2010 = vadd.f32 %v2008, %v2009
          %vm2011 = vcmask 1040384
          %v2012 = vsel %vm2011, %v1876, %v2010
          %vm2013 = vcmask 1041408
          %v2014 = vsel %vm2013, %v2012, 0.0
          %2015 = vst [vmem:[%s337] sm:$0xff] %v2014
        $region56: #{binary_head_forward.2} parent=47 // pred_fallthru
          _
        %s2016 = sand.u32 %s180, 1
        %s2017 = sand.u32 %s180, 1
        %s2018 = smul.addr %s2017, 128
        %s2019 = scalar_lea.vmem [#allocation2], %s2018
        %p2020 = scmp.lt.s32.totalorder %s20, 1
        %s2021 = scalar_select %p2020, %s20, 1
        %s2022 = smul.addr %s2021, 8
        %s2023 = scalar_lea.vmem %s8, %s2022
        // Predicated region
        $region57: #{binary_head_forward.2} parent=47 // pred_check
          %p2024 = pneg %p190
        $region58: #{binary_head_forward.2} parent=47 // pred_check_branch
          %2026 = sbr.rel (%p2024) target = $region60
        $region59: #{binary_head_forward.2} parent=47 // pred_region
          %s2027 = smul.u32 32, %s20
          %s2028 = ssub.s32 63, %s2027
          %p2029 = scmp.lt.s32.totalorder %s2028, 32
          %s2030 = scalar_select %p2029, %s2028, 32
          %s2031 = smul.u32 64, %s2030
          %p2032 = scmp.ne.s32.totalorder 0, %s2031
          %s2033 = smul.addr %s2027, 4
          %s2034 = scalar_lea.vmem %s7, %s2033
          // Predicated region
          $region61: #{binary_head_forward.2} parent=59 // pred_check
            %p2035 = pneg %p2032
          $region62: #{binary_head_forward.2} parent=59 // pred_check_branch
            %2037 = sbr.rel (%p2035) target = $region64
          $region63: #{binary_head_forward.2} parent=59 // pred_region
            // Predicated region
            $region65: #{binary_head_forward.2} parent=63 // pred_check
              _
            $region66: #{binary_head_forward.2} parent=63 // pred_check_branch
              %2039 = sbr.rel target = $region68
            $region67: #{binary_head_forward.2} parent=63 // pred_region
              // Predicated region
              $region87: #{binary_head_forward.2} parent=67 // pred_check
                _
              $region88: #{binary_head_forward.2} parent=67 // pred_check_branch
                %2150 = sbr.rel (0) target = $region90
              $region89: #{binary_head_forward.2} parent=67 // pred_region
                %s2152 = sshrl.u32 %s2030, 5
                // While loop
                $region91: #{binary_head_forward.2} parent=89 // loop_pre_header
                  _
                $region92: #{binary_head_forward.2} parent=89 // loop_header
                  %s2154 = sphi 0, %s2156
                  %p2155 = scmp.ge.s32.totalorder %s2154, %s2152
                  %s2159 = sphi 0, %s2228
                  %s2160 = sphi %s2019, %s2231
                  %s2161 = sphi %s2034, %s2232
                $region93: #{binary_head_forward.2} parent=89 // loop_header_branch
                  %2158 = sbr.rel (%p2155) target = $region97
                $region94: #{binary_head_forward.2} parent=89 // loop_body
                  %v2162 = vld [vmem:[%s2160] sm:$0xf]
                  %2163 = vst [vmem:[%s2161] sm:$0xf] %v2162
                  %v2164 = vld [vmem:[%s2160 + $0x4] sm:$0xf]
                  %2165 = vst [vmem:[%s2161 + $0x4] sm:$0xf] %v2164
                  %v2166 = vld [vmem:[%s2160 + $0x8] sm:$0xf]
                  %2167 = vst [vmem:[%s2161 + $0x8] sm:$0xf] %v2166
                  %v2168 = vld [vmem:[%s2160 + $0xc] sm:$0xf]
                  %2169 = vst [vmem:[%s2161 + $0xc] sm:$0xf] %v2168
                  %v2170 = vld [vmem:[%s2160 + $0x10] sm:$0xf]
                  %2171 = vst [vmem:[%s2161 + $0x10] sm:$0xf] %v2170
                  %v2172 = vld [vmem:[%s2160 + $0x14] sm:$0xf]
                  %2173 = vst [vmem:[%s2161 + $0x14] sm:$0xf] %v2172
                  %v2174 = vld [vmem:[%s2160 + $0x18] sm:$0xf]
                  %2175 = vst [vmem:[%s2161 + $0x18] sm:$0xf] %v2174
                  %v2176 = vld [vmem:[%s2160 + $0x1c] sm:$0xf]
                  %2177 = vst [vmem:[%s2161 + $0x1c] sm:$0xf] %v2176
                  %v2178 = vld [vmem:[%s2160 + $0x20] sm:$0xf]
                  %2179 = vst [vmem:[%s2161 + $0x20] sm:$0xf] %v2178
                  %v2180 = vld [vmem:[%s2160 + $0x24] sm:$0xf]
                  %2181 = vst [vmem:[%s2161 + $0x24] sm:$0xf] %v2180
                  %v2182 = vld [vmem:[%s2160 + $0x28] sm:$0xf]
                  %2183 = vst [vmem:[%s2161 + $0x28] sm:$0xf] %v2182
                  %v2184 = vld [vmem:[%s2160 + $0x2c] sm:$0xf]
                  %2185 = vst [vmem:[%s2161 + $0x2c] sm:$0xf] %v2184
                  %v2186 = vld [vmem:[%s2160 + $0x30] sm:$0xf]
                  %2187 = vst [vmem:[%s2161 + $0x30] sm:$0xf] %v2186
                  %v2188 = vld [vmem:[%s2160 + $0x34] sm:$0xf]
                  %2189 = vst [vmem:[%s2161 + $0x34] sm:$0xf] %v2188
                  %v2190 = vld [vmem:[%s2160 + $0x38] sm:$0xf]
                  %2191 = vst [vmem:[%s2161 + $0x38] sm:$0xf] %v2190
                  %v2192 = vld [vmem:[%s2160 + $0x3c] sm:$0xf]
                  %2193 = vst [vmem:[%s2161 + $0x3c] sm:$0xf] %v2192
                  %v2194 = vld [vmem:[%s2160 + $0x40] sm:$0xf]
                  %2195 = vst [vmem:[%s2161 + $0x40] sm:$0xf] %v2194
                  %v2196 = vld [vmem:[%s2160 + $0x44] sm:$0xf]
                  %2197 = vst [vmem:[%s2161 + $0x44] sm:$0xf] %v2196
                  %v2198 = vld [vmem:[%s2160 + $0x48] sm:$0xf]
                  %2199 = vst [vmem:[%s2161 + $0x48] sm:$0xf] %v2198
                  %v2200 = vld [vmem:[%s2160 + $0x4c] sm:$0xf]
                  %2201 = vst [vmem:[%s2161 + $0x4c] sm:$0xf] %v2200
                  %v2202 = vld [vmem:[%s2160 + $0x50] sm:$0xf]
                  %2203 = vst [vmem:[%s2161 + $0x50] sm:$0xf] %v2202
                  %v2204 = vld [vmem:[%s2160 + $0x54] sm:$0xf]
                  %2205 = vst [vmem:[%s2161 + $0x54] sm:$0xf] %v2204
                  %v2206 = vld [vmem:[%s2160 + $0x58] sm:$0xf]
                  %2207 = vst [vmem:[%s2161 + $0x58] sm:$0xf] %v2206
                  %v2208 = vld [vmem:[%s2160 + $0x5c] sm:$0xf]
                  %2209 = vst [vmem:[%s2161 + $0x5c] sm:$0xf] %v2208
                  %v2210 = vld [vmem:[%s2160 + $0x60] sm:$0xf]
                  %2211 = vst [vmem:[%s2161 + $0x60] sm:$0xf] %v2210
                  %v2212 = vld [vmem:[%s2160 + $0x64] sm:$0xf]
                  %2213 = vst [vmem:[%s2161 + $0x64] sm:$0xf] %v2212
                  %v2214 = vld [vmem:[%s2160 + $0x68] sm:$0xf]
                  %2215 = vst [vmem:[%s2161 + $0x68] sm:$0xf] %v2214
                  %v2216 = vld [vmem:[%s2160 + $0x6c] sm:$0xf]
                  %2217 = vst [vmem:[%s2161 + $0x6c] sm:$0xf] %v2216
                  %v2218 = vld [vmem:[%s2160 + $0x70] sm:$0xf]
                  %2219 = vst [vmem:[%s2161 + $0x70] sm:$0xf] %v2218
                  %v2220 = vld [vmem:[%s2160 + $0x74] sm:$0xf]
                  %2221 = vst [vmem:[%s2161 + $0x74] sm:$0xf] %v2220
                  %v2222 = vld [vmem:[%s2160 + $0x78] sm:$0xf]
                  %2223 = vst [vmem:[%s2161 + $0x78] sm:$0xf] %v2222
                  %v2224 = vld [vmem:[%s2160 + $0x7c] sm:$0xf]
                  %2225 = vst [vmem:[%s2161 + $0x7c] sm:$0xf] %v2224
                  %s2226 = sadd.s32 1, %s2159
                  %p2227 = scmp.ge.s32.totalorder %s2226, %s2152
                  %s2228 = scalar_select %p2227, 0, %s2226
                  %s2229 = smul.u32 %s2228, 128
                  %s2230 = smul.u32 %s2228, 128
                  %s2231 = scalar_lea.vmem %s2019, %s2229 [#allocation2]
                  %s2232 = scalar_lea.vmem %s2034, %s2230
                $region95: #{binary_head_forward.2} parent=89 // loop_footer
                  %s2156 = sadd.s32 %s2154, 1
                $region96: #{binary_head_forward.2} parent=89 // loop_footer_branch
                  %2153 = sbr.rel target = $region92
                $region97: #{binary_head_forward.2} parent=89 // loop_exit
                  _
                %s2233 = sshrl.u32 %s2030, 5
                %s2234 = sand.u32 %s2030, 31
                %s2235 = smul.u32 %s2233, 32
                %s2236 = smul.u32 4, %s2235
                %s2237 = scalar_lea.vmem %s2019, %s2236 [#allocation2]
                %s2238 = smul.u32 4, %s2235
                %s2239 = scalar_lea.vmem %s2034, %s2238
                // While loop
                $region98: #{binary_head_forward.2} parent=89 // loop_pre_header
                  _
                $region99: #{binary_head_forward.2} parent=89 // loop_header
                  %s2241 = sphi 0, %s2243
                  %p2242 = scmp.ge.s32.totalorder %s2241, %s2234
                  %s2246 = sphi 0, %s2253
                  %s2247 = sphi %s2237, %s2256
                  %s2248 = sphi %s2239, %s2257
                $region100: #{binary_head_forward.2} parent=89 // loop_header_branch
                  %2245 = sbr.rel (%p2242) target = $region104
                $region101: #{binary_head_forward.2} parent=89 // loop_body
                  %v2249 = vld [vmem:[%s2247] sm:$0xf]
                  %2250 = vst [vmem:[%s2248] sm:$0xf] %v2249
                  %s2251 = sadd.s32 1, %s2246
                  %p2252 = scmp.ge.s32.totalorder %s2251, %s2234
                  %s2253 = scalar_select %p2252, 0, %s2251
                  %s2254 = smul.u32 %s2253, 4
                  %s2255 = smul.u32 %s2253, 4
                  %s2256 = scalar_lea.vmem %s2237, %s2254 [#allocation2]
                  %s2257 = scalar_lea.vmem %s2239, %s2255
                $region102: #{binary_head_forward.2} parent=89 // loop_footer
                  %s2243 = sadd.s32 %s2241, 1
                $region103: #{binary_head_forward.2} parent=89 // loop_footer_branch
                  %2240 = sbr.rel target = $region99
                $region104: #{binary_head_forward.2} parent=89 // loop_exit
                  _
              $region90: #{binary_head_forward.2} parent=67 // pred_fallthru
                _
            $region68: #{binary_head_forward.2} parent=63 // pred_fallthru
              _
            // Predicated region
            $region69: #{binary_head_forward.2} parent=63 // pred_check
              _
            $region70: #{binary_head_forward.2} parent=63 // pred_check_branch
              %2041 = sbr.rel (0) target = $region72
            $region71: #{binary_head_forward.2} parent=63 // pred_region
              %s2043 = sshrl.u32 %s2030, 5
              // While loop
              $region73: #{binary_head_forward.2} parent=71 // loop_pre_header
                _
              $region74: #{binary_head_forward.2} parent=71 // loop_header
                %s2045 = sphi 0, %s2047
                %p2046 = scmp.ge.s32.totalorder %s2045, %s2043
                %s2050 = sphi 0, %s2119
                %s2051 = sphi %s2019, %s2122
                %s2052 = sphi %s2034, %s2123
              $region75: #{binary_head_forward.2} parent=71 // loop_header_branch
                %2049 = sbr.rel (%p2046) target = $region79
              $region76: #{binary_head_forward.2} parent=71 // loop_body
                %v2053 = vld [vmem:[%s2051] sm:$0xf]
                %2054 = vst [vmem:[%s2052] sm:$0xf] %v2053
                %v2055 = vld [vmem:[%s2051 + $0x4] sm:$0xf]
                %2056 = vst [vmem:[%s2052 + $0x4] sm:$0xf] %v2055
                %v2057 = vld [vmem:[%s2051 + $0x8] sm:$0xf]
                %2058 = vst [vmem:[%s2052 + $0x8] sm:$0xf] %v2057
                %v2059 = vld [vmem:[%s2051 + $0xc] sm:$0xf]
                %2060 = vst [vmem:[%s2052 + $0xc] sm:$0xf] %v2059
                %v2061 = vld [vmem:[%s2051 + $0x10] sm:$0xf]
                %2062 = vst [vmem:[%s2052 + $0x10] sm:$0xf] %v2061
                %v2063 = vld [vmem:[%s2051 + $0x14] sm:$0xf]
                %2064 = vst [vmem:[%s2052 + $0x14] sm:$0xf] %v2063
                %v2065 = vld [vmem:[%s2051 + $0x18] sm:$0xf]
                %2066 = vst [vmem:[%s2052 + $0x18] sm:$0xf] %v2065
                %v2067 = vld [vmem:[%s2051 + $0x1c] sm:$0xf]
                %2068 = vst [vmem:[%s2052 + $0x1c] sm:$0xf] %v2067
                %v2069 = vld [vmem:[%s2051 + $0x20] sm:$0xf]
                %2070 = vst [vmem:[%s2052 + $0x20] sm:$0xf] %v2069
                %v2071 = vld [vmem:[%s2051 + $0x24] sm:$0xf]
                %2072 = vst [vmem:[%s2052 + $0x24] sm:$0xf] %v2071
                %v2073 = vld [vmem:[%s2051 + $0x28] sm:$0xf]
                %2074 = vst [vmem:[%s2052 + $0x28] sm:$0xf] %v2073
                %v2075 = vld [vmem:[%s2051 + $0x2c] sm:$0xf]
                %2076 = vst [vmem:[%s2052 + $0x2c] sm:$0xf] %v2075
                %v2077 = vld [vmem:[%s2051 + $0x30] sm:$0xf]
                %2078 = vst [vmem:[%s2052 + $0x30] sm:$0xf] %v2077
                %v2079 = vld [vmem:[%s2051 + $0x34] sm:$0xf]
                %2080 = vst [vmem:[%s2052 + $0x34] sm:$0xf] %v2079
                %v2081 = vld [vmem:[%s2051 + $0x38] sm:$0xf]
                %2082 = vst [vmem:[%s2052 + $0x38] sm:$0xf] %v2081
                %v2083 = vld [vmem:[%s2051 + $0x3c] sm:$0xf]
                %2084 = vst [vmem:[%s2052 + $0x3c] sm:$0xf] %v2083
                %v2085 = vld [vmem:[%s2051 + $0x40] sm:$0xf]
                %2086 = vst [vmem:[%s2052 + $0x40] sm:$0xf] %v2085
                %v2087 = vld [vmem:[%s2051 + $0x44] sm:$0xf]
                %2088 = vst [vmem:[%s2052 + $0x44] sm:$0xf] %v2087
                %v2089 = vld [vmem:[%s2051 + $0x48] sm:$0xf]
                %2090 = vst [vmem:[%s2052 + $0x48] sm:$0xf] %v2089
                %v2091 = vld [vmem:[%s2051 + $0x4c] sm:$0xf]
                %2092 = vst [vmem:[%s2052 + $0x4c] sm:$0xf] %v2091
                %v2093 = vld [vmem:[%s2051 + $0x50] sm:$0xf]
                %2094 = vst [vmem:[%s2052 + $0x50] sm:$0xf] %v2093
                %v2095 = vld [vmem:[%s2051 + $0x54] sm:$0xf]
                %2096 = vst [vmem:[%s2052 + $0x54] sm:$0xf] %v2095
                %v2097 = vld [vmem:[%s2051 + $0x58] sm:$0xf]
                %2098 = vst [vmem:[%s2052 + $0x58] sm:$0xf] %v2097
                %v2099 = vld [vmem:[%s2051 + $0x5c] sm:$0xf]
                %2100 = vst [vmem:[%s2052 + $0x5c] sm:$0xf] %v2099
                %v2101 = vld [vmem:[%s2051 + $0x60] sm:$0xf]
                %2102 = vst [vmem:[%s2052 + $0x60] sm:$0xf] %v2101
                %v2103 = vld [vmem:[%s2051 + $0x64] sm:$0xf]
                %2104 = vst [vmem:[%s2052 + $0x64] sm:$0xf] %v2103
                %v2105 = vld [vmem:[%s2051 + $0x68] sm:$0xf]
                %2106 = vst [vmem:[%s2052 + $0x68] sm:$0xf] %v2105
                %v2107 = vld [vmem:[%s2051 + $0x6c] sm:$0xf]
                %2108 = vst [vmem:[%s2052 + $0x6c] sm:$0xf] %v2107
                %v2109 = vld [vmem:[%s2051 + $0x70] sm:$0xf]
                %2110 = vst [vmem:[%s2052 + $0x70] sm:$0xf] %v2109
                %v2111 = vld [vmem:[%s2051 + $0x74] sm:$0xf]
                %2112 = vst [vmem:[%s2052 + $0x74] sm:$0xf] %v2111
                %v2113 = vld [vmem:[%s2051 + $0x78] sm:$0xf]
                %2114 = vst [vmem:[%s2052 + $0x78] sm:$0xf] %v2113
                %v2115 = vld [vmem:[%s2051 + $0x7c] sm:$0xf]
                %2116 = vst [vmem:[%s2052 + $0x7c] sm:$0xf] %v2115
                %s2117 = sadd.s32 1, %s2050
                %p2118 = scmp.ge.s32.totalorder %s2117, %s2043
                %s2119 = scalar_select %p2118, 0, %s2117
                %s2120 = smul.u32 %s2119, 128
                %s2121 = smul.u32 %s2119, 128
                %s2122 = scalar_lea.vmem %s2019, %s2120 [#allocation2]
                %s2123 = scalar_lea.vmem %s2034, %s2121
              $region77: #{binary_head_forward.2} parent=71 // loop_footer
                %s2047 = sadd.s32 %s2045, 1
              $region78: #{binary_head_forward.2} parent=71 // loop_footer_branch
                %2044 = sbr.rel target = $region74
              $region79: #{binary_head_forward.2} parent=71 // loop_exit
                _
              %s2124 = sshrl.u32 %s2030, 5
              %s2125 = sand.u32 %s2030, 31
              %s2126 = smul.u32 %s2124, 32
              %s2127 = smul.u32 4, %s2126
              %s2128 = scalar_lea.vmem %s2019, %s2127 [#allocation2]
              %s2129 = smul.u32 4, %s2126
              %s2130 = scalar_lea.vmem %s2034, %s2129
              // While loop
              $region80: #{binary_head_forward.2} parent=71 // loop_pre_header
                _
              $region81: #{binary_head_forward.2} parent=71 // loop_header
                %s2132 = sphi 0, %s2134
                %p2133 = scmp.ge.s32.totalorder %s2132, %s2125
                %s2137 = sphi 0, %s2144
                %s2138 = sphi %s2128, %s2147
                %s2139 = sphi %s2130, %s2148
              $region82: #{binary_head_forward.2} parent=71 // loop_header_branch
                %2136 = sbr.rel (%p2133) target = $region86
              $region83: #{binary_head_forward.2} parent=71 // loop_body
                %v2140 = vld [vmem:[%s2138] sm:$0xf]
                %2141 = vst [vmem:[%s2139] sm:$0xf] %v2140
                %s2142 = sadd.s32 1, %s2137
                %p2143 = scmp.ge.s32.totalorder %s2142, %s2125
                %s2144 = scalar_select %p2143, 0, %s2142
                %s2145 = smul.u32 %s2144, 4
                %s2146 = smul.u32 %s2144, 4
                %s2147 = scalar_lea.vmem %s2128, %s2145 [#allocation2]
                %s2148 = scalar_lea.vmem %s2130, %s2146
              $region84: #{binary_head_forward.2} parent=71 // loop_footer
                %s2134 = sadd.s32 %s2132, 1
              $region85: #{binary_head_forward.2} parent=71 // loop_footer_branch
                %2131 = sbr.rel target = $region81
              $region86: #{binary_head_forward.2} parent=71 // loop_exit
                _
            $region72: #{binary_head_forward.2} parent=63 // pred_fallthru
              _
          $region64: #{binary_head_forward.2} parent=59 // pred_fallthru
            _
          %2258 = vnop
        $region60: #{binary_head_forward.2} parent=47 // pred_fallthru
          _
        // Predicated region
        $region105: #{binary_head_forward.2} parent=47 // pred_check
          %p2259 = pneg %p216
        $region106: #{binary_head_forward.2} parent=47 // pred_check_branch
          %2261 = sbr.rel (%p2259) target = $region108
        $region107: #{binary_head_forward.2} parent=47 // pred_region
          _
        $region108: #{binary_head_forward.2} parent=47 // pred_fallthru
          _
      $region48: #{binary_head_forward.2} parent=5 // pred_fallthru
        _
      %p2262 = scmp.le.s32.totalorder 2, %s15
      // Predicated region
      $region109: #{binary_head_forward.2} parent=5 // pred_check
        %p2263 = pneg %p2262
      $region110: #{binary_head_forward.2} parent=5 // pred_check_branch
        %2265 = sbr.rel (%p2263) target = $region112
      $region111: #{binary_head_forward.2} parent=5 // pred_region
        %s2266 = ssub.s32 %s15, 2
        // Predicated region
        $region113: #{binary_head_forward.2} parent=111 // pred_check
          %p2267 = pneg %p196
        $region114: #{binary_head_forward.2} parent=111 // pred_check_branch
          %2269 = sbr.rel (%p2267) target = $region116
        $region115: #{binary_head_forward.2} parent=111 // pred_region
          %s2270 = sand.u32 %s181, 1
          %s2271 = sand.u32 %s181, 1
          %s2272 = smul.addr %s2271, 128
          %s2273 = scalar_lea.vmem [#allocation2], %s2272
        $region116: #{binary_head_forward.2} parent=111 // pred_fallthru
          _
        // Predicated region
        $region117: #{binary_head_forward.2} parent=111 // pred_check
          %p2274 = pneg %p222
        $region118: #{binary_head_forward.2} parent=111 // pred_check_branch
          %2276 = sbr.rel (%p2274) target = $region120
        $region119: #{binary_head_forward.2} parent=111 // pred_region
          %p2277 = scmp.lt.s32.totalorder %s21, 1
          %s2278 = scalar_select %p2277, %s21, 1
          %s2279 = smul.addr %s2278, 8
          %s2280 = scalar_lea.vmem %s8, %s2279
        $region120: #{binary_head_forward.2} parent=111 // pred_fallthru
          _
      $region112: #{binary_head_forward.2} parent=5 // pred_fallthru
        _
    $region6: #{binary_head_forward.2} parent=1 // loop_footer
      %s19 = sadd.s32 1, %s15
    $region7: #{binary_head_forward.2} parent=1 // loop_footer_branch
      %14 = sbr.rel target = $region3
    $region8: #{binary_head_forward.2} parent=1 // loop_exit
      _

</llo_original>
